<compile_context>
chip_gen: v7x
topology: tpu7x:2x2x1
jax: 0.10.0
libtpu: 0.0.40
codegen_flags: <defaults>
</compile_context>

<pallas_src>
import functools
import math

import jax
import jax.numpy as jnp
from jax.experimental import pallas as pl
from jax.experimental.pallas import tpu as pltpu


def _sigmoid(z):
    # Explicit form (exp + reciprocal -> EUP); used identically in the reference.
    return 1.0 / (1.0 + jnp.exp(-z))


def _madmil_heads_kernel(x_ref, w0_ref, b0_ref, wab_ref, bab_ref, wc_ref, bc_ref,
                         h_ref, a_ref, *, n_heads, step, dim):
    # x_ref : (tm, L0) bf16       w0_ref : (L0, H1) bf16       b0_ref: (1, H1) f32
    # wab   : (n_heads, step, 2*dim) bf16   bab: (n_heads, 1, 2*dim) f32
    # wc    : (n_heads, 1, dim) f32         bc : (n_heads, 1, 1) f32
    # h_ref : (tm, H1) f32        a_ref  : (tm, n_heads) f32

    # net_general: ReLU(x @ W0 + b0) -- bf16 operands, f32 MXU accumulation.
    h = jnp.dot(x_ref[...], w0_ref[...], preferred_element_type=jnp.float32)
    h = jnp.maximum(h + b0_ref[...], 0.0)
    h_ref[...] = h.astype(h_ref.dtype)

    # Gated attention per head (n_heads == 2: tiny static unroll).
    logits = []
    for hd in range(n_heads):
        hh = h[:, hd * step:(hd + 1) * step].astype(jnp.bfloat16)     # (tm, step)
        # Fused tanh/sigmoid branches: one (step, 2*dim) MXU pass per head.
        zab = jnp.dot(hh, wab_ref[hd], preferred_element_type=jnp.float32) + bab_ref[hd]
        g = jnp.tanh(zab[:, :dim]) * _sigmoid(zab[:, dim:])           # (tm, dim) f32
        # Linear(dim, 1): VPU multiply + lane reduce (keeps MXU for the real matmuls).
        logits.append(jnp.sum(g * wc_ref[hd], axis=-1, keepdims=True) + bc_ref[hd])
    a_ref[...] = jnp.concatenate(logits, axis=-1).astype(a_ref.dtype)  # single store


def madmil_heads(x, params, *, tm=256):
    """Fused net_general + gated attention heads (Pallas).

    Returns (h, A): h (N, H1) post-ReLU features, A (N, n_heads) raw attn logits.
    """
    N, L0 = x.shape
    w0 = params["w0"]
    H1 = w0.shape[1]
    n_heads, step, dim = params["wa"].shape
    assert tm % 128 == 0, "row tile must be a multiple of 128 (MXU / sublane packing)"

    # Pad the bag to a multiple of tm (arbitrary N); padded rows sliced off below.
    n_pad = (-N) % tm
    if n_pad:
        x = jnp.pad(x, ((0, n_pad), (0, 0)))
    n_rows = N + n_pad
    grid = (n_rows // tm,)

    # bf16 MXU operands; biases / accumulation stay f32.
    x_bf = x.astype(jnp.bfloat16)
    w0_bf = w0.astype(jnp.bfloat16)
    # Fuse tanh (Wa) and sigmoid (Wb) branches into one matmul operand per head.
    wab_bf = jnp.concatenate([params["wa"], params["wb"]], axis=-1).astype(jnp.bfloat16)
    bab = jnp.concatenate([params["ba"], params["bb"]], axis=-1)

    kernel = functools.partial(_madmil_heads_kernel, n_heads=n_heads, step=step, dim=dim)

    h, a = pl.pallas_call(
        kernel,
        out_shape=(
            jax.ShapeDtypeStruct((n_rows, H1), jnp.float32),
            jax.ShapeDtypeStruct((n_rows, n_heads), jnp.float32),
        ),
        grid_spec=pltpu.PrefetchScalarGridSpec(
            num_scalar_prefetch=0,
            grid=grid,
            in_specs=[
                pl.BlockSpec((tm, L0), lambda i: (i, 0)),                      # x tile
                pl.BlockSpec((L0, H1), lambda i: (0, 0)),                      # W0
                pl.BlockSpec((1, H1), lambda i: (0, 0)),                       # b0
                pl.BlockSpec((n_heads, step, 2 * dim), lambda i: (0, 0, 0)),   # Wab
                pl.BlockSpec((n_heads, 1, 2 * dim), lambda i: (0, 0, 0)),      # bab
                pl.BlockSpec((n_heads, 1, dim), lambda i: (0, 0, 0)),          # wc rows
                pl.BlockSpec((n_heads, 1, 1), lambda i: (0, 0, 0)),            # bc
            ],
            out_specs=(
                pl.BlockSpec((tm, H1), lambda i: (i, 0)),                      # h (lane-dense)
                pl.BlockSpec((tm, n_heads), lambda i: (i, 0)),                 # A logits
            ),
        ),
        compiler_params=pltpu.CompilerParams(
            # Independent row tiles -> shards across v7x's two TensorCores.
            dimension_semantics=("parallel",),
        ),
    )(x_bf, w0_bf, params["b0"], wab_bf, bab, params["wc"], params["bc"])

    return h[:N], a[:N]


def _bag_tail(h, a_logits, params):
    """Bag-level ops (softmax over N, attention pooling, tiny classifiers) in plain JAX."""
    # TODO(synk): O(1)-in-N bag head (softmax pooling, 2x256 classifiers, top-k) kept in
    # plain JAX; no N-scaled work remains here.
    N = h.shape[0]
    n_heads, step, _ = params["wa"].shape
    A_raw = jnp.transpose(a_logits)[None]                    # (1, n_heads, N) == torch.transpose(A, 2, 0)
    A = jax.nn.softmax(A_raw, axis=-1)
    M = jnp.einsum("ijk,kjl->ijl", A, h.reshape(N, n_heads, step))   # (1, n_heads, step)
    M_ = M.reshape(-1, step)                                 # (n_heads, step)
    outputs = M_ @ params["w_cls"] + params["b_cls"]         # classifier: Linear(step, n_heads)
    logits = M.reshape(1, n_heads * step) @ params["w_bag"] + params["b_bag"]
    Y_prob = jax.nn.softmax(logits, axis=1)
    Y_hat = jax.lax.top_k(logits, 1)[1]                      # torch.topk(logits,1,dim=1)[1]
    return logits, Y_prob, Y_hat, outputs, A_raw


def madmil_forward(x, params, *, tm=256, attention_only=False):
    """Full MADMIL_CLASS.forward: (logits, Y_prob, Y_hat, outputs, A_raw)."""
    h, a_logits = madmil_heads(x, params, tm=tm)
    if attention_only:
        return jnp.transpose(a_logits)[None]
    return _bag_tail(h, a_logits, params)


# ----------------------------- reference (plain JAX) -----------------------------

def madmil_heads_ref(x, params):
    """Pure-JAX reference with the same bf16-operand / f32-accumulation numerics."""
    n_heads, step, _ = params["wa"].shape
    h = jnp.dot(x.astype(jnp.bfloat16), params["w0"].astype(jnp.bfloat16),
                preferred_element_type=jnp.float32) + params["b0"]
    h = jnp.maximum(h, 0.0)
    logits = []
    for hd in range(n_heads):
        hh = h[:, hd * step:(hd + 1) * step].astype(jnp.bfloat16)
        za = jnp.dot(hh, params["wa"][hd].astype(jnp.bfloat16),
                     preferred_element_type=jnp.float32) + params["ba"][hd]
        zb = jnp.dot(hh, params["wb"][hd].astype(jnp.bfloat16),
                     preferred_element_type=jnp.float32) + params["bb"][hd]
        g = jnp.tanh(za) * _sigmoid(zb)
        logits.append(jnp.sum(g * params["wc"][hd], axis=-1, keepdims=True) + params["bc"][hd])
    return h, jnp.concatenate(logits, axis=-1)


# ----------------------------- parameters -----------------------------

def madmil_config(size_arg="small", n_heads=2, head_size="small"):
    size_dict = {"small": [1024, 512, 256], "big": [1024, 512, 384], "tiny": [1024, 128, 16]}
    size = list(size_dict[size_arg])
    if size[1] % n_heads != 0:
        size[1] = math.ceil(size[1] / n_heads) * n_heads
    step = size[1] // n_heads
    dim = {"tiny": step // 4, "small": step // 2, "big": step}.get(head_size, step * 2)
    return size, step, dim


def init_params(key, *, size_arg="small", n_heads=2, head_size="small", n_classes=2,
                dtype=jnp.float32):
    """Deterministic synthetic parameters (PyTorch-Linear-style uniform init).
    Weights are stored as (in, out) so kernels compute y = x @ W + b."""
    size, step, dim = madmil_config(size_arg, n_heads, head_size)
    L0, H1 = size[0], size[1]
    ks = jax.random.split(key, 12)

    def lin(kw, kb, fan_in, shape_w, shape_b):
        bound = 1.0 / math.sqrt(fan_in)
        return (jax.random.uniform(kw, shape_w, dtype, -bound, bound),
                jax.random.uniform(kb, shape_b, dtype, -bound, bound))

    w0, b0 = lin(ks[0], ks[1], L0, (L0, H1), (1, H1))
    wa, ba = lin(ks[2], ks[3], step, (n_heads, step, dim), (n_heads, 1, dim))
    wb, bb = lin(ks[4], ks[5], step, (n_heads, step, dim), (n_heads, 1, dim))
    wc, bc = lin(ks[6], ks[7], dim, (n_heads, 1, dim), (n_heads, 1, 1))
    w_cls, b_cls = lin(ks[8], ks[9], step, (step, n_heads), (n_heads,))
    w_bag, b_bag = lin(ks[10], ks[11], H1, (H1, n_classes), (n_classes,))
    return dict(w0=w0, b0=b0, wa=wa, ba=ba, wb=wb, bb=bb, wc=wc, bc=bc,
                w_cls=w_cls, b_cls=b_cls, w_bag=w_bag, b_bag=b_bag)


# ----------------------------- demo / self-check -----------------------------

if __name__ == "__main__":
    # MADMIL_CLASS defaults: 1024-dim instance features, 512 hidden, 2 gated heads.
    N = 333          # bag of 333 instances: exercises N-padding; grid has 2 steps.
    key = jax.random.PRNGKey(0)
    kx, kp = jax.random.split(key)
    params = init_params(kp)
    L0, H1 = params["w0"].shape
    n_heads = params["wa"].shape[0]
    n_classes = params["w_bag"].shape[1]
    x = jax.random.normal(kx, (N, L0), jnp.float32)

    # Pallas forward
    h, a_logits = madmil_heads(x, params, tm=256)
    logits, Y_prob, Y_hat, outputs, A_raw = _bag_tail(h, a_logits, params)
    jax.block_until_ready((h, a_logits, logits, Y_prob, Y_hat, outputs, A_raw))

    # Reference with matching (bf16 operand / f32 accumulation) numerics.
    h_want, a_want = madmil_heads_ref(x, params)
    ref_logits, ref_prob, _, ref_outputs, ref_A_raw = _bag_tail(h_want, a_want, params)

    assert h.shape == (N, H1)
    assert a_logits.shape == (N, n_heads)
    assert logits.shape == (1, n_classes) and Y_prob.shape == (1, n_classes)
    assert Y_hat.shape == (1, 1)
    assert outputs.shape == (n_heads, n_heads)
    assert A_raw.shape == (1, n_heads, N)

    tol = dict(atol=2e-3, rtol=2e-3)
    assert jnp.allclose(h, h_want, **tol), "hidden features mismatch"
    assert jnp.allclose(a_logits, a_want, **tol), "attention logits mismatch"
    assert jnp.allclose(logits, ref_logits, **tol), "bag logits mismatch"
    assert jnp.allclose(Y_prob, ref_prob, **tol), "Y_prob mismatch"
    assert jnp.allclose(outputs, ref_outputs, **tol), "per-head classifier mismatch"
    assert jnp.allclose(A_raw, ref_A_raw, **tol), "A_raw mismatch"

    print("KERNEL_OK")
</pallas_src>

<mosaic_0001>
module attributes {stable_mosaic.version = 11 : i64} {
  func.func @_madmil_heads_kernel(%arg0: i32, %arg1: memref<256x1024xbf16, #tpu.memory_space<vmem>>, %arg2: memref<1024x512xbf16, #tpu.memory_space<vmem>>, %arg3: memref<1x512xf32, #tpu.memory_space<vmem>>, %arg4: memref<2x256x256xbf16, #tpu.memory_space<vmem>>, %arg5: memref<2x1x256xf32, #tpu.memory_space<vmem>>, %arg6: memref<2x1x128xf32, #tpu.memory_space<vmem>>, %arg7: memref<2x1x1xf32, #tpu.memory_space<vmem>>, %arg8: memref<256x512xf32, #tpu.memory_space<vmem>>, %arg9: memref<256x2xf32, #tpu.memory_space<vmem>>) attributes {dimension_semantics = [#tpu.dimension_semantics<parallel>], iteration_bounds = array<i64: 2>, scalar_prefetch = 0 : i64, scratch_operands = 0 : i64, tpu.core_type = #tpu.core_type<tc>, window_params = [{transform_indices = @transform_0, window_bounds = array<i64: 256, 1024>}, {pipeline_mode = #tpu.pipeline_mode<synchronous>, transform_indices = @transform_1, window_bounds = array<i64: 1024, 512>}, {pipeline_mode = #tpu.pipeline_mode<synchronous>, transform_indices = @transform_2, window_bounds = array<i64: 1, 512>}, {pipeline_mode = #tpu.pipeline_mode<synchronous>, transform_indices = @transform_3, window_bounds = array<i64: 2, 256, 256>}, {pipeline_mode = #tpu.pipeline_mode<synchronous>, transform_indices = @transform_4, window_bounds = array<i64: 2, 1, 256>}, {pipeline_mode = #tpu.pipeline_mode<synchronous>, transform_indices = @transform_5, window_bounds = array<i64: 2, 1, 128>}, {pipeline_mode = #tpu.pipeline_mode<synchronous>, transform_indices = @transform_6, window_bounds = array<i64: 2, 1, 1>}, {transform_indices = @transform_7, window_bounds = array<i64: 256, 512>}, {transform_indices = @transform_8, window_bounds = array<i64: 256, 2>}]} {
    %c0 = arith.constant 0 : index
    %c0_0 = arith.constant 0 : index
    %0 = vector.load %arg1[%c0, %c0_0] : memref<256x1024xbf16, #tpu.memory_space<vmem>>, vector<256x1024xbf16>
    %c0_1 = arith.constant 0 : index
    %c0_2 = arith.constant 0 : index
    %1 = vector.load %arg2[%c0_1, %c0_2] : memref<1024x512xbf16, #tpu.memory_space<vmem>>, vector<1024x512xbf16>
    %cst = arith.constant dense<0.000000e+00> : vector<256x512xf32>
    %2 = tpu.matmul %0, %1, %cst {dimension_numbers = #tpu.dot_dimension_numbers<[1], [0], [0], [1], [0, 0, 1, 1], [], []>} : vector<256x1024xbf16>, vector<1024x512xbf16>, vector<256x512xf32> -> vector<256x512xf32>
    %c0_3 = arith.constant 0 : index
    %c0_4 = arith.constant 0 : index
    %3 = vector.load %arg3[%c0_3, %c0_4] : memref<1x512xf32, #tpu.memory_space<vmem>>, vector<1x512xf32>
    %4 = vector.broadcast %3 : vector<1x512xf32> to vector<256x512xf32>
    %5 = arith.addf %2, %4 : vector<256x512xf32>
    %cst_5 = arith.constant 0.000000e+00 : f32
    %6 = vector.broadcast %cst_5 : f32 to vector<256x512xf32>
    %7 = arith.maximumf %5, %6 : vector<256x512xf32>
    %c0_6 = arith.constant 0 : index
    %c0_7 = arith.constant 0 : index
    %8 = vector.load %arg8[%c0_6, %c0_7] : memref<256x512xf32, #tpu.memory_space<vmem>>, vector<256x512xf32>
    tpu.vector_store %arg8[%c0_6, %c0_7], %7 {strides = array<i32>} : memref<256x512xf32, #tpu.memory_space<vmem>>, vector<256x512xf32>,
    %9 = vector.extract_strided_slice %7 {offsets = [0, 0], sizes = [256, 256], strides = [1, 1]} : vector<256x512xf32> to vector<256x256xf32>
    %10 = arith.truncf %9 : vector<256x256xf32> to vector<256x256xbf16>
    %c0_8 = arith.constant 0 : index
    %c0_9 = arith.constant 0 : index
    %c0_10 = arith.constant 0 : index
    %11 = vector.load %arg4[%c0_8, %c0_9, %c0_10] : memref<2x256x256xbf16, #tpu.memory_space<vmem>>, vector<1x256x256xbf16>
    %12 = vector.shape_cast %11 : vector<1x256x256xbf16> to vector<256x256xbf16>
    %cst_11 = arith.constant dense<0.000000e+00> : vector<256x256xf32>
    %13 = tpu.matmul %10, %12, %cst_11 {dimension_numbers = #tpu.dot_dimension_numbers<[1], [0], [0], [1], [0, 0, 1, 1], [], []>} : vector<256x256xbf16>, vector<256x256xbf16>, vector<256x256xf32> -> vector<256x256xf32>
    %c0_12 = arith.constant 0 : index
    %c0_13 = arith.constant 0 : index
    %c0_14 = arith.constant 0 : index
    %14 = vector.load %arg5[%c0_12, %c0_13, %c0_14] : memref<2x1x256xf32, #tpu.memory_space<vmem>>, vector<1x1x256xf32>
    %15 = vector.shape_cast %14 : vector<1x1x256xf32> to vector<1x256xf32>
    %16 = vector.broadcast %15 : vector<1x256xf32> to vector<256x256xf32>
    %17 = arith.addf %13, %16 : vector<256x256xf32>
    %18 = vector.extract_strided_slice %17 {offsets = [0, 0], sizes = [256, 128], strides = [1, 1]} : vector<256x256xf32> to vector<256x128xf32>
    %19 = math.tanh %18 : vector<256x128xf32>
    %20 = vector.extract_strided_slice %17 {offsets = [0, 128], sizes = [256, 128], strides = [1, 1]} : vector<256x256xf32> to vector<256x128xf32>
    %cst_15 = arith.constant 0.000000e+00 : f32
    %21 = vector.broadcast %cst_15 : f32 to vector<256x128xf32>
    %22 = arith.subf %21, %20 : vector<256x128xf32>
    %23 = math.exp %22 : vector<256x128xf32>
    %cst_16 = arith.constant 1.000000e+00 : f32
    %24 = vector.broadcast %cst_16 : f32 to vector<256x128xf32>
    %25 = arith.addf %24, %23 : vector<256x128xf32>
    %cst_17 = arith.constant 1.000000e+00 : f32
    %26 = vector.broadcast %cst_17 : f32 to vector<256x128xf32>
    %27 = arith.divf %26, %25 : vector<256x128xf32>
    %28 = arith.mulf %19, %27 : vector<256x128xf32>
    %c0_18 = arith.constant 0 : index
    %c0_19 = arith.constant 0 : index
    %c0_20 = arith.constant 0 : index
    %29 = vector.load %arg6[%c0_18, %c0_19, %c0_20] : memref<2x1x128xf32, #tpu.memory_space<vmem>>, vector<1x1x128xf32>
    %30 = vector.shape_cast %29 : vector<1x1x128xf32> to vector<1x128xf32>
    %31 = vector.broadcast %30 : vector<1x128xf32> to vector<256x128xf32>
    %32 = arith.mulf %28, %31 : vector<256x128xf32>
    %cst_21 = arith.constant dense<0.000000e+00> : vector<256xf32>
    %33 = vector.multi_reduction <add>, %32, %cst_21 [1] : vector<256x128xf32> to vector<256xf32>
    %34 = vector.shape_cast %33 : vector<256xf32> to vector<256x1xf32>
    %c0_22 = arith.constant 0 : index
    %c0_23 = arith.constant 0 : index
    %c0_24 = arith.constant 0 : index
    %35 = vector.load %arg7[%c0_22, %c0_23, %c0_24] : memref<2x1x1xf32, #tpu.memory_space<vmem>>, vector<1x1x1xf32>
    %36 = vector.shape_cast %35 : vector<1x1x1xf32> to vector<1x1xf32>
    %37 = vector.broadcast %36 : vector<1x1xf32> to vector<256x1xf32>
    %38 = arith.addf %34, %37 : vector<256x1xf32>
    %39 = vector.extract_strided_slice %7 {offsets = [0, 256], sizes = [256, 256], strides = [1, 1]} : vector<256x512xf32> to vector<256x256xf32>
    %40 = arith.truncf %39 : vector<256x256xf32> to vector<256x256xbf16>
    %c1 = arith.constant 1 : index
    %c0_25 = arith.constant 0 : index
    %c0_26 = arith.constant 0 : index
    %41 = vector.load %arg4[%c1, %c0_25, %c0_26] : memref<2x256x256xbf16, #tpu.memory_space<vmem>>, vector<1x256x256xbf16>
    %42 = vector.shape_cast %41 : vector<1x256x256xbf16> to vector<256x256xbf16>
    %cst_27 = arith.constant dense<0.000000e+00> : vector<256x256xf32>
    %43 = tpu.matmul %40, %42, %cst_27 {dimension_numbers = #tpu.dot_dimension_numbers<[1], [0], [0], [1], [0, 0, 1, 1], [], []>} : vector<256x256xbf16>, vector<256x256xbf16>, vector<256x256xf32> -> vector<256x256xf32>
    %c1_28 = arith.constant 1 : index
    %c0_29 = arith.constant 0 : index
    %c0_30 = arith.constant 0 : index
    %44 = vector.load %arg5[%c1_28, %c0_29, %c0_30] : memref<2x1x256xf32, #tpu.memory_space<vmem>>, vector<1x1x256xf32>
    %45 = vector.shape_cast %44 : vector<1x1x256xf32> to vector<1x256xf32>
    %46 = vector.broadcast %45 : vector<1x256xf32> to vector<256x256xf32>
    %47 = arith.addf %43, %46 : vector<256x256xf32>
    %48 = vector.extract_strided_slice %47 {offsets = [0, 0], sizes = [256, 128], strides = [1, 1]} : vector<256x256xf32> to vector<256x128xf32>
    %49 = math.tanh %48 : vector<256x128xf32>
    %50 = vector.extract_strided_slice %47 {offsets = [0, 128], sizes = [256, 128], strides = [1, 1]} : vector<256x256xf32> to vector<256x128xf32>
    %cst_31 = arith.constant 0.000000e+00 : f32
    %51 = vector.broadcast %cst_31 : f32 to vector<256x128xf32>
    %52 = arith.subf %51, %50 : vector<256x128xf32>
    %53 = math.exp %52 : vector<256x128xf32>
    %cst_32 = arith.constant 1.000000e+00 : f32
    %54 = vector.broadcast %cst_32 : f32 to vector<256x128xf32>
    %55 = arith.addf %54, %53 : vector<256x128xf32>
    %cst_33 = arith.constant 1.000000e+00 : f32
    %56 = vector.broadcast %cst_33 : f32 to vector<256x128xf32>
    %57 = arith.divf %56, %55 : vector<256x128xf32>
    %58 = arith.mulf %49, %57 : vector<256x128xf32>
    %c1_34 = arith.constant 1 : index
    %c0_35 = arith.constant 0 : index
    %c0_36 = arith.constant 0 : index
    %59 = vector.load %arg6[%c1_34, %c0_35, %c0_36] : memref<2x1x128xf32, #tpu.memory_space<vmem>>, vector<1x1x128xf32>
    %60 = vector.shape_cast %59 : vector<1x1x128xf32> to vector<1x128xf32>
    %61 = vector.broadcast %60 : vector<1x128xf32> to vector<256x128xf32>
    %62 = arith.mulf %58, %61 : vector<256x128xf32>
    %cst_37 = arith.constant dense<0.000000e+00> : vector<256xf32>
    %63 = vector.multi_reduction <add>, %62, %cst_37 [1] : vector<256x128xf32> to vector<256xf32>
    %64 = vector.shape_cast %63 : vector<256xf32> to vector<256x1xf32>
    %c1_38 = arith.constant 1 : index
    %c0_39 = arith.constant 0 : index
    %c0_40 = arith.constant 0 : index
    %65 = vector.load %arg7[%c1_38, %c0_39, %c0_40] : memref<2x1x1xf32, #tpu.memory_space<vmem>>, vector<1x1x1xf32>
    %66 = vector.shape_cast %65 : vector<1x1x1xf32> to vector<1x1xf32>
    %67 = vector.broadcast %66 : vector<1x1xf32> to vector<256x1xf32>
    %68 = arith.addf %64, %67 : vector<256x1xf32>
    %69 = tpu.concatenate %38, %68 in 1 : vector<256x1xf32>, vector<256x1xf32> -> vector<256x2xf32>
    %c0_41 = arith.constant 0 : index
    %c0_42 = arith.constant 0 : index
    %70 = vector.load %arg9[%c0_41, %c0_42] : memref<256x2xf32, #tpu.memory_space<vmem>>, vector<256x2xf32>
    tpu.vector_store %arg9[%c0_41, %c0_42], %69 {strides = array<i32>} : memref<256x2xf32, #tpu.memory_space<vmem>>, vector<256x2xf32>,
    return
  }
  func.func @transform_0(%arg0: i32) -> (i32, i32) {
    %c0_i32 = arith.constant 0 : i32
    %c0_i32_0 = arith.constant 0 : i32
    return %arg0, %c0_i32 : i32, i32
  }
  func.func @transform_1(%arg0: i32) -> (i32, i32) {
    %c0_i32 = arith.constant 0 : i32
    %c0_i32_0 = arith.constant 0 : i32
    %c0_i32_1 = arith.constant 0 : i32
    return %c0_i32, %c0_i32_0 : i32, i32
  }
  func.func @transform_2(%arg0: i32) -> (i32, i32) {
    %c0_i32 = arith.constant 0 : i32
    %c0_i32_0 = arith.constant 0 : i32
    %c0_i32_1 = arith.constant 0 : i32
    return %c0_i32, %c0_i32_0 : i32, i32
  }
  func.func @transform_3(%arg0: i32) -> (i32, i32, i32) {
    %c0_i32 = arith.constant 0 : i32
    %c0_i32_0 = arith.constant 0 : i32
    %c0_i32_1 = arith.constant 0 : i32
    %c0_i32_2 = arith.constant 0 : i32
    return %c0_i32, %c0_i32_0, %c0_i32_1 : i32, i32, i32
  }
  func.func @transform_4(%arg0: i32) -> (i32, i32, i32) {
    %c0_i32 = arith.constant 0 : i32
    %c0_i32_0 = arith.constant 0 : i32
    %c0_i32_1 = arith.constant 0 : i32
    %c0_i32_2 = arith.constant 0 : i32
    return %c0_i32, %c0_i32_0, %c0_i32_1 : i32, i32, i32
  }
  func.func @transform_5(%arg0: i32) -> (i32, i32, i32) {
    %c0_i32 = arith.constant 0 : i32
    %c0_i32_0 = arith.constant 0 : i32
    %c0_i32_1 = arith.constant 0 : i32
    %c0_i32_2 = arith.constant 0 : i32
    return %c0_i32, %c0_i32_0, %c0_i32_1 : i32, i32, i32
  }
  func.func @transform_6(%arg0: i32) -> (i32, i32, i32) {
    %c0_i32 = arith.constant 0 : i32
    %c0_i32_0 = arith.constant 0 : i32
    %c0_i32_1 = arith.constant 0 : i32
    %c0_i32_2 = arith.constant 0 : i32
    return %c0_i32, %c0_i32_0, %c0_i32_1 : i32, i32, i32
  }
  func.func @transform_7(%arg0: i32) -> (i32, i32) {
    %c0_i32 = arith.constant 0 : i32
    %c0_i32_0 = arith.constant 0 : i32
    return %arg0, %c0_i32 : i32, i32
  }
  func.func @transform_8(%arg0: i32) -> (i32, i32) {
    %c0_i32 = arith.constant 0 : i32
    %c0_i32_0 = arith.constant 0 : i32
    return %arg0, %c0_i32 : i32, i32
  }
}

</mosaic_0001>

<llo_original>
// kernel: tpu_custom_call.1
$region0: #{tpu_custom_call.1}
  #allocation0 [shape = 'u32[]', space=smem, size = 0x4, offset = 0x4, fixed_abs, tag = 'smem constant byte address 0x4 - core index']
  #allocation1 [shape = 'u32[144,128]{1,0:T(1,128)}', space=vmem, size = 0x12000, scoped, tag = 'internal scratch']
  %s0 = inlined_call_operand.hbm [shape: bf16[512,1024], index: 0, kind: input, shape index: {}]
  %s1 = inlined_call_operand.hbm [shape: bf16[1024,512], index: 1, kind: input, shape index: {}]
  %s2 = inlined_call_operand.vmem [shape: f32[1,512], index: 2, kind: input, shape index: {}]
  %s3 = inlined_call_operand.hbm [shape: bf16[2,256,256], index: 3, kind: input, shape index: {}]
  %s4 = inlined_call_operand.vmem [shape: f32[2,1,256], index: 4, kind: input, shape index: {}]
  %s5 = inlined_call_operand.vmem [shape: f32[2,1,128], index: 5, kind: input, shape index: {}]
  %s6 = inlined_call_operand.vmem [shape: f32[2,1,1], index: 6, kind: input, shape index: {}]
  %s7 = inlined_call_operand.hbm [shape: f32[512,512], index: 7, kind: output, shape index: {0}]
  %s8 = inlined_call_operand.vmem [shape: f32[512,2], index: 8, kind: output, shape index: {1}]
  %9 = xla_tuple %s7, %s8
  %s10 = sld [smem:[#allocation0]]
  $region81: #{tpu_custom_call.1} parent=0
    _
  %s12 = ssub.s32 1, %s10
  %s13 = scalar_select 0, %s12, %s10
  $region1: #{tpu_custom_call.1} parent=0
    #allocation2 [shape = 'u8[1048576]{0}', space=vmem, size = 0x100000, scoped, tag = 'input window, operand 0']
    #allocation3 [shape = 's32[2]{0}', space=sflag, size = 0x8, scoped, tag = 'scoped memory for tpu_custom_call.1']
    #allocation4 [shape = 's32[2]{0}', space=sflag, size = 0x8, scoped, tag = 'scoped memory for tpu_custom_call.1']
    #allocation5 [shape = 'u8[1048576]{0}', space=vmem, size = 0x100000, scoped, tag = 'input window, operand 1, single buffered']
    #allocation6 [shape = 's32[1]{0}', space=sflag, size = 0x4, scoped, tag = 'scoped memory for tpu_custom_call.1']
    #allocation7 [shape = 'u8[262144]{0}', space=vmem, size = 0x40000, scoped, tag = 'input window, operand 3, single buffered']
    #allocation8 [shape = 'u8[1048576]{0}', space=vmem, size = 0x100000, scoped, tag = 'output window, operand 0']
    %14 = vsyncpa [#allocation3], 0
    %s15 = scalar_lea.sflag [#allocation3], 1
    %16 = vsyncpa %s15, 0
    %17 = vsyncpa [#allocation6], 0
    %18 = vsyncpa [#allocation4], 0
    %s19 = scalar_lea.sflag [#allocation4], 1
    %20 = vsyncpa %s19, 0
    loop: start=0, step=1, limit=4
    $region2: #{tpu_custom_call.1} parent=1 // loop_pre_header
      _
    $region3: #{tpu_custom_call.1} parent=1 // loop_header
      %s22 = sphi 0, %s26
      %p23 = scmp.ge.s32.totalorder %s22, 4
      %s32 = sphi 0, %s34
      %s35 = sphi 0, %s32
      %s36 = sphi 0, %s35
      %s52 = sphi 0, %s36
      %s56 = sphi 0, %s56
      %s58 = sphi 0, %s56
      %s59 = sphi 0, %s58
      %s73 = sphi 0, %s59
      %s77 = sphi 0, %s77
      %s79 = sphi 0, %s77
      %s80 = sphi 0, %s79
      %s94 = sphi 0, %s80
      %s98 = sphi 0, %s98
      %s100 = sphi 0, %s98
      %s101 = sphi 0, %s100
      %s115 = sphi 0, %s101
      %s119 = sphi 0, %s119
      %s121 = sphi 0, %s119
      %s122 = sphi 0, %s121
      %s136 = sphi 0, %s122
      %s140 = sphi 0, %s140
      %s142 = sphi 0, %s140
      %s143 = sphi 0, %s142
      %s157 = sphi 0, %s143
      %s161 = sphi 0, %s161
      %s163 = sphi 0, %s161
      %s164 = sphi 0, %s163
      %s178 = sphi 0, %s164
      %s184 = sphi 0, %s186
      %s187 = sphi 0, %s184
      %s188 = sphi 0, %s187
      %s204 = sphi 0, %s188
      %s210 = sphi 0, %s212
      %s213 = sphi 0, %s210
      %s214 = sphi 0, %s213
      %s230 = sphi 0, %s214
    $region4: #{tpu_custom_call.1} parent=1 // loop_header_branch
      %25 = sbr.rel (%p23) target = $region8
    $region5: #{tpu_custom_call.1} parent=1 // loop_body
      %s27 = ssub.s32 %s22, 1
      %s28 = ssub.s32 %s22, 2
      %s29 = sadd.s32 %s22, 1
      %s30 = ssub.s32 %s22, %s29
      %p31 = scmp.eq.s32.totalorder %s30, 0
      %s33 = sadd.s32 %s32, 1
      %s34 = scalar_select %p31, %s32, %s33
      %p37 = pneg %p31
      %p38 = scmp.eq.s32.totalorder %s22, 1
      %p39 = por %p37, %p38
      %p40 = scmp.ne.s32.totalorder %s32, %s35
      %p41 = scmp.eq.s32.totalorder %s22, 0
      %p42 = por %p40, %p41
      %p43 = scmp.ne.s32.totalorder %s32, %s35
      %p44 = scmp.eq.s32.totalorder %s27, 1
      %p45 = por %p43, %p44
      %p46 = scmp.ne.s32.totalorder %s35, %s36
      %p47 = scmp.eq.s32.totalorder %s27, 0
      %p48 = por %p46, %p47
      %p49 = scmp.ne.s32.totalorder %s35, %s36
      %p50 = scmp.eq.s32.totalorder %s28, 1
      %p51 = por %p49, %p50
      %p53 = scmp.ne.s32.totalorder %s36, %s52
      %p54 = scmp.eq.s32.totalorder %s28, 0
      %p55 = por %p53, %p54
      %s57 = sadd.s32 %s56, 1
      %p60 = scmp.eq.s32.totalorder %s22, 1
      %p61 = scmp.ne.s32.totalorder %s56, %s58
      %p62 = scmp.eq.s32.totalorder %s22, 0
      %p63 = por %p61, %p62
      %p64 = scmp.ne.s32.totalorder %s56, %s58
      %p65 = scmp.eq.s32.totalorder %s27, 1
      %p66 = por %p64, %p65
      %p67 = scmp.ne.s32.totalorder %s58, %s59
      %p68 = scmp.eq.s32.totalorder %s27, 0
      %p69 = por %p67, %p68
      %p70 = scmp.ne.s32.totalorder %s58, %s59
      %p71 = scmp.eq.s32.totalorder %s28, 1
      %p72 = por %p70, %p71
      %p74 = scmp.ne.s32.totalorder %s59, %s73
      %p75 = scmp.eq.s32.totalorder %s28, 0
      %p76 = por %p74, %p75
      %s78 = sadd.s32 %s77, 1
      %p81 = scmp.eq.s32.totalorder %s22, 1
      %p82 = scmp.ne.s32.totalorder %s77, %s79
      %p83 = scmp.eq.s32.totalorder %s22, 0
      %p84 = por %p82, %p83
      %p85 = scmp.ne.s32.totalorder %s77, %s79
      %p86 = scmp.eq.s32.totalorder %s27, 1
      %p87 = por %p85, %p86
      %p88 = scmp.ne.s32.totalorder %s79, %s80
      %p89 = scmp.eq.s32.totalorder %s27, 0
      %p90 = por %p88, %p89
      %p91 = scmp.ne.s32.totalorder %s79, %s80
      %p92 = scmp.eq.s32.totalorder %s28, 1
      %p93 = por %p91, %p92
      %p95 = scmp.ne.s32.totalorder %s80, %s94
      %p96 = scmp.eq.s32.totalorder %s28, 0
      %p97 = por %p95, %p96
      %s99 = sadd.s32 %s98, 1
      %p102 = scmp.eq.s32.totalorder %s22, 1
      %p103 = scmp.ne.s32.totalorder %s98, %s100
      %p104 = scmp.eq.s32.totalorder %s22, 0
      %p105 = por %p103, %p104
      %p106 = scmp.ne.s32.totalorder %s98, %s100
      %p107 = scmp.eq.s32.totalorder %s27, 1
      %p108 = por %p106, %p107
      %p109 = scmp.ne.s32.totalorder %s100, %s101
      %p110 = scmp.eq.s32.totalorder %s27, 0
      %p111 = por %p109, %p110
      %p112 = scmp.ne.s32.totalorder %s100, %s101
      %p113 = scmp.eq.s32.totalorder %s28, 1
      %p114 = por %p112, %p113
      %p116 = scmp.ne.s32.totalorder %s101, %s115
      %p117 = scmp.eq.s32.totalorder %s28, 0
      %p118 = por %p116, %p117
      %s120 = sadd.s32 %s119, 1
      %p123 = scmp.eq.s32.totalorder %s22, 1
      %p124 = scmp.ne.s32.totalorder %s119, %s121
      %p125 = scmp.eq.s32.totalorder %s22, 0
      %p126 = por %p124, %p125
      %p127 = scmp.ne.s32.totalorder %s119, %s121
      %p128 = scmp.eq.s32.totalorder %s27, 1
      %p129 = por %p127, %p128
      %p130 = scmp.ne.s32.totalorder %s121, %s122
      %p131 = scmp.eq.s32.totalorder %s27, 0
      %p132 = por %p130, %p131
      %p133 = scmp.ne.s32.totalorder %s121, %s122
      %p134 = scmp.eq.s32.totalorder %s28, 1
      %p135 = por %p133, %p134
      %p137 = scmp.ne.s32.totalorder %s122, %s136
      %p138 = scmp.eq.s32.totalorder %s28, 0
      %p139 = por %p137, %p138
      %s141 = sadd.s32 %s140, 1
      %p144 = scmp.eq.s32.totalorder %s22, 1
      %p145 = scmp.ne.s32.totalorder %s140, %s142
      %p146 = scmp.eq.s32.totalorder %s22, 0
      %p147 = por %p145, %p146
      %p148 = scmp.ne.s32.totalorder %s140, %s142
      %p149 = scmp.eq.s32.totalorder %s27, 1
      %p150 = por %p148, %p149
      %p151 = scmp.ne.s32.totalorder %s142, %s143
      %p152 = scmp.eq.s32.totalorder %s27, 0
      %p153 = por %p151, %p152
      %p154 = scmp.ne.s32.totalorder %s142, %s143
      %p155 = scmp.eq.s32.totalorder %s28, 1
      %p156 = por %p154, %p155
      %p158 = scmp.ne.s32.totalorder %s143, %s157
      %p159 = scmp.eq.s32.totalorder %s28, 0
      %p160 = por %p158, %p159
      %s162 = sadd.s32 %s161, 1
      %p165 = scmp.eq.s32.totalorder %s22, 1
      %p166 = scmp.ne.s32.totalorder %s161, %s163
      %p167 = scmp.eq.s32.totalorder %s22, 0
      %p168 = por %p166, %p167
      %p169 = scmp.ne.s32.totalorder %s161, %s163
      %p170 = scmp.eq.s32.totalorder %s27, 1
      %p171 = por %p169, %p170
      %p172 = scmp.ne.s32.totalorder %s163, %s164
      %p173 = scmp.eq.s32.totalorder %s27, 0
      %p174 = por %p172, %p173
      %p175 = scmp.ne.s32.totalorder %s163, %s164
      %p176 = scmp.eq.s32.totalorder %s28, 1
      %p177 = por %p175, %p176
      %p179 = scmp.ne.s32.totalorder %s164, %s178
      %p180 = scmp.eq.s32.totalorder %s28, 0
      %p181 = por %p179, %p180
      %s182 = ssub.s32 %s22, %s29
      %p183 = scmp.eq.s32.totalorder %s182, 0
      %s185 = sadd.s32 %s184, 1
      %s186 = scalar_select %p183, %s184, %s185
      %p189 = pneg %p183
      %p190 = scmp.eq.s32.totalorder %s22, 1
      %p191 = por %p189, %p190
      %p192 = scmp.ne.s32.totalorder %s184, %s187
      %p193 = scmp.eq.s32.totalorder %s22, 0
      %p194 = por %p192, %p193
      %p195 = scmp.ne.s32.totalorder %s184, %s187
      %p196 = scmp.eq.s32.totalorder %s27, 1
      %p197 = por %p195, %p196
      %p198 = scmp.ne.s32.totalorder %s187, %s188
      %p199 = scmp.eq.s32.totalorder %s27, 0
      %p200 = por %p198, %p199
      %p201 = scmp.ne.s32.totalorder %s187, %s188
      %p202 = scmp.eq.s32.totalorder %s28, 1
      %p203 = por %p201, %p202
      %p205 = scmp.ne.s32.totalorder %s188, %s204
      %p206 = scmp.eq.s32.totalorder %s28, 0
      %p207 = por %p205, %p206
      %s208 = ssub.s32 %s22, %s29
      %p209 = scmp.eq.s32.totalorder %s208, 0
      %s211 = sadd.s32 %s210, 1
      %s212 = scalar_select %p209, %s210, %s211
      %p215 = pneg %p209
      %p216 = scmp.eq.s32.totalorder %s22, 1
      %p217 = por %p215, %p216
      %p218 = scmp.ne.s32.totalorder %s210, %s213
      %p219 = scmp.eq.s32.totalorder %s22, 0
      %p220 = por %p218, %p219
      %p221 = scmp.ne.s32.totalorder %s210, %s213
      %p222 = scmp.eq.s32.totalorder %s27, 1
      %p223 = por %p221, %p222
      %p224 = scmp.ne.s32.totalorder %s213, %s214
      %p225 = scmp.eq.s32.totalorder %s27, 0
      %p226 = por %p224, %p225
      %p227 = scmp.ne.s32.totalorder %s213, %s214
      %p228 = scmp.eq.s32.totalorder %s28, 1
      %p229 = por %p227, %p228
      %p231 = scmp.ne.s32.totalorder %s214, %s230
      %p232 = scmp.eq.s32.totalorder %s28, 0
      %p233 = por %p231, %p232
      %p234 = scmp.le.s32.totalorder 1, %s22
      %p235 = scmp.lt.s32.totalorder %s22, 3
      %p236 = pnand %p234, %p235
      %p237 = pneg %p236
      // Predicated region
      $region9: #{tpu_custom_call.1} parent=5 // pred_check
        _
      $region10: #{tpu_custom_call.1} parent=5 // pred_check_branch
        %239 = sbr.rel (%p236) target = $region12
      $region11: #{tpu_custom_call.1} parent=5 // pred_region
        %s240 = ssub.s32 %s22, 1
        // Predicated region
        $region13: #{tpu_custom_call.1} parent=11 // pred_check
          %p241 = pneg %p69
        $region14: #{tpu_custom_call.1} parent=11 // pred_check_branch
          %243 = sbr.rel (%p241) target = $region16
        $region15: #{tpu_custom_call.1} parent=11 // pred_region
          %s245 = ssub.s32 32768, 32768
          %246 = vsyncadd [#allocation6], %s245
          %s247 = sshll.u32 [#allocation5], 4
          %s248 = int_to_ptr.vmem [resolvable:$true] %s247
          %253 = dma.hbm_to_vmem [thread:$0]  %s1, 32768, %s248, [#allocation6], 256, 256, 16
        $region16: #{tpu_custom_call.1} parent=11 // pred_fallthru
          _
        // Predicated region
        $region17: #{tpu_custom_call.1} parent=11 // pred_check
          %p254 = pneg %p90
        $region18: #{tpu_custom_call.1} parent=11 // pred_check_branch
          %256 = sbr.rel (%p254) target = $region20
        $region19: #{tpu_custom_call.1} parent=11 // pred_region
          _
        $region20: #{tpu_custom_call.1} parent=11 // pred_fallthru
          _
        // Predicated region
        $region21: #{tpu_custom_call.1} parent=11 // pred_check
          %p257 = pneg %p111
        $region22: #{tpu_custom_call.1} parent=11 // pred_check_branch
          %259 = sbr.rel (%p257) target = $region24
        $region23: #{tpu_custom_call.1} parent=11 // pred_region
          %s261 = ssub.s32 8192, 8192
          %262 = vsyncadd [#allocation6], %s261
          %s263 = sshll.u32 [#allocation7], 4
          %s264 = int_to_ptr.vmem [resolvable:$true] %s263
          %269 = dma.hbm_to_vmem [thread:$0]  %s3, 8192, %s264, [#allocation6], 128, 128, 8
        $region24: #{tpu_custom_call.1} parent=11 // pred_fallthru
          _
        // Predicated region
        $region25: #{tpu_custom_call.1} parent=11 // pred_check
          %p270 = pneg %p132
        $region26: #{tpu_custom_call.1} parent=11 // pred_check_branch
          %272 = sbr.rel (%p270) target = $region28
        $region27: #{tpu_custom_call.1} parent=11 // pred_region
          _
        $region28: #{tpu_custom_call.1} parent=11 // pred_fallthru
          _
        // Predicated region
        $region29: #{tpu_custom_call.1} parent=11 // pred_check
          %p273 = pneg %p153
        $region30: #{tpu_custom_call.1} parent=11 // pred_check_branch
          %275 = sbr.rel (%p273) target = $region32
        $region31: #{tpu_custom_call.1} parent=11 // pred_region
          _
        $region32: #{tpu_custom_call.1} parent=11 // pred_fallthru
          _
        // Predicated region
        $region33: #{tpu_custom_call.1} parent=11 // pred_check
          %p276 = pneg %p174
        $region34: #{tpu_custom_call.1} parent=11 // pred_check_branch
          %278 = sbr.rel (%p276) target = $region36
        $region35: #{tpu_custom_call.1} parent=11 // pred_region
          _
        $region36: #{tpu_custom_call.1} parent=11 // pred_fallthru
          _
      $region12: #{tpu_custom_call.1} parent=5 // pred_fallthru
        _
      %p279 = scmp.lt.s32.totalorder %s22, 2
      // Predicated region
      $region37: #{tpu_custom_call.1} parent=5 // pred_check
        %p280 = pneg %p279
      $region38: #{tpu_custom_call.1} parent=5 // pred_check_branch
        %282 = sbr.rel (%p280) target = $region40
      $region39: #{tpu_custom_call.1} parent=5 // pred_region
        // Predicated region
        $region41: #{tpu_custom_call.1} parent=39 // pred_check
          %p283 = pneg %p42
        $region42: #{tpu_custom_call.1} parent=39 // pred_check_branch
          %285 = sbr.rel (%p283) target = $region44
        $region43: #{tpu_custom_call.1} parent=39 // pred_region
          %s286 = sand.u32 %s32, 1
          %s287 = scalar_lea.sflag [#allocation3], %s286
          %s288 = sand.u32 %s32, 1
          %s289 = smul.addr %s288, 1024
          %s290 = scalar_lea.vmem [#allocation2], %s289
          %s291 = smul.u32 32, %s22
          %s293 = ssub.s32 16384, 16384
          %294 = vsyncadd %s287, %s293
          %s295 = smul.addr %s291, 8
          %s296 = smul.addr %s295, 64
          %s297 = scalar_lea.hbm %s0, %s296
          %s298 = sshll.u32 %s290, 4
          %s299 = int_to_ptr.vmem [resolvable:$true] %s298
          %304 = dma.hbm_to_vmem [thread:$0]  %s297, 16384, %s299, %s287, 512, 512, 32
        $region44: #{tpu_custom_call.1} parent=39 // pred_fallthru
          _
      $region40: #{tpu_custom_call.1} parent=5 // pred_fallthru
        _
      %p305 = scmp.le.s32.totalorder 1, %s22
      %p306 = scmp.lt.s32.totalorder %s22, 3
      %p307 = pnand %p305, %p306
      %p308 = pneg %p307
      // Predicated region
      $region45: #{tpu_custom_call.1} parent=5 // pred_check
        _
      $region46: #{tpu_custom_call.1} parent=5 // pred_check_branch
        %310 = sbr.rel (%p307) target = $region48
      $region47: #{tpu_custom_call.1} parent=5 // pred_region
        %s311 = ssub.s32 %s22, 1
        %s312 = sand.u32 %s35, 1
        %s313 = scalar_lea.sflag [#allocation3], %s312
        %s314 = sand.u32 %s35, 1
        %s315 = smul.addr %s314, 1024
        %s316 = scalar_lea.vmem [#allocation2], %s315
        // Predicated region
        $region49: #{tpu_custom_call.1} parent=47 // pred_check
          %p317 = pneg %p48
        $region50: #{tpu_custom_call.1} parent=47 // pred_check_branch
          %319 = sbr.rel (%p317) target = $region52
        $region51: #{tpu_custom_call.1} parent=47 // pred_region
          %320 = dma.done %s313, 16384
        $region52: #{tpu_custom_call.1} parent=47 // pred_fallthru
          _
        // Predicated region
        $region53: #{tpu_custom_call.1} parent=47 // pred_check
          %p321 = pneg %p69
        $region54: #{tpu_custom_call.1} parent=47 // pred_check_branch
          %323 = sbr.rel (%p321) target = $region56
        $region55: #{tpu_custom_call.1} parent=47 // pred_region
          %324 = dma.done [#allocation6], 32768
        $region56: #{tpu_custom_call.1} parent=47 // pred_fallthru
          _
        // Predicated region
        $region57: #{tpu_custom_call.1} parent=47 // pred_check
          %p325 = pneg %p111
        $region58: #{tpu_custom_call.1} parent=47 // pred_check_branch
          %327 = sbr.rel (%p325) target = $region60
        $region59: #{tpu_custom_call.1} parent=47 // pred_region
          %328 = dma.done [#allocation6], 8192
        $region60: #{tpu_custom_call.1} parent=47 // pred_fallthru
          _
        %s329 = sand.u32 %s35, 1
        %s330 = scalar_lea.sflag [#allocation3], %s329
        %s331 = sand.u32 %s35, 1
        %s332 = smul.addr %s331, 1024
        %s333 = scalar_lea.vmem [#allocation2], %s332
        %p334 = pneg %p48
        %p335 = pneg %p45
        %p336 = pneg %p69
        %p337 = pneg %p66
        %p338 = pneg %p90
        %p339 = pneg %p87
        %p340 = pneg %p111
        %p341 = pneg %p108
        %p342 = pneg %p132
        %p343 = pneg %p129
        %p344 = pneg %p153
        %p345 = pneg %p150
        %p346 = pneg %p174
        %p347 = pneg %p171
        %p348 = pneg %p200
        %p349 = pneg %p197
        %s350 = sand.u32 %s187, 1
        %s351 = scalar_lea.sflag [#allocation4], %s350
        %s352 = sand.u32 %s187, 1
        %s353 = smul.addr %s352, 1024
        %s354 = scalar_lea.vmem [#allocation8], %s353
        %p355 = pneg %p226
        %p356 = pneg %p223
        %s357 = smul.u32 32, %s27
        %p358 = scmp.lt.s32.totalorder %s357, 63
        %s359 = scalar_select %p358, %s357, 63
        %s360 = smul.addr %s359, 8
        %s361 = scalar_lea.vmem %s8, %s360
        %s362 = smul.u32 32, %s27
        %s363 = smul.u32 32, %s27
        %s364 = smul.u32 32, %s27
        %p365 = scmp.lt.s32.totalorder %s364, 63
        %s366 = scalar_select %p365, %s364, 63
        %s367 = smul.addr %s366, 8
        %s368 = scalar_lea.vmem %s8, %s367
        %s369 = smul.u32 32, %s27
        %v370 = vld [vmem:[%s316] sm:$0xff]
        %v371 = vld [vmem:[%s316 + $0x8] sm:$0xff]
        %v372 = vld [vmem:[%s316 + $0x10] sm:$0xff]
        %v373 = vld [vmem:[%s316 + $0x18] sm:$0xff]
        %v374 = vld [vmem:[%s316 + $0x20] sm:$0xff]
        %v375 = vld [vmem:[%s316 + $0x28] sm:$0xff]
        %v376 = vld [vmem:[%s316 + $0x30] sm:$0xff]
        %v377 = vld [vmem:[%s316 + $0x38] sm:$0xff]
        %v378 = vld [vmem:[%s316 + $0x40] sm:$0xff]
        %v379 = vld [vmem:[%s316 + $0x48] sm:$0xff]
        %v380 = vld [vmem:[%s316 + $0x50] sm:$0xff]
        %v381 = vld [vmem:[%s316 + $0x58] sm:$0xff]
        %v382 = vld [vmem:[%s316 + $0x60] sm:$0xff]
        %v383 = vld [vmem:[%s316 + $0x68] sm:$0xff]
        %v384 = vld [vmem:[%s316 + $0x70] sm:$0xff]
        %v385 = vld [vmem:[%s316 + $0x78] sm:$0xff]
        %v386 = vld [vmem:[%s316 + $0x80] sm:$0xff]
        %v387 = vld [vmem:[%s316 + $0x88] sm:$0xff]
        %v388 = vld [vmem:[%s316 + $0x90] sm:$0xff]
        %v389 = vld [vmem:[%s316 + $0x98] sm:$0xff]
        %v390 = vld [vmem:[%s316 + $0xa0] sm:$0xff]
        %v391 = vld [vmem:[%s316 + $0xa8] sm:$0xff]
        %v392 = vld [vmem:[%s316 + $0xb0] sm:$0xff]
        %v393 = vld [vmem:[%s316 + $0xb8] sm:$0xff]
        %v394 = vld [vmem:[%s316 + $0xc0] sm:$0xff]
        %v395 = vld [vmem:[%s316 + $0xc8] sm:$0xff]
        %v396 = vld [vmem:[%s316 + $0xd0] sm:$0xff]
        %v397 = vld [vmem:[%s316 + $0xd8] sm:$0xff]
        %v398 = vld [vmem:[%s316 + $0xe0] sm:$0xff]
        %v399 = vld [vmem:[%s316 + $0xe8] sm:$0xff]
        %v400 = vld [vmem:[%s316 + $0xf0] sm:$0xff]
        %v401 = vld [vmem:[%s316 + $0xf8] sm:$0xff]
        %v402 = vld [vmem:[%s316 + $0x100] sm:$0xff]
        %v403 = vld [vmem:[%s316 + $0x108] sm:$0xff]
        %v404 = vld [vmem:[%s316 + $0x110] sm:$0xff]
        %v405 = vld [vmem:[%s316 + $0x118] sm:$0xff]
        %v406 = vld [vmem:[%s316 + $0x120] sm:$0xff]
        %v407 = vld [vmem:[%s316 + $0x128] sm:$0xff]
        %v408 = vld [vmem:[%s316 + $0x130] sm:$0xff]
        %v409 = vld [vmem:[%s316 + $0x138] sm:$0xff]
        %v410 = vld [vmem:[%s316 + $0x140] sm:$0xff]
        %v411 = vld [vmem:[%s316 + $0x148] sm:$0xff]
        %v412 = vld [vmem:[%s316 + $0x150] sm:$0xff]
        %v413 = vld [vmem:[%s316 + $0x158] sm:$0xff]
        %v414 = vld [vmem:[%s316 + $0x160] sm:$0xff]
        %v415 = vld [vmem:[%s316 + $0x168] sm:$0xff]
        %v416 = vld [vmem:[%s316 + $0x170] sm:$0xff]
        %v417 = vld [vmem:[%s316 + $0x178] sm:$0xff]
        %v418 = vld [vmem:[%s316 + $0x180] sm:$0xff]
        %v419 = vld [vmem:[%s316 + $0x188] sm:$0xff]
        %v420 = vld [vmem:[%s316 + $0x190] sm:$0xff]
        %v421 = vld [vmem:[%s316 + $0x198] sm:$0xff]
        %v422 = vld [vmem:[%s316 + $0x1a0] sm:$0xff]
        %v423 = vld [vmem:[%s316 + $0x1a8] sm:$0xff]
        %v424 = vld [vmem:[%s316 + $0x1b0] sm:$0xff]
        %v425 = vld [vmem:[%s316 + $0x1b8] sm:$0xff]
        %v426 = vld [vmem:[%s316 + $0x1c0] sm:$0xff]
        %v427 = vld [vmem:[%s316 + $0x1c8] sm:$0xff]
        %v428 = vld [vmem:[%s316 + $0x1d0] sm:$0xff]
        %v429 = vld [vmem:[%s316 + $0x1d8] sm:$0xff]
        %v430 = vld [vmem:[%s316 + $0x1e0] sm:$0xff]
        %v431 = vld [vmem:[%s316 + $0x1e8] sm:$0xff]
        %v432 = vld [vmem:[%s316 + $0x1f0] sm:$0xff]
        %v433 = vld [vmem:[%s316 + $0x1f8] sm:$0xff]
        %v434 = vld [vmem:[%s316 + $0x200] sm:$0xff]
        %v435 = vld [vmem:[%s316 + $0x208] sm:$0xff]
        %v436 = vld [vmem:[%s316 + $0x210] sm:$0xff]
        %v437 = vld [vmem:[%s316 + $0x218] sm:$0xff]
        %v438 = vld [vmem:[%s316 + $0x220] sm:$0xff]
        %v439 = vld [vmem:[%s316 + $0x228] sm:$0xff]
        %v440 = vld [vmem:[%s316 + $0x230] sm:$0xff]
        %v441 = vld [vmem:[%s316 + $0x238] sm:$0xff]
        %v442 = vld [vmem:[%s316 + $0x240] sm:$0xff]
        %v443 = vld [vmem:[%s316 + $0x248] sm:$0xff]
        %v444 = vld [vmem:[%s316 + $0x250] sm:$0xff]
        %v445 = vld [vmem:[%s316 + $0x258] sm:$0xff]
        %v446 = vld [vmem:[%s316 + $0x260] sm:$0xff]
        %v447 = vld [vmem:[%s316 + $0x268] sm:$0xff]
        %v448 = vld [vmem:[%s316 + $0x270] sm:$0xff]
        %v449 = vld [vmem:[%s316 + $0x278] sm:$0xff]
        %v450 = vld [vmem:[%s316 + $0x280] sm:$0xff]
        %v451 = vld [vmem:[%s316 + $0x288] sm:$0xff]
        %v452 = vld [vmem:[%s316 + $0x290] sm:$0xff]
        %v453 = vld [vmem:[%s316 + $0x298] sm:$0xff]
        %v454 = vld [vmem:[%s316 + $0x2a0] sm:$0xff]
        %v455 = vld [vmem:[%s316 + $0x2a8] sm:$0xff]
        %v456 = vld [vmem:[%s316 + $0x2b0] sm:$0xff]
        %v457 = vld [vmem:[%s316 + $0x2b8] sm:$0xff]
        %v458 = vld [vmem:[%s316 + $0x2c0] sm:$0xff]
        %v459 = vld [vmem:[%s316 + $0x2c8] sm:$0xff]
        %v460 = vld [vmem:[%s316 + $0x2d0] sm:$0xff]
        %v461 = vld [vmem:[%s316 + $0x2d8] sm:$0xff]
        %v462 = vld [vmem:[%s316 + $0x2e0] sm:$0xff]
        %v463 = vld [vmem:[%s316 + $0x2e8] sm:$0xff]
        %v464 = vld [vmem:[%s316 + $0x2f0] sm:$0xff]
        %v465 = vld [vmem:[%s316 + $0x2f8] sm:$0xff]
        %v466 = vld [vmem:[%s316 + $0x300] sm:$0xff]
        %v467 = vld [vmem:[%s316 + $0x308] sm:$0xff]
        %v468 = vld [vmem:[%s316 + $0x310] sm:$0xff]
        %v469 = vld [vmem:[%s316 + $0x318] sm:$0xff]
        %v470 = vld [vmem:[%s316 + $0x320] sm:$0xff]
        %v471 = vld [vmem:[%s316 + $0x328] sm:$0xff]
        %v472 = vld [vmem:[%s316 + $0x330] sm:$0xff]
        %v473 = vld [vmem:[%s316 + $0x338] sm:$0xff]
        %v474 = vld [vmem:[%s316 + $0x340] sm:$0xff]
        %v475 = vld [vmem:[%s316 + $0x348] sm:$0xff]
        %v476 = vld [vmem:[%s316 + $0x350] sm:$0xff]
        %v477 = vld [vmem:[%s316 + $0x358] sm:$0xff]
        %v478 = vld [vmem:[%s316 + $0x360] sm:$0xff]
        %v479 = vld [vmem:[%s316 + $0x368] sm:$0xff]
        %v480 = vld [vmem:[%s316 + $0x370] sm:$0xff]
        %v481 = vld [vmem:[%s316 + $0x378] sm:$0xff]
        %v482 = vld [vmem:[%s316 + $0x380] sm:$0xff]
        %v483 = vld [vmem:[%s316 + $0x388] sm:$0xff]
        %v484 = vld [vmem:[%s316 + $0x390] sm:$0xff]
        %v485 = vld [vmem:[%s316 + $0x398] sm:$0xff]
        %v486 = vld [vmem:[%s316 + $0x3a0] sm:$0xff]
        %v487 = vld [vmem:[%s316 + $0x3a8] sm:$0xff]
        %v488 = vld [vmem:[%s316 + $0x3b0] sm:$0xff]
        %v489 = vld [vmem:[%s316 + $0x3b8] sm:$0xff]
        %v490 = vld [vmem:[%s316 + $0x3c0] sm:$0xff]
        %v491 = vld [vmem:[%s316 + $0x3c8] sm:$0xff]
        %v492 = vld [vmem:[%s316 + $0x3d0] sm:$0xff]
        %v493 = vld [vmem:[%s316 + $0x3d8] sm:$0xff]
        %v494 = vld [vmem:[%s316 + $0x3e0] sm:$0xff]
        %v495 = vld [vmem:[%s316 + $0x3e8] sm:$0xff]
        %v496 = vld [vmem:[%s316 + $0x3f0] sm:$0xff]
        %v497 = vld [vmem:[%s316 + $0x3f8] sm:$0xff]
        %v498 = vld [vmem:[#allocation5] sm:$0xff]
        %v499 = vld [vmem:[#allocation5 + $0x8] sm:$0xff]
        %v500 = vld [vmem:[#allocation5 + $0x10] sm:$0xff]
        %v501 = vld [vmem:[#allocation5 + $0x18] sm:$0xff]
        %v502 = vld [vmem:[#allocation5 + $0x20] sm:$0xff]
        %v503 = vld [vmem:[#allocation5 + $0x28] sm:$0xff]
        %v504 = vld [vmem:[#allocation5 + $0x30] sm:$0xff]
        %v505 = vld [vmem:[#allocation5 + $0x38] sm:$0xff]
        %v506 = vld [vmem:[#allocation5 + $0x40] sm:$0xff]
        %v507 = vld [vmem:[#allocation5 + $0x48] sm:$0xff]
        %v508 = vld [vmem:[#allocation5 + $0x50] sm:$0xff]
        %v509 = vld [vmem:[#allocation5 + $0x58] sm:$0xff]
        %v510 = vld [vmem:[#allocation5 + $0x60] sm:$0xff]
        %v511 = vld [vmem:[#allocation5 + $0x68] sm:$0xff]
        %v512 = vld [vmem:[#allocation5 + $0x70] sm:$0xff]
        %v513 = vld [vmem:[#allocation5 + $0x78] sm:$0xff]
        %v514 = vld [vmem:[#allocation5 + $0x80] sm:$0xff]
        %v515 = vld [vmem:[#allocation5 + $0x88] sm:$0xff]
        %v516 = vld [vmem:[#allocation5 + $0x90] sm:$0xff]
        %v517 = vld [vmem:[#allocation5 + $0x98] sm:$0xff]
        %v518 = vld [vmem:[#allocation5 + $0xa0] sm:$0xff]
        %v519 = vld [vmem:[#allocation5 + $0xa8] sm:$0xff]
        %v520 = vld [vmem:[#allocation5 + $0xb0] sm:$0xff]
        %v521 = vld [vmem:[#allocation5 + $0xb8] sm:$0xff]
        %v522 = vld [vmem:[#allocation5 + $0xc0] sm:$0xff]
        %v523 = vld [vmem:[#allocation5 + $0xc8] sm:$0xff]
        %v524 = vld [vmem:[#allocation5 + $0xd0] sm:$0xff]
        %v525 = vld [vmem:[#allocation5 + $0xd8] sm:$0xff]
        %v526 = vld [vmem:[#allocation5 + $0xe0] sm:$0xff]
        %v527 = vld [vmem:[#allocation5 + $0xe8] sm:$0xff]
        %v528 = vld [vmem:[#allocation5 + $0xf0] sm:$0xff]
        %v529 = vld [vmem:[#allocation5 + $0xf8] sm:$0xff]
        %v530 = vld [vmem:[#allocation5 + $0x100] sm:$0xff]
        %v531 = vld [vmem:[#allocation5 + $0x108] sm:$0xff]
        %v532 = vld [vmem:[#allocation5 + $0x110] sm:$0xff]
        %v533 = vld [vmem:[#allocation5 + $0x118] sm:$0xff]
        %v534 = vld [vmem:[#allocation5 + $0x120] sm:$0xff]
        %v535 = vld [vmem:[#allocation5 + $0x128] sm:$0xff]
        %v536 = vld [vmem:[#allocation5 + $0x130] sm:$0xff]
        %v537 = vld [vmem:[#allocation5 + $0x138] sm:$0xff]
        %v538 = vld [vmem:[#allocation5 + $0x140] sm:$0xff]
        %v539 = vld [vmem:[#allocation5 + $0x148] sm:$0xff]
        %v540 = vld [vmem:[#allocation5 + $0x150] sm:$0xff]
        %v541 = vld [vmem:[#allocation5 + $0x158] sm:$0xff]
        %v542 = vld [vmem:[#allocation5 + $0x160] sm:$0xff]
        %v543 = vld [vmem:[#allocation5 + $0x168] sm:$0xff]
        %v544 = vld [vmem:[#allocation5 + $0x170] sm:$0xff]
        %v545 = vld [vmem:[#allocation5 + $0x178] sm:$0xff]
        %v546 = vld [vmem:[#allocation5 + $0x180] sm:$0xff]
        %v547 = vld [vmem:[#allocation5 + $0x188] sm:$0xff]
        %v548 = vld [vmem:[#allocation5 + $0x190] sm:$0xff]
        %v549 = vld [vmem:[#allocation5 + $0x198] sm:$0xff]
        %v550 = vld [vmem:[#allocation5 + $0x1a0] sm:$0xff]
        %v551 = vld [vmem:[#allocation5 + $0x1a8] sm:$0xff]
        %v552 = vld [vmem:[#allocation5 + $0x1b0] sm:$0xff]
        %v553 = vld [vmem:[#allocation5 + $0x1b8] sm:$0xff]
        %v554 = vld [vmem:[#allocation5 + $0x1c0] sm:$0xff]
        %v555 = vld [vmem:[#allocation5 + $0x1c8] sm:$0xff]
        %v556 = vld [vmem:[#allocation5 + $0x1d0] sm:$0xff]
        %v557 = vld [vmem:[#allocation5 + $0x1d8] sm:$0xff]
        %v558 = vld [vmem:[#allocation5 + $0x1e0] sm:$0xff]
        %v559 = vld [vmem:[#allocation5 + $0x1e8] sm:$0xff]
        %v560 = vld [vmem:[#allocation5 + $0x1f0] sm:$0xff]
        %v561 = vld [vmem:[#allocation5 + $0x1f8] sm:$0xff]
        %v562 = vld [vmem:[#allocation5 + $0x200] sm:$0xff]
        %v563 = vld [vmem:[#allocation5 + $0x208] sm:$0xff]
        %v564 = vld [vmem:[#allocation5 + $0x210] sm:$0xff]
        %v565 = vld [vmem:[#allocation5 + $0x218] sm:$0xff]
        %v566 = vld [vmem:[#allocation5 + $0x220] sm:$0xff]
        %v567 = vld [vmem:[#allocation5 + $0x228] sm:$0xff]
        %v568 = vld [vmem:[#allocation5 + $0x230] sm:$0xff]
        %v569 = vld [vmem:[#allocation5 + $0x238] sm:$0xff]
        %v570 = vld [vmem:[#allocation5 + $0x240] sm:$0xff]
        %v571 = vld [vmem:[#allocation5 + $0x248] sm:$0xff]
        %v572 = vld [vmem:[#allocation5 + $0x250] sm:$0xff]
        %v573 = vld [vmem:[#allocation5 + $0x258] sm:$0xff]
        %v574 = vld [vmem:[#allocation5 + $0x260] sm:$0xff]
        %v575 = vld [vmem:[#allocation5 + $0x268] sm:$0xff]
        %v576 = vld [vmem:[#allocation5 + $0x270] sm:$0xff]
        %v577 = vld [vmem:[#allocation5 + $0x278] sm:$0xff]
        %v578 = vld [vmem:[#allocation5 + $0x280] sm:$0xff]
        %v579 = vld [vmem:[#allocation5 + $0x288] sm:$0xff]
        %v580 = vld [vmem:[#allocation5 + $0x290] sm:$0xff]
        %v581 = vld [vmem:[#allocation5 + $0x298] sm:$0xff]
        %v582 = vld [vmem:[#allocation5 + $0x2a0] sm:$0xff]
        %v583 = vld [vmem:[#allocation5 + $0x2a8] sm:$0xff]
        %v584 = vld [vmem:[#allocation5 + $0x2b0] sm:$0xff]
        %v585 = vld [vmem:[#allocation5 + $0x2b8] sm:$0xff]
        %v586 = vld [vmem:[#allocation5 + $0x2c0] sm:$0xff]
        %v587 = vld [vmem:[#allocation5 + $0x2c8] sm:$0xff]
        %v588 = vld [vmem:[#allocation5 + $0x2d0] sm:$0xff]
        %v589 = vld [vmem:[#allocation5 + $0x2d8] sm:$0xff]
        %v590 = vld [vmem:[#allocation5 + $0x2e0] sm:$0xff]
        %v591 = vld [vmem:[#allocation5 + $0x2e8] sm:$0xff]
        %v592 = vld [vmem:[#allocation5 + $0x2f0] sm:$0xff]
        %v593 = vld [vmem:[#allocation5 + $0x2f8] sm:$0xff]
        %v594 = vld [vmem:[#allocation5 + $0x300] sm:$0xff]
        %v595 = vld [vmem:[#allocation5 + $0x308] sm:$0xff]
        %v596 = vld [vmem:[#allocation5 + $0x310] sm:$0xff]
        %v597 = vld [vmem:[#allocation5 + $0x318] sm:$0xff]
        %v598 = vld [vmem:[#allocation5 + $0x320] sm:$0xff]
        %v599 = vld [vmem:[#allocation5 + $0x328] sm:$0xff]
        %v600 = vld [vmem:[#allocation5 + $0x330] sm:$0xff]
        %v601 = vld [vmem:[#allocation5 + $0x338] sm:$0xff]
        %v602 = vld [vmem:[#allocation5 + $0x340] sm:$0xff]
        %v603 = vld [vmem:[#allocation5 + $0x348] sm:$0xff]
        %v604 = vld [vmem:[#allocation5 + $0x350] sm:$0xff]
        %v605 = vld [vmem:[#allocation5 + $0x358] sm:$0xff]
        %v606 = vld [vmem:[#allocation5 + $0x360] sm:$0xff]
        %v607 = vld [vmem:[#allocation5 + $0x368] sm:$0xff]
        %v608 = vld [vmem:[#allocation5 + $0x370] sm:$0xff]
        %v609 = vld [vmem:[#allocation5 + $0x378] sm:$0xff]
        %v610 = vld [vmem:[#allocation5 + $0x380] sm:$0xff]
        %v611 = vld [vmem:[#allocation5 + $0x388] sm:$0xff]
        %v612 = vld [vmem:[#allocation5 + $0x390] sm:$0xff]
        %v613 = vld [vmem:[#allocation5 + $0x398] sm:$0xff]
        %v614 = vld [vmem:[#allocation5 + $0x3a0] sm:$0xff]
        %v615 = vld [vmem:[#allocation5 + $0x3a8] sm:$0xff]
        %v616 = vld [vmem:[#allocation5 + $0x3b0] sm:$0xff]
        %v617 = vld [vmem:[#allocation5 + $0x3b8] sm:$0xff]
        %v618 = vld [vmem:[#allocation5 + $0x3c0] sm:$0xff]
        %v619 = vld [vmem:[#allocation5 + $0x3c8] sm:$0xff]
        %v620 = vld [vmem:[#allocation5 + $0x3d0] sm:$0xff]
        %v621 = vld [vmem:[#allocation5 + $0x3d8] sm:$0xff]
        %v622 = vld [vmem:[#allocation5 + $0x3e0] sm:$0xff]
        %v623 = vld [vmem:[#allocation5 + $0x3e8] sm:$0xff]
        %v624 = vld [vmem:[#allocation5 + $0x3f0] sm:$0xff]
        %v625 = vld [vmem:[#allocation5 + $0x3f8] sm:$0xff]
        %v626 = vld [vmem:[#allocation5 + $0x400] sm:$0xff]
        %v627 = vld [vmem:[#allocation5 + $0x408] sm:$0xff]
        %v628 = vld [vmem:[#allocation5 + $0x410] sm:$0xff]
        %v629 = vld [vmem:[#allocation5 + $0x418] sm:$0xff]
        %v630 = vld [vmem:[#allocation5 + $0x420] sm:$0xff]
        %v631 = vld [vmem:[#allocation5 + $0x428] sm:$0xff]
        %v632 = vld [vmem:[#allocation5 + $0x430] sm:$0xff]
        %v633 = vld [vmem:[#allocation5 + $0x438] sm:$0xff]
        %v634 = vld [vmem:[#allocation5 + $0x440] sm:$0xff]
        %v635 = vld [vmem:[#allocation5 + $0x448] sm:$0xff]
        %v636 = vld [vmem:[#allocation5 + $0x450] sm:$0xff]
        %v637 = vld [vmem:[#allocation5 + $0x458] sm:$0xff]
        %v638 = vld [vmem:[#allocation5 + $0x460] sm:$0xff]
        %v639 = vld [vmem:[#allocation5 + $0x468] sm:$0xff]
        %v640 = vld [vmem:[#allocation5 + $0x470] sm:$0xff]
        %v641 = vld [vmem:[#allocation5 + $0x478] sm:$0xff]
        %v642 = vld [vmem:[#allocation5 + $0x480] sm:$0xff]
        %v643 = vld [vmem:[#allocation5 + $0x488] sm:$0xff]
        %v644 = vld [vmem:[#allocation5 + $0x490] sm:$0xff]
        %v645 = vld [vmem:[#allocation5 + $0x498] sm:$0xff]
        %v646 = vld [vmem:[#allocation5 + $0x4a0] sm:$0xff]
        %v647 = vld [vmem:[#allocation5 + $0x4a8] sm:$0xff]
        %v648 = vld [vmem:[#allocation5 + $0x4b0] sm:$0xff]
        %v649 = vld [vmem:[#allocation5 + $0x4b8] sm:$0xff]
        %v650 = vld [vmem:[#allocation5 + $0x4c0] sm:$0xff]
        %v651 = vld [vmem:[#allocation5 + $0x4c8] sm:$0xff]
        %v652 = vld [vmem:[#allocation5 + $0x4d0] sm:$0xff]
        %v653 = vld [vmem:[#allocation5 + $0x4d8] sm:$0xff]
        %v654 = vld [vmem:[#allocation5 + $0x4e0] sm:$0xff]
        %v655 = vld [vmem:[#allocation5 + $0x4e8] sm:$0xff]
        %v656 = vld [vmem:[#allocation5 + $0x4f0] sm:$0xff]
        %v657 = vld [vmem:[#allocation5 + $0x4f8] sm:$0xff]
        %v658 = vld [vmem:[#allocation5 + $0x500] sm:$0xff]
        %v659 = vld [vmem:[#allocation5 + $0x508] sm:$0xff]
        %v660 = vld [vmem:[#allocation5 + $0x510] sm:$0xff]
        %v661 = vld [vmem:[#allocation5 + $0x518] sm:$0xff]
        %v662 = vld [vmem:[#allocation5 + $0x520] sm:$0xff]
        %v663 = vld [vmem:[#allocation5 + $0x528] sm:$0xff]
        %v664 = vld [vmem:[#allocation5 + $0x530] sm:$0xff]
        %v665 = vld [vmem:[#allocation5 + $0x538] sm:$0xff]
        %v666 = vld [vmem:[#allocation5 + $0x540] sm:$0xff]
        %v667 = vld [vmem:[#allocation5 + $0x548] sm:$0xff]
        %v668 = vld [vmem:[#allocation5 + $0x550] sm:$0xff]
        %v669 = vld [vmem:[#allocation5 + $0x558] sm:$0xff]
        %v670 = vld [vmem:[#allocation5 + $0x560] sm:$0xff]
        %v671 = vld [vmem:[#allocation5 + $0x568] sm:$0xff]
        %v672 = vld [vmem:[#allocation5 + $0x570] sm:$0xff]
        %v673 = vld [vmem:[#allocation5 + $0x578] sm:$0xff]
        %v674 = vld [vmem:[#allocation5 + $0x580] sm:$0xff]
        %v675 = vld [vmem:[#allocation5 + $0x588] sm:$0xff]
        %v676 = vld [vmem:[#allocation5 + $0x590] sm:$0xff]
        %v677 = vld [vmem:[#allocation5 + $0x598] sm:$0xff]
        %v678 = vld [vmem:[#allocation5 + $0x5a0] sm:$0xff]
        %v679 = vld [vmem:[#allocation5 + $0x5a8] sm:$0xff]
        %v680 = vld [vmem:[#allocation5 + $0x5b0] sm:$0xff]
        %v681 = vld [vmem:[#allocation5 + $0x5b8] sm:$0xff]
        %v682 = vld [vmem:[#allocation5 + $0x5c0] sm:$0xff]
        %v683 = vld [vmem:[#allocation5 + $0x5c8] sm:$0xff]
        %v684 = vld [vmem:[#allocation5 + $0x5d0] sm:$0xff]
        %v685 = vld [vmem:[#allocation5 + $0x5d8] sm:$0xff]
        %v686 = vld [vmem:[#allocation5 + $0x5e0] sm:$0xff]
        %v687 = vld [vmem:[#allocation5 + $0x5e8] sm:$0xff]
        %v688 = vld [vmem:[#allocation5 + $0x5f0] sm:$0xff]
        %v689 = vld [vmem:[#allocation5 + $0x5f8] sm:$0xff]
        %v690 = vld [vmem:[#allocation5 + $0x600] sm:$0xff]
        %v691 = vld [vmem:[#allocation5 + $0x608] sm:$0xff]
        %v692 = vld [vmem:[#allocation5 + $0x610] sm:$0xff]
        %v693 = vld [vmem:[#allocation5 + $0x618] sm:$0xff]
        %v694 = vld [vmem:[#allocation5 + $0x620] sm:$0xff]
        %v695 = vld [vmem:[#allocation5 + $0x628] sm:$0xff]
        %v696 = vld [vmem:[#allocation5 + $0x630] sm:$0xff]
        %v697 = vld [vmem:[#allocation5 + $0x638] sm:$0xff]
        %v698 = vld [vmem:[#allocation5 + $0x640] sm:$0xff]
        %v699 = vld [vmem:[#allocation5 + $0x648] sm:$0xff]
        %v700 = vld [vmem:[#allocation5 + $0x650] sm:$0xff]
        %v701 = vld [vmem:[#allocation5 + $0x658] sm:$0xff]
        %v702 = vld [vmem:[#allocation5 + $0x660] sm:$0xff]
        %v703 = vld [vmem:[#allocation5 + $0x668] sm:$0xff]
        %v704 = vld [vmem:[#allocation5 + $0x670] sm:$0xff]
        %v705 = vld [vmem:[#allocation5 + $0x678] sm:$0xff]
        %v706 = vld [vmem:[#allocation5 + $0x680] sm:$0xff]
        %v707 = vld [vmem:[#allocation5 + $0x688] sm:$0xff]
        %v708 = vld [vmem:[#allocation5 + $0x690] sm:$0xff]
        %v709 = vld [vmem:[#allocation5 + $0x698] sm:$0xff]
        %v710 = vld [vmem:[#allocation5 + $0x6a0] sm:$0xff]
        %v711 = vld [vmem:[#allocation5 + $0x6a8] sm:$0xff]
        %v712 = vld [vmem:[#allocation5 + $0x6b0] sm:$0xff]
        %v713 = vld [vmem:[#allocation5 + $0x6b8] sm:$0xff]
        %v714 = vld [vmem:[#allocation5 + $0x6c0] sm:$0xff]
        %v715 = vld [vmem:[#allocation5 + $0x6c8] sm:$0xff]
        %v716 = vld [vmem:[#allocation5 + $0x6d0] sm:$0xff]
        %v717 = vld [vmem:[#allocation5 + $0x6d8] sm:$0xff]
        %v718 = vld [vmem:[#allocation5 + $0x6e0] sm:$0xff]
        %v719 = vld [vmem:[#allocation5 + $0x6e8] sm:$0xff]
        %v720 = vld [vmem:[#allocation5 + $0x6f0] sm:$0xff]
        %v721 = vld [vmem:[#allocation5 + $0x6f8] sm:$0xff]
        %v722 = vld [vmem:[#allocation5 + $0x700] sm:$0xff]
        %v723 = vld [vmem:[#allocation5 + $0x708] sm:$0xff]
        %v724 = vld [vmem:[#allocation5 + $0x710] sm:$0xff]
        %v725 = vld [vmem:[#allocation5 + $0x718] sm:$0xff]
        %v726 = vld [vmem:[#allocation5 + $0x720] sm:$0xff]
        %v727 = vld [vmem:[#allocation5 + $0x728] sm:$0xff]
        %v728 = vld [vmem:[#allocation5 + $0x730] sm:$0xff]
        %v729 = vld [vmem:[#allocation5 + $0x738] sm:$0xff]
        %v730 = vld [vmem:[#allocation5 + $0x740] sm:$0xff]
        %v731 = vld [vmem:[#allocation5 + $0x748] sm:$0xff]
        %v732 = vld [vmem:[#allocation5 + $0x750] sm:$0xff]
        %v733 = vld [vmem:[#allocation5 + $0x758] sm:$0xff]
        %v734 = vld [vmem:[#allocation5 + $0x760] sm:$0xff]
        %v735 = vld [vmem:[#allocation5 + $0x768] sm:$0xff]
        %v736 = vld [vmem:[#allocation5 + $0x770] sm:$0xff]
        %v737 = vld [vmem:[#allocation5 + $0x778] sm:$0xff]
        %v738 = vld [vmem:[#allocation5 + $0x780] sm:$0xff]
        %v739 = vld [vmem:[#allocation5 + $0x788] sm:$0xff]
        %v740 = vld [vmem:[#allocation5 + $0x790] sm:$0xff]
        %v741 = vld [vmem:[#allocation5 + $0x798] sm:$0xff]
        %v742 = vld [vmem:[#allocation5 + $0x7a0] sm:$0xff]
        %v743 = vld [vmem:[#allocation5 + $0x7a8] sm:$0xff]
        %v744 = vld [vmem:[#allocation5 + $0x7b0] sm:$0xff]
        %v745 = vld [vmem:[#allocation5 + $0x7b8] sm:$0xff]
        %v746 = vld [vmem:[#allocation5 + $0x7c0] sm:$0xff]
        %v747 = vld [vmem:[#allocation5 + $0x7c8] sm:$0xff]
        %v748 = vld [vmem:[#allocation5 + $0x7d0] sm:$0xff]
        %v749 = vld [vmem:[#allocation5 + $0x7d8] sm:$0xff]
        %v750 = vld [vmem:[#allocation5 + $0x7e0] sm:$0xff]
        %v751 = vld [vmem:[#allocation5 + $0x7e8] sm:$0xff]
        %v752 = vld [vmem:[#allocation5 + $0x7f0] sm:$0xff]
        %v753 = vld [vmem:[#allocation5 + $0x7f8] sm:$0xff]
        %v754 = vld [vmem:[%s2] sm:$0xf]
        %v756 = vlaneseq
        %v757 = vshrl.u32 %v756, 7
        %v758 = vsub.s32 0, %v757
        %v759 = vrot.slane %v754, %v758
        %v760 = vlaneseq
        %v761 = vshrl.u32 %v760, 7
        %v762 = vsub.s32 1, %v761
        %v763 = vrot.slane %v754, %v762
        %v764 = vlaneseq
        %v765 = vshrl.u32 %v764, 7
        %v766 = vsub.s32 2, %v765
        %v767 = vrot.slane %v754, %v766
        %v768 = vlaneseq
        %v769 = vshrl.u32 %v768, 7
        %v770 = vsub.s32 3, %v769
        %v771 = vrot.slane %v754, %v770
        %v904 = vunpack.c.l.b16 %v370
        %v905 = vunpack.c.h.b16 %v370
        %v906 = vunpack.c.l.b16 %v371
        %v907 = vunpack.c.h.b16 %v371
        %v908 = vunpack.c.l.b16 %v372
        %v909 = vunpack.c.h.b16 %v372
        %v910 = vunpack.c.l.b16 %v373
        %v911 = vunpack.c.h.b16 %v373
        %v912 = vunpack.c.l.b16 %v374
        %v913 = vunpack.c.h.b16 %v374
        %v914 = vunpack.c.l.b16 %v375
        %v915 = vunpack.c.h.b16 %v375
        %v916 = vunpack.c.l.b16 %v376
        %v917 = vunpack.c.h.b16 %v376
        %v918 = vunpack.c.l.b16 %v377
        %v919 = vunpack.c.h.b16 %v377
        %v920 = vunpack.c.l.b16 %v378
        %v921 = vunpack.c.h.b16 %v378
        %v922 = vunpack.c.l.b16 %v379
        %v923 = vunpack.c.h.b16 %v379
        %v924 = vunpack.c.l.b16 %v380
        %v925 = vunpack.c.h.b16 %v380
        %v926 = vunpack.c.l.b16 %v381
        %v927 = vunpack.c.h.b16 %v381
        %v928 = vunpack.c.l.b16 %v382
        %v929 = vunpack.c.h.b16 %v382
        %v930 = vunpack.c.l.b16 %v383
        %v931 = vunpack.c.h.b16 %v383
        %v932 = vunpack.c.l.b16 %v384
        %v933 = vunpack.c.h.b16 %v384
        %v934 = vunpack.c.l.b16 %v385
        %v935 = vunpack.c.h.b16 %v385
        %v936 = vunpack.c.l.b16 %v386
        %v937 = vunpack.c.h.b16 %v386
        %v938 = vunpack.c.l.b16 %v387
        %v939 = vunpack.c.h.b16 %v387
        %v940 = vunpack.c.l.b16 %v388
        %v941 = vunpack.c.h.b16 %v388
        %v942 = vunpack.c.l.b16 %v389
        %v943 = vunpack.c.h.b16 %v389
        %v944 = vunpack.c.l.b16 %v390
        %v945 = vunpack.c.h.b16 %v390
        %v946 = vunpack.c.l.b16 %v391
        %v947 = vunpack.c.h.b16 %v391
        %v948 = vunpack.c.l.b16 %v392
        %v949 = vunpack.c.h.b16 %v392
        %v950 = vunpack.c.l.b16 %v393
        %v951 = vunpack.c.h.b16 %v393
        %v952 = vunpack.c.l.b16 %v394
        %v953 = vunpack.c.h.b16 %v394
        %v954 = vunpack.c.l.b16 %v395
        %v955 = vunpack.c.h.b16 %v395
        %v956 = vunpack.c.l.b16 %v396
        %v957 = vunpack.c.h.b16 %v396
        %v958 = vunpack.c.l.b16 %v397
        %v959 = vunpack.c.h.b16 %v397
        %v960 = vunpack.c.l.b16 %v398
        %v961 = vunpack.c.h.b16 %v398
        %v962 = vunpack.c.l.b16 %v399
        %v963 = vunpack.c.h.b16 %v399
        %v964 = vunpack.c.l.b16 %v400
        %v965 = vunpack.c.h.b16 %v400
        %v966 = vunpack.c.l.b16 %v401
        %v967 = vunpack.c.h.b16 %v401
        %v968 = vunpack.c.l.b16 %v402
        %v969 = vunpack.c.h.b16 %v402
        %v970 = vunpack.c.l.b16 %v403
        %v971 = vunpack.c.h.b16 %v403
        %v972 = vunpack.c.l.b16 %v404
        %v973 = vunpack.c.h.b16 %v404
        %v974 = vunpack.c.l.b16 %v405
        %v975 = vunpack.c.h.b16 %v405
        %v976 = vunpack.c.l.b16 %v406
        %v977 = vunpack.c.h.b16 %v406
        %v978 = vunpack.c.l.b16 %v407
        %v979 = vunpack.c.h.b16 %v407
        %v980 = vunpack.c.l.b16 %v408
        %v981 = vunpack.c.h.b16 %v408
        %v982 = vunpack.c.l.b16 %v409
        %v983 = vunpack.c.h.b16 %v409
        %v984 = vunpack.c.l.b16 %v410
        %v985 = vunpack.c.h.b16 %v410
        %v986 = vunpack.c.l.b16 %v411
        %v987 = vunpack.c.h.b16 %v411
        %v988 = vunpack.c.l.b16 %v412
        %v989 = vunpack.c.h.b16 %v412
        %v990 = vunpack.c.l.b16 %v413
        %v991 = vunpack.c.h.b16 %v413
        %v992 = vunpack.c.l.b16 %v414
        %v993 = vunpack.c.h.b16 %v414
        %v994 = vunpack.c.l.b16 %v415
        %v995 = vunpack.c.h.b16 %v415
        %v996 = vunpack.c.l.b16 %v416
        %v997 = vunpack.c.h.b16 %v416
        %v998 = vunpack.c.l.b16 %v417
        %v999 = vunpack.c.h.b16 %v417
        %v1000 = vunpack.c.l.b16 %v418
        %v1001 = vunpack.c.h.b16 %v418
        %v1002 = vunpack.c.l.b16 %v419
        %v1003 = vunpack.c.h.b16 %v419
        %v1004 = vunpack.c.l.b16 %v420
        %v1005 = vunpack.c.h.b16 %v420
        %v1006 = vunpack.c.l.b16 %v421
        %v1007 = vunpack.c.h.b16 %v421
        %v1008 = vunpack.c.l.b16 %v422
        %v1009 = vunpack.c.h.b16 %v422
        %v1010 = vunpack.c.l.b16 %v423
        %v1011 = vunpack.c.h.b16 %v423
        %v1012 = vunpack.c.l.b16 %v424
        %v1013 = vunpack.c.h.b16 %v424
        %v1014 = vunpack.c.l.b16 %v425
        %v1015 = vunpack.c.h.b16 %v425
        %v1016 = vunpack.c.l.b16 %v426
        %v1017 = vunpack.c.h.b16 %v426
        %v1018 = vunpack.c.l.b16 %v427
        %v1019 = vunpack.c.h.b16 %v427
        %v1020 = vunpack.c.l.b16 %v428
        %v1021 = vunpack.c.h.b16 %v428
        %v1022 = vunpack.c.l.b16 %v429
        %v1023 = vunpack.c.h.b16 %v429
        %v1024 = vunpack.c.l.b16 %v430
        %v1025 = vunpack.c.h.b16 %v430
        %v1026 = vunpack.c.l.b16 %v431
        %v1027 = vunpack.c.h.b16 %v431
        %v1028 = vunpack.c.l.b16 %v432
        %v1029 = vunpack.c.h.b16 %v432
        %v1030 = vunpack.c.l.b16 %v433
        %v1031 = vunpack.c.h.b16 %v433
        %v1032 = vunpack.c.l.b16 %v434
        %v1033 = vunpack.c.h.b16 %v434
        %v1034 = vunpack.c.l.b16 %v435
        %v1035 = vunpack.c.h.b16 %v435
        %v1036 = vunpack.c.l.b16 %v436
        %v1037 = vunpack.c.h.b16 %v436
        %v1038 = vunpack.c.l.b16 %v437
        %v1039 = vunpack.c.h.b16 %v437
        %v1040 = vunpack.c.l.b16 %v438
        %v1041 = vunpack.c.h.b16 %v438
        %v1042 = vunpack.c.l.b16 %v439
        %v1043 = vunpack.c.h.b16 %v439
        %v1044 = vunpack.c.l.b16 %v440
        %v1045 = vunpack.c.h.b16 %v440
        %v1046 = vunpack.c.l.b16 %v441
        %v1047 = vunpack.c.h.b16 %v441
        %v1048 = vunpack.c.l.b16 %v442
        %v1049 = vunpack.c.h.b16 %v442
        %v1050 = vunpack.c.l.b16 %v443
        %v1051 = vunpack.c.h.b16 %v443
        %v1052 = vunpack.c.l.b16 %v444
        %v1053 = vunpack.c.h.b16 %v444
        %v1054 = vunpack.c.l.b16 %v445
        %v1055 = vunpack.c.h.b16 %v445
        %v1056 = vunpack.c.l.b16 %v446
        %v1057 = vunpack.c.h.b16 %v446
        %v1058 = vunpack.c.l.b16 %v447
        %v1059 = vunpack.c.h.b16 %v447
        %v1060 = vunpack.c.l.b16 %v448
        %v1061 = vunpack.c.h.b16 %v448
        %v1062 = vunpack.c.l.b16 %v449
        %v1063 = vunpack.c.h.b16 %v449
        %v1064 = vunpack.c.l.b16 %v450
        %v1065 = vunpack.c.h.b16 %v450
        %v1066 = vunpack.c.l.b16 %v451
        %v1067 = vunpack.c.h.b16 %v451
        %v1068 = vunpack.c.l.b16 %v452
        %v1069 = vunpack.c.h.b16 %v452
        %v1070 = vunpack.c.l.b16 %v453
        %v1071 = vunpack.c.h.b16 %v453
        %v1072 = vunpack.c.l.b16 %v454
        %v1073 = vunpack.c.h.b16 %v454
        %v1074 = vunpack.c.l.b16 %v455
        %v1075 = vunpack.c.h.b16 %v455
        %v1076 = vunpack.c.l.b16 %v456
        %v1077 = vunpack.c.h.b16 %v456
        %v1078 = vunpack.c.l.b16 %v457
        %v1079 = vunpack.c.h.b16 %v457
        %v1080 = vunpack.c.l.b16 %v458
        %v1081 = vunpack.c.h.b16 %v458
        %v1082 = vunpack.c.l.b16 %v459
        %v1083 = vunpack.c.h.b16 %v459
        %v1084 = vunpack.c.l.b16 %v460
        %v1085 = vunpack.c.h.b16 %v460
        %v1086 = vunpack.c.l.b16 %v461
        %v1087 = vunpack.c.h.b16 %v461
        %v1088 = vunpack.c.l.b16 %v462
        %v1089 = vunpack.c.h.b16 %v462
        %v1090 = vunpack.c.l.b16 %v463
        %v1091 = vunpack.c.h.b16 %v463
        %v1092 = vunpack.c.l.b16 %v464
        %v1093 = vunpack.c.h.b16 %v464
        %v1094 = vunpack.c.l.b16 %v465
        %v1095 = vunpack.c.h.b16 %v465
        %v1096 = vunpack.c.l.b16 %v466
        %v1097 = vunpack.c.h.b16 %v466
        %v1098 = vunpack.c.l.b16 %v467
        %v1099 = vunpack.c.h.b16 %v467
        %v1100 = vunpack.c.l.b16 %v468
        %v1101 = vunpack.c.h.b16 %v468
        %v1102 = vunpack.c.l.b16 %v469
        %v1103 = vunpack.c.h.b16 %v469
        %v1104 = vunpack.c.l.b16 %v470
        %v1105 = vunpack.c.h.b16 %v470
        %v1106 = vunpack.c.l.b16 %v471
        %v1107 = vunpack.c.h.b16 %v471
        %v1108 = vunpack.c.l.b16 %v472
        %v1109 = vunpack.c.h.b16 %v472
        %v1110 = vunpack.c.l.b16 %v473
        %v1111 = vunpack.c.h.b16 %v473
        %v1112 = vunpack.c.l.b16 %v474
        %v1113 = vunpack.c.h.b16 %v474
        %v1114 = vunpack.c.l.b16 %v475
        %v1115 = vunpack.c.h.b16 %v475
        %v1116 = vunpack.c.l.b16 %v476
        %v1117 = vunpack.c.h.b16 %v476
        %v1118 = vunpack.c.l.b16 %v477
        %v1119 = vunpack.c.h.b16 %v477
        %v1120 = vunpack.c.l.b16 %v478
        %v1121 = vunpack.c.h.b16 %v478
        %v1122 = vunpack.c.l.b16 %v479
        %v1123 = vunpack.c.h.b16 %v479
        %v1124 = vunpack.c.l.b16 %v480
        %v1125 = vunpack.c.h.b16 %v480
        %v1126 = vunpack.c.l.b16 %v481
        %v1127 = vunpack.c.h.b16 %v481
        %v1128 = vunpack.c.l.b16 %v482
        %v1129 = vunpack.c.h.b16 %v482
        %v1130 = vunpack.c.l.b16 %v483
        %v1131 = vunpack.c.h.b16 %v483
        %v1132 = vunpack.c.l.b16 %v484
        %v1133 = vunpack.c.h.b16 %v484
        %v1134 = vunpack.c.l.b16 %v485
        %v1135 = vunpack.c.h.b16 %v485
        %v1136 = vunpack.c.l.b16 %v486
        %v1137 = vunpack.c.h.b16 %v486
        %v1138 = vunpack.c.l.b16 %v487
        %v1139 = vunpack.c.h.b16 %v487
        %v1140 = vunpack.c.l.b16 %v488
        %v1141 = vunpack.c.h.b16 %v488
        %v1142 = vunpack.c.l.b16 %v489
        %v1143 = vunpack.c.h.b16 %v489
        %v1144 = vunpack.c.l.b16 %v490
        %v1145 = vunpack.c.h.b16 %v490
        %v1146 = vunpack.c.l.b16 %v491
        %v1147 = vunpack.c.h.b16 %v491
        %v1148 = vunpack.c.l.b16 %v492
        %v1149 = vunpack.c.h.b16 %v492
        %v1150 = vunpack.c.l.b16 %v493
        %v1151 = vunpack.c.h.b16 %v493
        %v1152 = vunpack.c.l.b16 %v494
        %v1153 = vunpack.c.h.b16 %v494
        %v1154 = vunpack.c.l.b16 %v495
        %v1155 = vunpack.c.h.b16 %v495
        %v1156 = vunpack.c.l.b16 %v496
        %v1157 = vunpack.c.h.b16 %v496
        %v1158 = vunpack.c.l.b16 %v497
        %v1159 = vunpack.c.h.b16 %v497
        %v1160 = vpack.c.b16 %v912, %v904
        %v1161 = vpack.c.b16 %v913, %v905
        %v1162 = vpack.c.b16 %v914, %v906
        %v1163 = vpack.c.b16 %v915, %v907
        %v1164 = vpack.c.b16 %v916, %v908
        %v1165 = vpack.c.b16 %v917, %v909
        %v1166 = vpack.c.b16 %v918, %v910
        %v1167 = vpack.c.b16 %v919, %v911
        %v1168 = vpack.c.b16 %v928, %v920
        %v1169 = vpack.c.b16 %v929, %v921
        %v1170 = vpack.c.b16 %v930, %v922
        %v1171 = vpack.c.b16 %v931, %v923
        %v1172 = vpack.c.b16 %v932, %v924
        %v1173 = vpack.c.b16 %v933, %v925
        %v1174 = vpack.c.b16 %v934, %v926
        %v1175 = vpack.c.b16 %v935, %v927
        %v1176 = vpack.c.b16 %v944, %v936
        %v1177 = vpack.c.b16 %v945, %v937
        %v1178 = vpack.c.b16 %v946, %v938
        %v1179 = vpack.c.b16 %v947, %v939
        %v1180 = vpack.c.b16 %v948, %v940
        %v1181 = vpack.c.b16 %v949, %v941
        %v1182 = vpack.c.b16 %v950, %v942
        %v1183 = vpack.c.b16 %v951, %v943
        %v1184 = vpack.c.b16 %v960, %v952
        %v1185 = vpack.c.b16 %v961, %v953
        %v1186 = vpack.c.b16 %v962, %v954
        %v1187 = vpack.c.b16 %v963, %v955
        %v1188 = vpack.c.b16 %v964, %v956
        %v1189 = vpack.c.b16 %v965, %v957
        %v1190 = vpack.c.b16 %v966, %v958
        %v1191 = vpack.c.b16 %v967, %v959
        %v1192 = vpack.c.b16 %v976, %v968
        %v1193 = vpack.c.b16 %v977, %v969
        %v1194 = vpack.c.b16 %v978, %v970
        %v1195 = vpack.c.b16 %v979, %v971
        %v1196 = vpack.c.b16 %v980, %v972
        %v1197 = vpack.c.b16 %v981, %v973
        %v1198 = vpack.c.b16 %v982, %v974
        %v1199 = vpack.c.b16 %v983, %v975
        %v1200 = vpack.c.b16 %v992, %v984
        %v1201 = vpack.c.b16 %v993, %v985
        %v1202 = vpack.c.b16 %v994, %v986
        %v1203 = vpack.c.b16 %v995, %v987
        %v1204 = vpack.c.b16 %v996, %v988
        %v1205 = vpack.c.b16 %v997, %v989
        %v1206 = vpack.c.b16 %v998, %v990
        %v1207 = vpack.c.b16 %v999, %v991
        %v1208 = vpack.c.b16 %v1008, %v1000
        %v1209 = vpack.c.b16 %v1009, %v1001
        %v1210 = vpack.c.b16 %v1010, %v1002
        %v1211 = vpack.c.b16 %v1011, %v1003
        %v1212 = vpack.c.b16 %v1012, %v1004
        %v1213 = vpack.c.b16 %v1013, %v1005
        %v1214 = vpack.c.b16 %v1014, %v1006
        %v1215 = vpack.c.b16 %v1015, %v1007
        %v1216 = vpack.c.b16 %v1024, %v1016
        %v1217 = vpack.c.b16 %v1025, %v1017
        %v1218 = vpack.c.b16 %v1026, %v1018
        %v1219 = vpack.c.b16 %v1027, %v1019
        %v1220 = vpack.c.b16 %v1028, %v1020
        %v1221 = vpack.c.b16 %v1029, %v1021
        %v1222 = vpack.c.b16 %v1030, %v1022
        %v1223 = vpack.c.b16 %v1031, %v1023
        %v1224 = vpack.c.b16 %v1040, %v1032
        %v1225 = vpack.c.b16 %v1041, %v1033
        %v1226 = vpack.c.b16 %v1042, %v1034
        %v1227 = vpack.c.b16 %v1043, %v1035
        %v1228 = vpack.c.b16 %v1044, %v1036
        %v1229 = vpack.c.b16 %v1045, %v1037
        %v1230 = vpack.c.b16 %v1046, %v1038
        %v1231 = vpack.c.b16 %v1047, %v1039
        %v1232 = vpack.c.b16 %v1056, %v1048
        %v1233 = vpack.c.b16 %v1057, %v1049
        %v1234 = vpack.c.b16 %v1058, %v1050
        %v1235 = vpack.c.b16 %v1059, %v1051
        %v1236 = vpack.c.b16 %v1060, %v1052
        %v1237 = vpack.c.b16 %v1061, %v1053
        %v1238 = vpack.c.b16 %v1062, %v1054
        %v1239 = vpack.c.b16 %v1063, %v1055
        %v1240 = vpack.c.b16 %v1072, %v1064
        %v1241 = vpack.c.b16 %v1073, %v1065
        %v1242 = vpack.c.b16 %v1074, %v1066
        %v1243 = vpack.c.b16 %v1075, %v1067
        %v1244 = vpack.c.b16 %v1076, %v1068
        %v1245 = vpack.c.b16 %v1077, %v1069
        %v1246 = vpack.c.b16 %v1078, %v1070
        %v1247 = vpack.c.b16 %v1079, %v1071
        %v1248 = vpack.c.b16 %v1088, %v1080
        %v1249 = vpack.c.b16 %v1089, %v1081
        %v1250 = vpack.c.b16 %v1090, %v1082
        %v1251 = vpack.c.b16 %v1091, %v1083
        %v1252 = vpack.c.b16 %v1092, %v1084
        %v1253 = vpack.c.b16 %v1093, %v1085
        %v1254 = vpack.c.b16 %v1094, %v1086
        %v1255 = vpack.c.b16 %v1095, %v1087
        %v1256 = vpack.c.b16 %v1104, %v1096
        %v1257 = vpack.c.b16 %v1105, %v1097
        %v1258 = vpack.c.b16 %v1106, %v1098
        %v1259 = vpack.c.b16 %v1107, %v1099
        %v1260 = vpack.c.b16 %v1108, %v1100
        %v1261 = vpack.c.b16 %v1109, %v1101
        %v1262 = vpack.c.b16 %v1110, %v1102
        %v1263 = vpack.c.b16 %v1111, %v1103
        %v1264 = vpack.c.b16 %v1120, %v1112
        %v1265 = vpack.c.b16 %v1121, %v1113
        %v1266 = vpack.c.b16 %v1122, %v1114
        %v1267 = vpack.c.b16 %v1123, %v1115
        %v1268 = vpack.c.b16 %v1124, %v1116
        %v1269 = vpack.c.b16 %v1125, %v1117
        %v1270 = vpack.c.b16 %v1126, %v1118
        %v1271 = vpack.c.b16 %v1127, %v1119
        %v1272 = vpack.c.b16 %v1136, %v1128
        %v1273 = vpack.c.b16 %v1137, %v1129
        %v1274 = vpack.c.b16 %v1138, %v1130
        %v1275 = vpack.c.b16 %v1139, %v1131
        %v1276 = vpack.c.b16 %v1140, %v1132
        %v1277 = vpack.c.b16 %v1141, %v1133
        %v1278 = vpack.c.b16 %v1142, %v1134
        %v1279 = vpack.c.b16 %v1143, %v1135
        %v1280 = vpack.c.b16 %v1152, %v1144
        %v1281 = vpack.c.b16 %v1153, %v1145
        %v1282 = vpack.c.b16 %v1154, %v1146
        %v1283 = vpack.c.b16 %v1155, %v1147
        %v1284 = vpack.c.b16 %v1156, %v1148
        %v1285 = vpack.c.b16 %v1157, %v1149
        %v1286 = vpack.c.b16 %v1158, %v1150
        %v1287 = vpack.c.b16 %v1159, %v1151
        %v1672 = vunpack.c.l.b16 %v498
        %v1673 = vunpack.c.h.b16 %v498
        %v1674 = vunpack.c.l.b16 %v499
        %v1675 = vunpack.c.h.b16 %v499
        %v1676 = vunpack.c.l.b16 %v500
        %v1677 = vunpack.c.h.b16 %v500
        %v1678 = vunpack.c.l.b16 %v501
        %v1679 = vunpack.c.h.b16 %v501
        %v1680 = vunpack.c.l.b16 %v502
        %v1681 = vunpack.c.h.b16 %v502
        %v1682 = vunpack.c.l.b16 %v503
        %v1683 = vunpack.c.h.b16 %v503
        %v1684 = vunpack.c.l.b16 %v504
        %v1685 = vunpack.c.h.b16 %v504
        %v1686 = vunpack.c.l.b16 %v505
        %v1687 = vunpack.c.h.b16 %v505
        %v1688 = vunpack.c.l.b16 %v506
        %v1689 = vunpack.c.h.b16 %v506
        %v1690 = vunpack.c.l.b16 %v507
        %v1691 = vunpack.c.h.b16 %v507
        %v1692 = vunpack.c.l.b16 %v508
        %v1693 = vunpack.c.h.b16 %v508
        %v1694 = vunpack.c.l.b16 %v509
        %v1695 = vunpack.c.h.b16 %v509
        %v1696 = vunpack.c.l.b16 %v510
        %v1697 = vunpack.c.h.b16 %v510
        %v1698 = vunpack.c.l.b16 %v511
        %v1699 = vunpack.c.h.b16 %v511
        %v1700 = vunpack.c.l.b16 %v512
        %v1701 = vunpack.c.h.b16 %v512
        %v1702 = vunpack.c.l.b16 %v513
        %v1703 = vunpack.c.h.b16 %v513
        %v1704 = vunpack.c.l.b16 %v514
        %v1705 = vunpack.c.h.b16 %v514
        %v1706 = vunpack.c.l.b16 %v515
        %v1707 = vunpack.c.h.b16 %v515
        %v1708 = vunpack.c.l.b16 %v516
        %v1709 = vunpack.c.h.b16 %v516
        %v1710 = vunpack.c.l.b16 %v517
        %v1711 = vunpack.c.h.b16 %v517
        %v1712 = vunpack.c.l.b16 %v518
        %v1713 = vunpack.c.h.b16 %v518
        %v1714 = vunpack.c.l.b16 %v519
        %v1715 = vunpack.c.h.b16 %v519
        %v1716 = vunpack.c.l.b16 %v520
        %v1717 = vunpack.c.h.b16 %v520
        %v1718 = vunpack.c.l.b16 %v521
        %v1719 = vunpack.c.h.b16 %v521
        %v1720 = vunpack.c.l.b16 %v522
        %v1721 = vunpack.c.h.b16 %v522
        %v1722 = vunpack.c.l.b16 %v523
        %v1723 = vunpack.c.h.b16 %v523
        %v1724 = vunpack.c.l.b16 %v524
        %v1725 = vunpack.c.h.b16 %v524
        %v1726 = vunpack.c.l.b16 %v525
        %v1727 = vunpack.c.h.b16 %v525
        %v1728 = vunpack.c.l.b16 %v526
        %v1729 = vunpack.c.h.b16 %v526
        %v1730 = vunpack.c.l.b16 %v527
        %v1731 = vunpack.c.h.b16 %v527
        %v1732 = vunpack.c.l.b16 %v528
        %v1733 = vunpack.c.h.b16 %v528
        %v1734 = vunpack.c.l.b16 %v529
        %v1735 = vunpack.c.h.b16 %v529
        %v1736 = vunpack.c.l.b16 %v530
        %v1737 = vunpack.c.h.b16 %v530
        %v1738 = vunpack.c.l.b16 %v531
        %v1739 = vunpack.c.h.b16 %v531
        %v1740 = vunpack.c.l.b16 %v532
        %v1741 = vunpack.c.h.b16 %v532
        %v1742 = vunpack.c.l.b16 %v533
        %v1743 = vunpack.c.h.b16 %v533
        %v1744 = vunpack.c.l.b16 %v534
        %v1745 = vunpack.c.h.b16 %v534
        %v1746 = vunpack.c.l.b16 %v535
        %v1747 = vunpack.c.h.b16 %v535
        %v1748 = vunpack.c.l.b16 %v536
        %v1749 = vunpack.c.h.b16 %v536
        %v1750 = vunpack.c.l.b16 %v537
        %v1751 = vunpack.c.h.b16 %v537
        %v1752 = vunpack.c.l.b16 %v538
        %v1753 = vunpack.c.h.b16 %v538
        %v1754 = vunpack.c.l.b16 %v539
        %v1755 = vunpack.c.h.b16 %v539
        %v1756 = vunpack.c.l.b16 %v540
        %v1757 = vunpack.c.h.b16 %v540
        %v1758 = vunpack.c.l.b16 %v541
        %v1759 = vunpack.c.h.b16 %v541
        %v1760 = vunpack.c.l.b16 %v542
        %v1761 = vunpack.c.h.b16 %v542
        %v1762 = vunpack.c.l.b16 %v543
        %v1763 = vunpack.c.h.b16 %v543
        %v1764 = vunpack.c.l.b16 %v544
        %v1765 = vunpack.c.h.b16 %v544
        %v1766 = vunpack.c.l.b16 %v545
        %v1767 = vunpack.c.h.b16 %v545
        %v1768 = vunpack.c.l.b16 %v546
        %v1769 = vunpack.c.h.b16 %v546
        %v1770 = vunpack.c.l.b16 %v547
        %v1771 = vunpack.c.h.b16 %v547
        %v1772 = vunpack.c.l.b16 %v548
        %v1773 = vunpack.c.h.b16 %v548
        %v1774 = vunpack.c.l.b16 %v549
        %v1775 = vunpack.c.h.b16 %v549
        %v1776 = vunpack.c.l.b16 %v550
        %v1777 = vunpack.c.h.b16 %v550
        %v1778 = vunpack.c.l.b16 %v551
        %v1779 = vunpack.c.h.b16 %v551
        %v1780 = vunpack.c.l.b16 %v552
        %v1781 = vunpack.c.h.b16 %v552
        %v1782 = vunpack.c.l.b16 %v553
        %v1783 = vunpack.c.h.b16 %v553
        %v1784 = vunpack.c.l.b16 %v554
        %v1785 = vunpack.c.h.b16 %v554
        %v1786 = vunpack.c.l.b16 %v555
        %v1787 = vunpack.c.h.b16 %v555
        %v1788 = vunpack.c.l.b16 %v556
        %v1789 = vunpack.c.h.b16 %v556
        %v1790 = vunpack.c.l.b16 %v557
        %v1791 = vunpack.c.h.b16 %v557
        %v1792 = vunpack.c.l.b16 %v558
        %v1793 = vunpack.c.h.b16 %v558
        %v1794 = vunpack.c.l.b16 %v559
        %v1795 = vunpack.c.h.b16 %v559
        %v1796 = vunpack.c.l.b16 %v560
        %v1797 = vunpack.c.h.b16 %v560
        %v1798 = vunpack.c.l.b16 %v561
        %v1799 = vunpack.c.h.b16 %v561
        %v1800 = vunpack.c.l.b16 %v562
        %v1801 = vunpack.c.h.b16 %v562
        %v1802 = vunpack.c.l.b16 %v563
        %v1803 = vunpack.c.h.b16 %v563
        %v1804 = vunpack.c.l.b16 %v564
        %v1805 = vunpack.c.h.b16 %v564
        %v1806 = vunpack.c.l.b16 %v565
        %v1807 = vunpack.c.h.b16 %v565
        %v1808 = vunpack.c.l.b16 %v566
        %v1809 = vunpack.c.h.b16 %v566
        %v1810 = vunpack.c.l.b16 %v567
        %v1811 = vunpack.c.h.b16 %v567
        %v1812 = vunpack.c.l.b16 %v568
        %v1813 = vunpack.c.h.b16 %v568
        %v1814 = vunpack.c.l.b16 %v569
        %v1815 = vunpack.c.h.b16 %v569
        %v1816 = vunpack.c.l.b16 %v570
        %v1817 = vunpack.c.h.b16 %v570
        %v1818 = vunpack.c.l.b16 %v571
        %v1819 = vunpack.c.h.b16 %v571
        %v1820 = vunpack.c.l.b16 %v572
        %v1821 = vunpack.c.h.b16 %v572
        %v1822 = vunpack.c.l.b16 %v573
        %v1823 = vunpack.c.h.b16 %v573
        %v1824 = vunpack.c.l.b16 %v574
        %v1825 = vunpack.c.h.b16 %v574
        %v1826 = vunpack.c.l.b16 %v575
        %v1827 = vunpack.c.h.b16 %v575
        %v1828 = vunpack.c.l.b16 %v576
        %v1829 = vunpack.c.h.b16 %v576
        %v1830 = vunpack.c.l.b16 %v577
        %v1831 = vunpack.c.h.b16 %v577
        %v1832 = vunpack.c.l.b16 %v578
        %v1833 = vunpack.c.h.b16 %v578
        %v1834 = vunpack.c.l.b16 %v579
        %v1835 = vunpack.c.h.b16 %v579
        %v1836 = vunpack.c.l.b16 %v580
        %v1837 = vunpack.c.h.b16 %v580
        %v1838 = vunpack.c.l.b16 %v581
        %v1839 = vunpack.c.h.b16 %v581
        %v1840 = vunpack.c.l.b16 %v582
        %v1841 = vunpack.c.h.b16 %v582
        %v1842 = vunpack.c.l.b16 %v583
        %v1843 = vunpack.c.h.b16 %v583
        %v1844 = vunpack.c.l.b16 %v584
        %v1845 = vunpack.c.h.b16 %v584
        %v1846 = vunpack.c.l.b16 %v585
        %v1847 = vunpack.c.h.b16 %v585
        %v1848 = vunpack.c.l.b16 %v586
        %v1849 = vunpack.c.h.b16 %v586
        %v1850 = vunpack.c.l.b16 %v587
        %v1851 = vunpack.c.h.b16 %v587
        %v1852 = vunpack.c.l.b16 %v588
        %v1853 = vunpack.c.h.b16 %v588
        %v1854 = vunpack.c.l.b16 %v589
        %v1855 = vunpack.c.h.b16 %v589
        %v1856 = vunpack.c.l.b16 %v590
        %v1857 = vunpack.c.h.b16 %v590
        %v1858 = vunpack.c.l.b16 %v591
        %v1859 = vunpack.c.h.b16 %v591
        %v1860 = vunpack.c.l.b16 %v592
        %v1861 = vunpack.c.h.b16 %v592
        %v1862 = vunpack.c.l.b16 %v593
        %v1863 = vunpack.c.h.b16 %v593
        %v1864 = vunpack.c.l.b16 %v594
        %v1865 = vunpack.c.h.b16 %v594
        %v1866 = vunpack.c.l.b16 %v595
        %v1867 = vunpack.c.h.b16 %v595
        %v1868 = vunpack.c.l.b16 %v596
        %v1869 = vunpack.c.h.b16 %v596
        %v1870 = vunpack.c.l.b16 %v597
        %v1871 = vunpack.c.h.b16 %v597
        %v1872 = vunpack.c.l.b16 %v598
        %v1873 = vunpack.c.h.b16 %v598
        %v1874 = vunpack.c.l.b16 %v599
        %v1875 = vunpack.c.h.b16 %v599
        %v1876 = vunpack.c.l.b16 %v600
        %v1877 = vunpack.c.h.b16 %v600
        %v1878 = vunpack.c.l.b16 %v601
        %v1879 = vunpack.c.h.b16 %v601
        %v1880 = vunpack.c.l.b16 %v602
        %v1881 = vunpack.c.h.b16 %v602
        %v1882 = vunpack.c.l.b16 %v603
        %v1883 = vunpack.c.h.b16 %v603
        %v1884 = vunpack.c.l.b16 %v604
        %v1885 = vunpack.c.h.b16 %v604
        %v1886 = vunpack.c.l.b16 %v605
        %v1887 = vunpack.c.h.b16 %v605
        %v1888 = vunpack.c.l.b16 %v606
        %v1889 = vunpack.c.h.b16 %v606
        %v1890 = vunpack.c.l.b16 %v607
        %v1891 = vunpack.c.h.b16 %v607
        %v1892 = vunpack.c.l.b16 %v608
        %v1893 = vunpack.c.h.b16 %v608
        %v1894 = vunpack.c.l.b16 %v609
        %v1895 = vunpack.c.h.b16 %v609
        %v1896 = vunpack.c.l.b16 %v610
        %v1897 = vunpack.c.h.b16 %v610
        %v1898 = vunpack.c.l.b16 %v611
        %v1899 = vunpack.c.h.b16 %v611
        %v1900 = vunpack.c.l.b16 %v612
        %v1901 = vunpack.c.h.b16 %v612
        %v1902 = vunpack.c.l.b16 %v613
        %v1903 = vunpack.c.h.b16 %v613
        %v1904 = vunpack.c.l.b16 %v614
        %v1905 = vunpack.c.h.b16 %v614
        %v1906 = vunpack.c.l.b16 %v615
        %v1907 = vunpack.c.h.b16 %v615
        %v1908 = vunpack.c.l.b16 %v616
        %v1909 = vunpack.c.h.b16 %v616
        %v1910 = vunpack.c.l.b16 %v617
        %v1911 = vunpack.c.h.b16 %v617
        %v1912 = vunpack.c.l.b16 %v618
        %v1913 = vunpack.c.h.b16 %v618
        %v1914 = vunpack.c.l.b16 %v619
        %v1915 = vunpack.c.h.b16 %v619
        %v1916 = vunpack.c.l.b16 %v620
        %v1917 = vunpack.c.h.b16 %v620
        %v1918 = vunpack.c.l.b16 %v621
        %v1919 = vunpack.c.h.b16 %v621
        %v1920 = vunpack.c.l.b16 %v622
        %v1921 = vunpack.c.h.b16 %v622
        %v1922 = vunpack.c.l.b16 %v623
        %v1923 = vunpack.c.h.b16 %v623
        %v1924 = vunpack.c.l.b16 %v624
        %v1925 = vunpack.c.h.b16 %v624
        %v1926 = vunpack.c.l.b16 %v625
        %v1927 = vunpack.c.h.b16 %v625
        %v1928 = vunpack.c.l.b16 %v626
        %v1929 = vunpack.c.h.b16 %v626
        %v1930 = vunpack.c.l.b16 %v627
        %v1931 = vunpack.c.h.b16 %v627
        %v1932 = vunpack.c.l.b16 %v628
        %v1933 = vunpack.c.h.b16 %v628
        %v1934 = vunpack.c.l.b16 %v629
        %v1935 = vunpack.c.h.b16 %v629
        %v1936 = vunpack.c.l.b16 %v630
        %v1937 = vunpack.c.h.b16 %v630
        %v1938 = vunpack.c.l.b16 %v631
        %v1939 = vunpack.c.h.b16 %v631
        %v1940 = vunpack.c.l.b16 %v632
        %v1941 = vunpack.c.h.b16 %v632
        %v1942 = vunpack.c.l.b16 %v633
        %v1943 = vunpack.c.h.b16 %v633
        %v1944 = vunpack.c.l.b16 %v634
        %v1945 = vunpack.c.h.b16 %v634
        %v1946 = vunpack.c.l.b16 %v635
        %v1947 = vunpack.c.h.b16 %v635
        %v1948 = vunpack.c.l.b16 %v636
        %v1949 = vunpack.c.h.b16 %v636
        %v1950 = vunpack.c.l.b16 %v637
        %v1951 = vunpack.c.h.b16 %v637
        %v1952 = vunpack.c.l.b16 %v638
        %v1953 = vunpack.c.h.b16 %v638
        %v1954 = vunpack.c.l.b16 %v639
        %v1955 = vunpack.c.h.b16 %v639
        %v1956 = vunpack.c.l.b16 %v640
        %v1957 = vunpack.c.h.b16 %v640
        %v1958 = vunpack.c.l.b16 %v641
        %v1959 = vunpack.c.h.b16 %v641
        %v1960 = vunpack.c.l.b16 %v642
        %v1961 = vunpack.c.h.b16 %v642
        %v1962 = vunpack.c.l.b16 %v643
        %v1963 = vunpack.c.h.b16 %v643
        %v1964 = vunpack.c.l.b16 %v644
        %v1965 = vunpack.c.h.b16 %v644
        %v1966 = vunpack.c.l.b16 %v645
        %v1967 = vunpack.c.h.b16 %v645
        %v1968 = vunpack.c.l.b16 %v646
        %v1969 = vunpack.c.h.b16 %v646
        %v1970 = vunpack.c.l.b16 %v647
        %v1971 = vunpack.c.h.b16 %v647
        %v1972 = vunpack.c.l.b16 %v648
        %v1973 = vunpack.c.h.b16 %v648
        %v1974 = vunpack.c.l.b16 %v649
        %v1975 = vunpack.c.h.b16 %v649
        %v1976 = vunpack.c.l.b16 %v650
        %v1977 = vunpack.c.h.b16 %v650
        %v1978 = vunpack.c.l.b16 %v651
        %v1979 = vunpack.c.h.b16 %v651
        %v1980 = vunpack.c.l.b16 %v652
        %v1981 = vunpack.c.h.b16 %v652
        %v1982 = vunpack.c.l.b16 %v653
        %v1983 = vunpack.c.h.b16 %v653
        %v1984 = vunpack.c.l.b16 %v654
        %v1985 = vunpack.c.h.b16 %v654
        %v1986 = vunpack.c.l.b16 %v655
        %v1987 = vunpack.c.h.b16 %v655
        %v1988 = vunpack.c.l.b16 %v656
        %v1989 = vunpack.c.h.b16 %v656
        %v1990 = vunpack.c.l.b16 %v657
        %v1991 = vunpack.c.h.b16 %v657
        %v1992 = vunpack.c.l.b16 %v658
        %v1993 = vunpack.c.h.b16 %v658
        %v1994 = vunpack.c.l.b16 %v659
        %v1995 = vunpack.c.h.b16 %v659
        %v1996 = vunpack.c.l.b16 %v660
        %v1997 = vunpack.c.h.b16 %v660
        %v1998 = vunpack.c.l.b16 %v661
        %v1999 = vunpack.c.h.b16 %v661
        %v2000 = vunpack.c.l.b16 %v662
        %v2001 = vunpack.c.h.b16 %v662
        %v2002 = vunpack.c.l.b16 %v663
        %v2003 = vunpack.c.h.b16 %v663
        %v2004 = vunpack.c.l.b16 %v664
        %v2005 = vunpack.c.h.b16 %v664
        %v2006 = vunpack.c.l.b16 %v665
        %v2007 = vunpack.c.h.b16 %v665
        %v2008 = vunpack.c.l.b16 %v666
        %v2009 = vunpack.c.h.b16 %v666
        %v2010 = vunpack.c.l.b16 %v667
        %v2011 = vunpack.c.h.b16 %v667
        %v2012 = vunpack.c.l.b16 %v668
        %v2013 = vunpack.c.h.b16 %v668
        %v2014 = vunpack.c.l.b16 %v669
        %v2015 = vunpack.c.h.b16 %v669
        %v2016 = vunpack.c.l.b16 %v670
        %v2017 = vunpack.c.h.b16 %v670
        %v2018 = vunpack.c.l.b16 %v671
        %v2019 = vunpack.c.h.b16 %v671
        %v2020 = vunpack.c.l.b16 %v672
        %v2021 = vunpack.c.h.b16 %v672
        %v2022 = vunpack.c.l.b16 %v673
        %v2023 = vunpack.c.h.b16 %v673
        %v2024 = vunpack.c.l.b16 %v674
        %v2025 = vunpack.c.h.b16 %v674
        %v2026 = vunpack.c.l.b16 %v675
        %v2027 = vunpack.c.h.b16 %v675
        %v2028 = vunpack.c.l.b16 %v676
        %v2029 = vunpack.c.h.b16 %v676
        %v2030 = vunpack.c.l.b16 %v677
        %v2031 = vunpack.c.h.b16 %v677
        %v2032 = vunpack.c.l.b16 %v678
        %v2033 = vunpack.c.h.b16 %v678
        %v2034 = vunpack.c.l.b16 %v679
        %v2035 = vunpack.c.h.b16 %v679
        %v2036 = vunpack.c.l.b16 %v680
        %v2037 = vunpack.c.h.b16 %v680
        %v2038 = vunpack.c.l.b16 %v681
        %v2039 = vunpack.c.h.b16 %v681
        %v2040 = vunpack.c.l.b16 %v682
        %v2041 = vunpack.c.h.b16 %v682
        %v2042 = vunpack.c.l.b16 %v683
        %v2043 = vunpack.c.h.b16 %v683
        %v2044 = vunpack.c.l.b16 %v684
        %v2045 = vunpack.c.h.b16 %v684
        %v2046 = vunpack.c.l.b16 %v685
        %v2047 = vunpack.c.h.b16 %v685
        %v2048 = vunpack.c.l.b16 %v686
        %v2049 = vunpack.c.h.b16 %v686
        %v2050 = vunpack.c.l.b16 %v687
        %v2051 = vunpack.c.h.b16 %v687
        %v2052 = vunpack.c.l.b16 %v688
        %v2053 = vunpack.c.h.b16 %v688
        %v2054 = vunpack.c.l.b16 %v689
        %v2055 = vunpack.c.h.b16 %v689
        %v2056 = vunpack.c.l.b16 %v690
        %v2057 = vunpack.c.h.b16 %v690
        %v2058 = vunpack.c.l.b16 %v691
        %v2059 = vunpack.c.h.b16 %v691
        %v2060 = vunpack.c.l.b16 %v692
        %v2061 = vunpack.c.h.b16 %v692
        %v2062 = vunpack.c.l.b16 %v693
        %v2063 = vunpack.c.h.b16 %v693
        %v2064 = vunpack.c.l.b16 %v694
        %v2065 = vunpack.c.h.b16 %v694
        %v2066 = vunpack.c.l.b16 %v695
        %v2067 = vunpack.c.h.b16 %v695
        %v2068 = vunpack.c.l.b16 %v696
        %v2069 = vunpack.c.h.b16 %v696
        %v2070 = vunpack.c.l.b16 %v697
        %v2071 = vunpack.c.h.b16 %v697
        %v2072 = vunpack.c.l.b16 %v698
        %v2073 = vunpack.c.h.b16 %v698
        %v2074 = vunpack.c.l.b16 %v699
        %v2075 = vunpack.c.h.b16 %v699
        %v2076 = vunpack.c.l.b16 %v700
        %v2077 = vunpack.c.h.b16 %v700
        %v2078 = vunpack.c.l.b16 %v701
        %v2079 = vunpack.c.h.b16 %v701
        %v2080 = vunpack.c.l.b16 %v702
        %v2081 = vunpack.c.h.b16 %v702
        %v2082 = vunpack.c.l.b16 %v703
        %v2083 = vunpack.c.h.b16 %v703
        %v2084 = vunpack.c.l.b16 %v704
        %v2085 = vunpack.c.h.b16 %v704
        %v2086 = vunpack.c.l.b16 %v705
        %v2087 = vunpack.c.h.b16 %v705
        %v2088 = vunpack.c.l.b16 %v706
        %v2089 = vunpack.c.h.b16 %v706
        %v2090 = vunpack.c.l.b16 %v707
        %v2091 = vunpack.c.h.b16 %v707
        %v2092 = vunpack.c.l.b16 %v708
        %v2093 = vunpack.c.h.b16 %v708
        %v2094 = vunpack.c.l.b16 %v709
        %v2095 = vunpack.c.h.b16 %v709
        %v2096 = vunpack.c.l.b16 %v710
        %v2097 = vunpack.c.h.b16 %v710
        %v2098 = vunpack.c.l.b16 %v711
        %v2099 = vunpack.c.h.b16 %v711
        %v2100 = vunpack.c.l.b16 %v712
        %v2101 = vunpack.c.h.b16 %v712
        %v2102 = vunpack.c.l.b16 %v713
        %v2103 = vunpack.c.h.b16 %v713
        %v2104 = vunpack.c.l.b16 %v714
        %v2105 = vunpack.c.h.b16 %v714
        %v2106 = vunpack.c.l.b16 %v715
        %v2107 = vunpack.c.h.b16 %v715
        %v2108 = vunpack.c.l.b16 %v716
        %v2109 = vunpack.c.h.b16 %v716
        %v2110 = vunpack.c.l.b16 %v717
        %v2111 = vunpack.c.h.b16 %v717
        %v2112 = vunpack.c.l.b16 %v718
        %v2113 = vunpack.c.h.b16 %v718
        %v2114 = vunpack.c.l.b16 %v719
        %v2115 = vunpack.c.h.b16 %v719
        %v2116 = vunpack.c.l.b16 %v720
        %v2117 = vunpack.c.h.b16 %v720
        %v2118 = vunpack.c.l.b16 %v721
        %v2119 = vunpack.c.h.b16 %v721
        %v2120 = vunpack.c.l.b16 %v722
        %v2121 = vunpack.c.h.b16 %v722
        %v2122 = vunpack.c.l.b16 %v723
        %v2123 = vunpack.c.h.b16 %v723
        %v2124 = vunpack.c.l.b16 %v724
        %v2125 = vunpack.c.h.b16 %v724
        %v2126 = vunpack.c.l.b16 %v725
        %v2127 = vunpack.c.h.b16 %v725
        %v2128 = vunpack.c.l.b16 %v726
        %v2129 = vunpack.c.h.b16 %v726
        %v2130 = vunpack.c.l.b16 %v727
        %v2131 = vunpack.c.h.b16 %v727
        %v2132 = vunpack.c.l.b16 %v728
        %v2133 = vunpack.c.h.b16 %v728
        %v2134 = vunpack.c.l.b16 %v729
        %v2135 = vunpack.c.h.b16 %v729
        %v2136 = vunpack.c.l.b16 %v730
        %v2137 = vunpack.c.h.b16 %v730
        %v2138 = vunpack.c.l.b16 %v731
        %v2139 = vunpack.c.h.b16 %v731
        %v2140 = vunpack.c.l.b16 %v732
        %v2141 = vunpack.c.h.b16 %v732
        %v2142 = vunpack.c.l.b16 %v733
        %v2143 = vunpack.c.h.b16 %v733
        %v2144 = vunpack.c.l.b16 %v734
        %v2145 = vunpack.c.h.b16 %v734
        %v2146 = vunpack.c.l.b16 %v735
        %v2147 = vunpack.c.h.b16 %v735
        %v2148 = vunpack.c.l.b16 %v736
        %v2149 = vunpack.c.h.b16 %v736
        %v2150 = vunpack.c.l.b16 %v737
        %v2151 = vunpack.c.h.b16 %v737
        %v2152 = vunpack.c.l.b16 %v738
        %v2153 = vunpack.c.h.b16 %v738
        %v2154 = vunpack.c.l.b16 %v739
        %v2155 = vunpack.c.h.b16 %v739
        %v2156 = vunpack.c.l.b16 %v740
        %v2157 = vunpack.c.h.b16 %v740
        %v2158 = vunpack.c.l.b16 %v741
        %v2159 = vunpack.c.h.b16 %v741
        %v2160 = vunpack.c.l.b16 %v742
        %v2161 = vunpack.c.h.b16 %v742
        %v2162 = vunpack.c.l.b16 %v743
        %v2163 = vunpack.c.h.b16 %v743
        %v2164 = vunpack.c.l.b16 %v744
        %v2165 = vunpack.c.h.b16 %v744
        %v2166 = vunpack.c.l.b16 %v745
        %v2167 = vunpack.c.h.b16 %v745
        %v2168 = vunpack.c.l.b16 %v746
        %v2169 = vunpack.c.h.b16 %v746
        %v2170 = vunpack.c.l.b16 %v747
        %v2171 = vunpack.c.h.b16 %v747
        %v2172 = vunpack.c.l.b16 %v748
        %v2173 = vunpack.c.h.b16 %v748
        %v2174 = vunpack.c.l.b16 %v749
        %v2175 = vunpack.c.h.b16 %v749
        %v2176 = vunpack.c.l.b16 %v750
        %v2177 = vunpack.c.h.b16 %v750
        %v2178 = vunpack.c.l.b16 %v751
        %v2179 = vunpack.c.h.b16 %v751
        %v2180 = vunpack.c.l.b16 %v752
        %v2181 = vunpack.c.h.b16 %v752
        %v2182 = vunpack.c.l.b16 %v753
        %v2183 = vunpack.c.h.b16 %v753
        %v2184 = vpack.c.b16 %v1676, %v1672
        %v2185 = vpack.c.b16 %v1677, %v1673
        %v2186 = vpack.c.b16 %v1678, %v1674
        %v2187 = vpack.c.b16 %v1679, %v1675
        %v2188 = vpack.c.b16 %v1684, %v1680
        %v2189 = vpack.c.b16 %v1685, %v1681
        %v2190 = vpack.c.b16 %v1686, %v1682
        %v2191 = vpack.c.b16 %v1687, %v1683
        %v2192 = vpack.c.b16 %v1692, %v1688
        %v2193 = vpack.c.b16 %v1693, %v1689
        %v2194 = vpack.c.b16 %v1694, %v1690
        %v2195 = vpack.c.b16 %v1695, %v1691
        %v2196 = vpack.c.b16 %v1700, %v1696
        %v2197 = vpack.c.b16 %v1701, %v1697
        %v2198 = vpack.c.b16 %v1702, %v1698
        %v2199 = vpack.c.b16 %v1703, %v1699
        %v2200 = vpack.c.b16 %v1708, %v1704
        %v2201 = vpack.c.b16 %v1709, %v1705
        %v2202 = vpack.c.b16 %v1710, %v1706
        %v2203 = vpack.c.b16 %v1711, %v1707
        %v2204 = vpack.c.b16 %v1716, %v1712
        %v2205 = vpack.c.b16 %v1717, %v1713
        %v2206 = vpack.c.b16 %v1718, %v1714
        %v2207 = vpack.c.b16 %v1719, %v1715
        %v2208 = vpack.c.b16 %v1724, %v1720
        %v2209 = vpack.c.b16 %v1725, %v1721
        %v2210 = vpack.c.b16 %v1726, %v1722
        %v2211 = vpack.c.b16 %v1727, %v1723
        %v2212 = vpack.c.b16 %v1732, %v1728
        %v2213 = vpack.c.b16 %v1733, %v1729
        %v2214 = vpack.c.b16 %v1734, %v1730
        %v2215 = vpack.c.b16 %v1735, %v1731
        %v2216 = vpack.c.b16 %v1740, %v1736
        %v2217 = vpack.c.b16 %v1741, %v1737
        %v2218 = vpack.c.b16 %v1742, %v1738
        %v2219 = vpack.c.b16 %v1743, %v1739
        %v2220 = vpack.c.b16 %v1748, %v1744
        %v2221 = vpack.c.b16 %v1749, %v1745
        %v2222 = vpack.c.b16 %v1750, %v1746
        %v2223 = vpack.c.b16 %v1751, %v1747
        %v2224 = vpack.c.b16 %v1756, %v1752
        %v2225 = vpack.c.b16 %v1757, %v1753
        %v2226 = vpack.c.b16 %v1758, %v1754
        %v2227 = vpack.c.b16 %v1759, %v1755
        %v2228 = vpack.c.b16 %v1764, %v1760
        %v2229 = vpack.c.b16 %v1765, %v1761
        %v2230 = vpack.c.b16 %v1766, %v1762
        %v2231 = vpack.c.b16 %v1767, %v1763
        %v2232 = vpack.c.b16 %v1772, %v1768
        %v2233 = vpack.c.b16 %v1773, %v1769
        %v2234 = vpack.c.b16 %v1774, %v1770
        %v2235 = vpack.c.b16 %v1775, %v1771
        %v2236 = vpack.c.b16 %v1780, %v1776
        %v2237 = vpack.c.b16 %v1781, %v1777
        %v2238 = vpack.c.b16 %v1782, %v1778
        %v2239 = vpack.c.b16 %v1783, %v1779
        %v2240 = vpack.c.b16 %v1788, %v1784
        %v2241 = vpack.c.b16 %v1789, %v1785
        %v2242 = vpack.c.b16 %v1790, %v1786
        %v2243 = vpack.c.b16 %v1791, %v1787
        %v2244 = vpack.c.b16 %v1796, %v1792
        %v2245 = vpack.c.b16 %v1797, %v1793
        %v2246 = vpack.c.b16 %v1798, %v1794
        %v2247 = vpack.c.b16 %v1799, %v1795
        %v2248 = vpack.c.b16 %v1804, %v1800
        %v2249 = vpack.c.b16 %v1805, %v1801
        %v2250 = vpack.c.b16 %v1806, %v1802
        %v2251 = vpack.c.b16 %v1807, %v1803
        %v2252 = vpack.c.b16 %v1812, %v1808
        %v2253 = vpack.c.b16 %v1813, %v1809
        %v2254 = vpack.c.b16 %v1814, %v1810
        %v2255 = vpack.c.b16 %v1815, %v1811
        %v2256 = vpack.c.b16 %v1820, %v1816
        %v2257 = vpack.c.b16 %v1821, %v1817
        %v2258 = vpack.c.b16 %v1822, %v1818
        %v2259 = vpack.c.b16 %v1823, %v1819
        %v2260 = vpack.c.b16 %v1828, %v1824
        %v2261 = vpack.c.b16 %v1829, %v1825
        %v2262 = vpack.c.b16 %v1830, %v1826
        %v2263 = vpack.c.b16 %v1831, %v1827
        %v2264 = vpack.c.b16 %v1836, %v1832
        %v2265 = vpack.c.b16 %v1837, %v1833
        %v2266 = vpack.c.b16 %v1838, %v1834
        %v2267 = vpack.c.b16 %v1839, %v1835
        %v2268 = vpack.c.b16 %v1844, %v1840
        %v2269 = vpack.c.b16 %v1845, %v1841
        %v2270 = vpack.c.b16 %v1846, %v1842
        %v2271 = vpack.c.b16 %v1847, %v1843
        %v2272 = vpack.c.b16 %v1852, %v1848
        %v2273 = vpack.c.b16 %v1853, %v1849
        %v2274 = vpack.c.b16 %v1854, %v1850
        %v2275 = vpack.c.b16 %v1855, %v1851
        %v2276 = vpack.c.b16 %v1860, %v1856
        %v2277 = vpack.c.b16 %v1861, %v1857
        %v2278 = vpack.c.b16 %v1862, %v1858
        %v2279 = vpack.c.b16 %v1863, %v1859
        %v2280 = vpack.c.b16 %v1868, %v1864
        %v2281 = vpack.c.b16 %v1869, %v1865
        %v2282 = vpack.c.b16 %v1870, %v1866
        %v2283 = vpack.c.b16 %v1871, %v1867
        %v2284 = vpack.c.b16 %v1876, %v1872
        %v2285 = vpack.c.b16 %v1877, %v1873
        %v2286 = vpack.c.b16 %v1878, %v1874
        %v2287 = vpack.c.b16 %v1879, %v1875
        %v2288 = vpack.c.b16 %v1884, %v1880
        %v2289 = vpack.c.b16 %v1885, %v1881
        %v2290 = vpack.c.b16 %v1886, %v1882
        %v2291 = vpack.c.b16 %v1887, %v1883
        %v2292 = vpack.c.b16 %v1892, %v1888
        %v2293 = vpack.c.b16 %v1893, %v1889
        %v2294 = vpack.c.b16 %v1894, %v1890
        %v2295 = vpack.c.b16 %v1895, %v1891
        %v2296 = vpack.c.b16 %v1900, %v1896
        %v2297 = vpack.c.b16 %v1901, %v1897
        %v2298 = vpack.c.b16 %v1902, %v1898
        %v2299 = vpack.c.b16 %v1903, %v1899
        %v2300 = vpack.c.b16 %v1908, %v1904
        %v2301 = vpack.c.b16 %v1909, %v1905
        %v2302 = vpack.c.b16 %v1910, %v1906
        %v2303 = vpack.c.b16 %v1911, %v1907
        %v2304 = vpack.c.b16 %v1916, %v1912
        %v2305 = vpack.c.b16 %v1917, %v1913
        %v2306 = vpack.c.b16 %v1918, %v1914
        %v2307 = vpack.c.b16 %v1919, %v1915
        %v2308 = vpack.c.b16 %v1924, %v1920
        %v2309 = vpack.c.b16 %v1925, %v1921
        %v2310 = vpack.c.b16 %v1926, %v1922
        %v2311 = vpack.c.b16 %v1927, %v1923
        %v2312 = vpack.c.b16 %v1932, %v1928
        %v2313 = vpack.c.b16 %v1933, %v1929
        %v2314 = vpack.c.b16 %v1934, %v1930
        %v2315 = vpack.c.b16 %v1935, %v1931
        %v2316 = vpack.c.b16 %v1940, %v1936
        %v2317 = vpack.c.b16 %v1941, %v1937
        %v2318 = vpack.c.b16 %v1942, %v1938
        %v2319 = vpack.c.b16 %v1943, %v1939
        %v2320 = vpack.c.b16 %v1948, %v1944
        %v2321 = vpack.c.b16 %v1949, %v1945
        %v2322 = vpack.c.b16 %v1950, %v1946
        %v2323 = vpack.c.b16 %v1951, %v1947
        %v2324 = vpack.c.b16 %v1956, %v1952
        %v2325 = vpack.c.b16 %v1957, %v1953
        %v2326 = vpack.c.b16 %v1958, %v1954
        %v2327 = vpack.c.b16 %v1959, %v1955
        %v2328 = vpack.c.b16 %v1964, %v1960
        %v2329 = vpack.c.b16 %v1965, %v1961
        %v2330 = vpack.c.b16 %v1966, %v1962
        %v2331 = vpack.c.b16 %v1967, %v1963
        %v2332 = vpack.c.b16 %v1972, %v1968
        %v2333 = vpack.c.b16 %v1973, %v1969
        %v2334 = vpack.c.b16 %v1974, %v1970
        %v2335 = vpack.c.b16 %v1975, %v1971
        %v2336 = vpack.c.b16 %v1980, %v1976
        %v2337 = vpack.c.b16 %v1981, %v1977
        %v2338 = vpack.c.b16 %v1982, %v1978
        %v2339 = vpack.c.b16 %v1983, %v1979
        %v2340 = vpack.c.b16 %v1988, %v1984
        %v2341 = vpack.c.b16 %v1989, %v1985
        %v2342 = vpack.c.b16 %v1990, %v1986
        %v2343 = vpack.c.b16 %v1991, %v1987
        %v2344 = vpack.c.b16 %v1996, %v1992
        %v2345 = vpack.c.b16 %v1997, %v1993
        %v2346 = vpack.c.b16 %v1998, %v1994
        %v2347 = vpack.c.b16 %v1999, %v1995
        %v2348 = vpack.c.b16 %v2004, %v2000
        %v2349 = vpack.c.b16 %v2005, %v2001
        %v2350 = vpack.c.b16 %v2006, %v2002
        %v2351 = vpack.c.b16 %v2007, %v2003
        %v2352 = vpack.c.b16 %v2012, %v2008
        %v2353 = vpack.c.b16 %v2013, %v2009
        %v2354 = vpack.c.b16 %v2014, %v2010
        %v2355 = vpack.c.b16 %v2015, %v2011
        %v2356 = vpack.c.b16 %v2020, %v2016
        %v2357 = vpack.c.b16 %v2021, %v2017
        %v2358 = vpack.c.b16 %v2022, %v2018
        %v2359 = vpack.c.b16 %v2023, %v2019
        %v2360 = vpack.c.b16 %v2028, %v2024
        %v2361 = vpack.c.b16 %v2029, %v2025
        %v2362 = vpack.c.b16 %v2030, %v2026
        %v2363 = vpack.c.b16 %v2031, %v2027
        %v2364 = vpack.c.b16 %v2036, %v2032
        %v2365 = vpack.c.b16 %v2037, %v2033
        %v2366 = vpack.c.b16 %v2038, %v2034
        %v2367 = vpack.c.b16 %v2039, %v2035
        %v2368 = vpack.c.b16 %v2044, %v2040
        %v2369 = vpack.c.b16 %v2045, %v2041
        %v2370 = vpack.c.b16 %v2046, %v2042
        %v2371 = vpack.c.b16 %v2047, %v2043
        %v2372 = vpack.c.b16 %v2052, %v2048
        %v2373 = vpack.c.b16 %v2053, %v2049
        %v2374 = vpack.c.b16 %v2054, %v2050
        %v2375 = vpack.c.b16 %v2055, %v2051
        %v2376 = vpack.c.b16 %v2060, %v2056
        %v2377 = vpack.c.b16 %v2061, %v2057
        %v2378 = vpack.c.b16 %v2062, %v2058
        %v2379 = vpack.c.b16 %v2063, %v2059
        %v2380 = vpack.c.b16 %v2068, %v2064
        %v2381 = vpack.c.b16 %v2069, %v2065
        %v2382 = vpack.c.b16 %v2070, %v2066
        %v2383 = vpack.c.b16 %v2071, %v2067
        %v2384 = vpack.c.b16 %v2076, %v2072
        %v2385 = vpack.c.b16 %v2077, %v2073
        %v2386 = vpack.c.b16 %v2078, %v2074
        %v2387 = vpack.c.b16 %v2079, %v2075
        %v2388 = vpack.c.b16 %v2084, %v2080
        %v2389 = vpack.c.b16 %v2085, %v2081
        %v2390 = vpack.c.b16 %v2086, %v2082
        %v2391 = vpack.c.b16 %v2087, %v2083
        %v2392 = vpack.c.b16 %v2092, %v2088
        %v2393 = vpack.c.b16 %v2093, %v2089
        %v2394 = vpack.c.b16 %v2094, %v2090
        %v2395 = vpack.c.b16 %v2095, %v2091
        %v2396 = vpack.c.b16 %v2100, %v2096
        %v2397 = vpack.c.b16 %v2101, %v2097
        %v2398 = vpack.c.b16 %v2102, %v2098
        %v2399 = vpack.c.b16 %v2103, %v2099
        %v2400 = vpack.c.b16 %v2108, %v2104
        %v2401 = vpack.c.b16 %v2109, %v2105
        %v2402 = vpack.c.b16 %v2110, %v2106
        %v2403 = vpack.c.b16 %v2111, %v2107
        %v2404 = vpack.c.b16 %v2116, %v2112
        %v2405 = vpack.c.b16 %v2117, %v2113
        %v2406 = vpack.c.b16 %v2118, %v2114
        %v2407 = vpack.c.b16 %v2119, %v2115
        %v2408 = vpack.c.b16 %v2124, %v2120
        %v2409 = vpack.c.b16 %v2125, %v2121
        %v2410 = vpack.c.b16 %v2126, %v2122
        %v2411 = vpack.c.b16 %v2127, %v2123
        %v2412 = vpack.c.b16 %v2132, %v2128
        %v2413 = vpack.c.b16 %v2133, %v2129
        %v2414 = vpack.c.b16 %v2134, %v2130
        %v2415 = vpack.c.b16 %v2135, %v2131
        %v2416 = vpack.c.b16 %v2140, %v2136
        %v2417 = vpack.c.b16 %v2141, %v2137
        %v2418 = vpack.c.b16 %v2142, %v2138
        %v2419 = vpack.c.b16 %v2143, %v2139
        %v2420 = vpack.c.b16 %v2148, %v2144
        %v2421 = vpack.c.b16 %v2149, %v2145
        %v2422 = vpack.c.b16 %v2150, %v2146
        %v2423 = vpack.c.b16 %v2151, %v2147
        %v2424 = vpack.c.b16 %v2156, %v2152
        %v2425 = vpack.c.b16 %v2157, %v2153
        %v2426 = vpack.c.b16 %v2158, %v2154
        %v2427 = vpack.c.b16 %v2159, %v2155
        %v2428 = vpack.c.b16 %v2164, %v2160
        %v2429 = vpack.c.b16 %v2165, %v2161
        %v2430 = vpack.c.b16 %v2166, %v2162
        %v2431 = vpack.c.b16 %v2167, %v2163
        %v2432 = vpack.c.b16 %v2172, %v2168
        %v2433 = vpack.c.b16 %v2173, %v2169
        %v2434 = vpack.c.b16 %v2174, %v2170
        %v2435 = vpack.c.b16 %v2175, %v2171
        %v2436 = vpack.c.b16 %v2180, %v2176
        %v2437 = vpack.c.b16 %v2181, %v2177
        %v2438 = vpack.c.b16 %v2182, %v2178
        %v2439 = vpack.c.b16 %v2183, %v2179
        %2696 = vmatprep.subr.bf16.mxu0 %v2185
        %2697 = vmatpush1.bf16.msra.mxu0 %v2184
        %2698 = vmatprep.subr.bf16.mxu0 %v2189
        %2699 = vmatpush1.bf16.msra.mxu0 %v2188
        %2700 = vmatprep.subr.bf16.mxu0 %v2193
        %2701 = vmatpush1.bf16.msra.mxu0 %v2192
        %2702 = vmatprep.subr.bf16.mxu0 %v2197
        %2703 = vmatpush1.bf16.msra.mxu0 %v2196
        %2704 = vmatprep.subr.bf16.mxu0 %v2201
        %2705 = vmatpush1.bf16.msra.mxu0 %v2200
        %2706 = vmatprep.subr.bf16.mxu0 %v2205
        %2707 = vmatpush1.bf16.msra.mxu0 %v2204
        %2708 = vmatprep.subr.bf16.mxu0 %v2209
        %2709 = vmatpush1.bf16.msra.mxu0 %v2208
        %2710 = vmatprep.subr.bf16.mxu0 %v2213
        %2711 = vmatpush1.bf16.msra.mxu0 %v2212
        %2712 = vmatprep.subr.bf16.mxu0 %v2217
        %2713 = vmatpush1.bf16.msra.mxu0 %v2216
        %2714 = vmatprep.subr.bf16.mxu0 %v2221
        %2715 = vmatpush1.bf16.msra.mxu0 %v2220
        %2716 = vmatprep.subr.bf16.mxu0 %v2225
        %2717 = vmatpush1.bf16.msra.mxu0 %v2224
        %2718 = vmatprep.subr.bf16.mxu0 %v2229
        %2719 = vmatpush1.bf16.msra.mxu0 %v2228
        %2720 = vmatprep.subr.bf16.mxu0 %v2233
        %2721 = vmatpush1.bf16.msra.mxu0 %v2232
        %2722 = vmatprep.subr.bf16.mxu0 %v2237
        %2723 = vmatpush1.bf16.msra.mxu0 %v2236
        %2724 = vmatprep.subr.bf16.mxu0 %v2241
        %2725 = vmatpush1.bf16.msra.mxu0 %v2240
        %2726 = vmatprep.subr.bf16.mxu0 %v2245
        %2727 = vmatpush1.bf16.msra.mxu0 %v2244
        %2728 = vmatprep.mubr.bf16.mxu0 %v1161
        %2729 = vmatmul.mubr.bf16.gmra.mrb[0].mxu0 %v1160
        %v2730 = vpop.f32.mrb[0].mxu0
        %v2731 = vadd.f32 %v759, %v2730
        %v2732 = vpop.f32.mrb[0].mxu0
        %v2733 = vadd.f32 %v763, %v2732
        %v2734 = vpop.f32.mrb[0].mxu0
        %v2735 = vadd.f32 %v759, %v2734
        %v2736 = vpop.f32.mrb[0].mxu0
        %v2737 = vadd.f32 %v763, %v2736
        %2738 = vmatprep.mubr.bf16.mxu0 %v1169
        %2739 = vmatmul.mubr.bf16.gmra.mrb[0].mxu0 %v1168
        %v2740 = vpop.f32.mrb[0].mxu0
        %v2741 = vadd.f32 %v759, %v2740
        %v2742 = vpop.f32.mrb[0].mxu0
        %v2743 = vadd.f32 %v763, %v2742
        %v2744 = vpop.f32.mrb[0].mxu0
        %v2745 = vadd.f32 %v759, %v2744
        %v2746 = vpop.f32.mrb[0].mxu0
        %v2747 = vadd.f32 %v763, %v2746
        %2748 = vmatprep.mubr.bf16.mxu0 %v1177
        %2749 = vmatmul.mubr.bf16.gmra.mrb[0].mxu0 %v1176
        %v2750 = vpop.f32.mrb[0].mxu0
        %v2751 = vadd.f32 %v759, %v2750
        %v2752 = vpop.f32.mrb[0].mxu0
        %v2753 = vadd.f32 %v763, %v2752
        %v2754 = vpop.f32.mrb[0].mxu0
        %v2755 = vadd.f32 %v759, %v2754
        %v2756 = vpop.f32.mrb[0].mxu0
        %v2757 = vadd.f32 %v763, %v2756
        %2758 = vmatprep.mubr.bf16.mxu0 %v1185
        %2759 = vmatmul.mubr.bf16.gmra.mrb[0].mxu0 %v1184
        %v2760 = vpop.f32.mrb[0].mxu0
        %v2761 = vadd.f32 %v759, %v2760
        %v2762 = vpop.f32.mrb[0].mxu0
        %v2763 = vadd.f32 %v763, %v2762
        %v2764 = vpop.f32.mrb[0].mxu0
        %v2765 = vadd.f32 %v759, %v2764
        %v2766 = vpop.f32.mrb[0].mxu0
        %v2767 = vadd.f32 %v763, %v2766
        %2768 = vmatprep.mubr.bf16.mxu0 %v1193
        %2769 = vmatmul.mubr.bf16.gmra.mrb[0].mxu0 %v1192
        %v2770 = vpop.f32.mrb[0].mxu0
        %v2771 = vadd.f32 %v759, %v2770
        %v2772 = vpop.f32.mrb[0].mxu0
        %v2773 = vadd.f32 %v763, %v2772
        %v2774 = vpop.f32.mrb[0].mxu0
        %v2775 = vadd.f32 %v759, %v2774
        %v2776 = vpop.f32.mrb[0].mxu0
        %v2777 = vadd.f32 %v763, %v2776
        %2778 = vmatprep.mubr.bf16.mxu0 %v1201
        %2779 = vmatmul.mubr.bf16.gmra.mrb[0].mxu0 %v1200
        %v2780 = vpop.f32.mrb[0].mxu0
        %v2781 = vadd.f32 %v759, %v2780
        %v2782 = vpop.f32.mrb[0].mxu0
        %v2783 = vadd.f32 %v763, %v2782
        %v2784 = vpop.f32.mrb[0].mxu0
        %v2785 = vadd.f32 %v759, %v2784
        %v2786 = vpop.f32.mrb[0].mxu0
        %v2787 = vadd.f32 %v763, %v2786
        %2788 = vmatprep.mubr.bf16.mxu0 %v1209
        %2789 = vmatmul.mubr.bf16.gmra.mrb[0].mxu0 %v1208
        %v2790 = vpop.f32.mrb[0].mxu0
        %v2791 = vadd.f32 %v759, %v2790
        %v2792 = vpop.f32.mrb[0].mxu0
        %v2793 = vadd.f32 %v763, %v2792
        %v2794 = vpop.f32.mrb[0].mxu0
        %v2795 = vadd.f32 %v759, %v2794
        %v2796 = vpop.f32.mrb[0].mxu0
        %v2797 = vadd.f32 %v763, %v2796
        %2798 = vmatprep.mubr.bf16.mxu0 %v1217
        %2799 = vmatmul.mubr.bf16.gmra.mrb[0].mxu0 %v1216
        %v2800 = vpop.f32.mrb[0].mxu0
        %v2801 = vadd.f32 %v759, %v2800
        %v2802 = vpop.f32.mrb[0].mxu0
        %v2803 = vadd.f32 %v763, %v2802
        %v2804 = vpop.f32.mrb[0].mxu0
        %v2805 = vadd.f32 %v759, %v2804
        %v2806 = vpop.f32.mrb[0].mxu0
        %v2807 = vadd.f32 %v763, %v2806
        %2808 = vmatprep.mubr.bf16.mxu0 %v1225
        %2809 = vmatmul.mubr.bf16.gmra.mrb[0].mxu0 %v1224
        %v2810 = vpop.f32.mrb[0].mxu0
        %v2811 = vadd.f32 %v759, %v2810
        %v2812 = vpop.f32.mrb[0].mxu0
        %v2813 = vadd.f32 %v763, %v2812
        %v2814 = vpop.f32.mrb[0].mxu0
        %v2815 = vadd.f32 %v759, %v2814
        %v2816 = vpop.f32.mrb[0].mxu0
        %v2817 = vadd.f32 %v763, %v2816
        %2818 = vmatprep.mubr.bf16.mxu0 %v1233
        %2819 = vmatmul.mubr.bf16.gmra.mrb[0].mxu0 %v1232
        %v2820 = vpop.f32.mrb[0].mxu0
        %v2821 = vadd.f32 %v759, %v2820
        %v2822 = vpop.f32.mrb[0].mxu0
        %v2823 = vadd.f32 %v763, %v2822
        %v2824 = vpop.f32.mrb[0].mxu0
        %v2825 = vadd.f32 %v759, %v2824
        %v2826 = vpop.f32.mrb[0].mxu0
        %v2827 = vadd.f32 %v763, %v2826
        %2828 = vmatprep.mubr.bf16.mxu0 %v1241
        %2829 = vmatmul.mubr.bf16.gmra.mrb[0].mxu0 %v1240
        %v2830 = vpop.f32.mrb[0].mxu0
        %v2831 = vadd.f32 %v759, %v2830
        %v2832 = vpop.f32.mrb[0].mxu0
        %v2833 = vadd.f32 %v763, %v2832
        %v2834 = vpop.f32.mrb[0].mxu0
        %v2835 = vadd.f32 %v759, %v2834
        %v2836 = vpop.f32.mrb[0].mxu0
        %v2837 = vadd.f32 %v763, %v2836
        %2838 = vmatprep.mubr.bf16.mxu0 %v1249
        %2839 = vmatmul.mubr.bf16.gmra.mrb[0].mxu0 %v1248
        %v2840 = vpop.f32.mrb[0].mxu0
        %v2841 = vadd.f32 %v759, %v2840
        %v2842 = vpop.f32.mrb[0].mxu0
        %v2843 = vadd.f32 %v763, %v2842
        %v2844 = vpop.f32.mrb[0].mxu0
        %v2845 = vadd.f32 %v759, %v2844
        %v2846 = vpop.f32.mrb[0].mxu0
        %v2847 = vadd.f32 %v763, %v2846
        %2848 = vmatprep.mubr.bf16.mxu0 %v1257
        %2849 = vmatmul.mubr.bf16.gmra.mrb[0].mxu0 %v1256
        %v2850 = vpop.f32.mrb[0].mxu0
        %v2851 = vadd.f32 %v759, %v2850
        %v2852 = vpop.f32.mrb[0].mxu0
        %v2853 = vadd.f32 %v763, %v2852
        %v2854 = vpop.f32.mrb[0].mxu0
        %v2855 = vadd.f32 %v759, %v2854
        %v2856 = vpop.f32.mrb[0].mxu0
        %v2857 = vadd.f32 %v763, %v2856
        %2858 = vmatprep.mubr.bf16.mxu0 %v1265
        %2859 = vmatmul.mubr.bf16.gmra.mrb[0].mxu0 %v1264
        %v2860 = vpop.f32.mrb[0].mxu0
        %v2861 = vadd.f32 %v759, %v2860
        %v2862 = vpop.f32.mrb[0].mxu0
        %v2863 = vadd.f32 %v763, %v2862
        %v2864 = vpop.f32.mrb[0].mxu0
        %v2865 = vadd.f32 %v759, %v2864
        %v2866 = vpop.f32.mrb[0].mxu0
        %v2867 = vadd.f32 %v763, %v2866
        %2868 = vmatprep.mubr.bf16.mxu0 %v1273
        %2869 = vmatmul.mubr.bf16.gmra.mrb[0].mxu0 %v1272
        %v2870 = vpop.f32.mrb[0].mxu0
        %v2871 = vadd.f32 %v759, %v2870
        %v2872 = vpop.f32.mrb[0].mxu0
        %v2873 = vadd.f32 %v763, %v2872
        %v2874 = vpop.f32.mrb[0].mxu0
        %v2875 = vadd.f32 %v759, %v2874
        %v2876 = vpop.f32.mrb[0].mxu0
        %v2877 = vadd.f32 %v763, %v2876
        %2878 = vmatprep.mubr.bf16.mxu0 %v1281
        %2879 = vmatmul.mubr.bf16.gmra.mrb[0].mxu0 %v1280
        %v2880 = vpop.f32.mrb[0].mxu0
        %v2881 = vadd.f32 %v759, %v2880
        %v2882 = vpop.f32.mrb[0].mxu0
        %v2883 = vadd.f32 %v763, %v2882
        %v2884 = vpop.f32.mrb[0].mxu0
        %v2885 = vadd.f32 %v759, %v2884
        %v2886 = vpop.f32.mrb[0].mxu0
        %v2887 = vadd.f32 %v763, %v2886
        %2888 = vdwg.mxu0
        %2889 = vmatprep.subr.bf16.mxu0 %v2249
        %2890 = vmatpush1.bf16.msra.mxu0 %v2248
        %2891 = vmatprep.subr.bf16.mxu0 %v2253
        %2892 = vmatpush1.bf16.msra.mxu0 %v2252
        %2893 = vmatprep.subr.bf16.mxu0 %v2257
        %2894 = vmatpush1.bf16.msra.mxu0 %v2256
        %2895 = vmatprep.subr.bf16.mxu0 %v2261
        %2896 = vmatpush1.bf16.msra.mxu0 %v2260
        %2897 = vmatprep.subr.bf16.mxu0 %v2265
        %2898 = vmatpush1.bf16.msra.mxu0 %v2264
        %2899 = vmatprep.subr.bf16.mxu0 %v2269
        %2900 = vmatpush1.bf16.msra.mxu0 %v2268
        %2901 = vmatprep.subr.bf16.mxu0 %v2273
        %2902 = vmatpush1.bf16.msra.mxu0 %v2272
        %2903 = vmatprep.subr.bf16.mxu0 %v2277
        %2904 = vmatpush1.bf16.msra.mxu0 %v2276
        %2905 = vmatprep.subr.bf16.mxu0 %v2281
        %2906 = vmatpush1.bf16.msra.mxu0 %v2280
        %2907 = vmatprep.subr.bf16.mxu0 %v2285
        %2908 = vmatpush1.bf16.msra.mxu0 %v2284
        %2909 = vmatprep.subr.bf16.mxu0 %v2289
        %2910 = vmatpush1.bf16.msra.mxu0 %v2288
        %2911 = vmatprep.subr.bf16.mxu0 %v2293
        %2912 = vmatpush1.bf16.msra.mxu0 %v2292
        %2913 = vmatprep.subr.bf16.mxu0 %v2297
        %2914 = vmatpush1.bf16.msra.mxu0 %v2296
        %2915 = vmatprep.subr.bf16.mxu0 %v2301
        %2916 = vmatpush1.bf16.msra.mxu0 %v2300
        %2917 = vmatprep.subr.bf16.mxu0 %v2305
        %2918 = vmatpush1.bf16.msra.mxu0 %v2304
        %2919 = vmatprep.subr.bf16.mxu0 %v2309
        %2920 = vmatpush1.bf16.msra.mxu0 %v2308
        %2921 = vmatprep.mubr.bf16.mxu0 %v1163
        %2922 = vmatmul.mubr.bf16.gmra.mrb[0].mxu0 %v1162
        %v2923 = vpop.f32.mrb[0].mxu0
        %v2924 = vadd.f32 %v2731, %v2923
        %v2925 = vpop.f32.mrb[0].mxu0
        %v2926 = vadd.f32 %v2733, %v2925
        %v2927 = vpop.f32.mrb[0].mxu0
        %v2928 = vadd.f32 %v2735, %v2927
        %v2929 = vpop.f32.mrb[0].mxu0
        %v2930 = vadd.f32 %v2737, %v2929
        %2931 = vmatprep.mubr.bf16.mxu0 %v1171
        %2932 = vmatmul.mubr.bf16.gmra.mrb[0].mxu0 %v1170
        %v2933 = vpop.f32.mrb[0].mxu0
        %v2934 = vadd.f32 %v2741, %v2933
        %v2935 = vpop.f32.mrb[0].mxu0
        %v2936 = vadd.f32 %v2743, %v2935
        %v2937 = vpop.f32.mrb[0].mxu0
        %v2938 = vadd.f32 %v2745, %v2937
        %v2939 = vpop.f32.mrb[0].mxu0
        %v2940 = vadd.f32 %v2747, %v2939
        %2941 = vmatprep.mubr.bf16.mxu0 %v1179
        %2942 = vmatmul.mubr.bf16.gmra.mrb[0].mxu0 %v1178
        %v2943 = vpop.f32.mrb[0].mxu0
        %v2944 = vadd.f32 %v2751, %v2943
        %v2945 = vpop.f32.mrb[0].mxu0
        %v2946 = vadd.f32 %v2753, %v2945
        %v2947 = vpop.f32.mrb[0].mxu0
        %v2948 = vadd.f32 %v2755, %v2947
        %v2949 = vpop.f32.mrb[0].mxu0
        %v2950 = vadd.f32 %v2757, %v2949
        %2951 = vmatprep.mubr.bf16.mxu0 %v1187
        %2952 = vmatmul.mubr.bf16.gmra.mrb[0].mxu0 %v1186
        %v2953 = vpop.f32.mrb[0].mxu0
        %v2954 = vadd.f32 %v2761, %v2953
        %v2955 = vpop.f32.mrb[0].mxu0
        %v2956 = vadd.f32 %v2763, %v2955
        %v2957 = vpop.f32.mrb[0].mxu0
        %v2958 = vadd.f32 %v2765, %v2957
        %v2959 = vpop.f32.mrb[0].mxu0
        %v2960 = vadd.f32 %v2767, %v2959
        %2961 = vmatprep.mubr.bf16.mxu0 %v1195
        %2962 = vmatmul.mubr.bf16.gmra.mrb[0].mxu0 %v1194
        %v2963 = vpop.f32.mrb[0].mxu0
        %v2964 = vadd.f32 %v2771, %v2963
        %v2965 = vpop.f32.mrb[0].mxu0
        %v2966 = vadd.f32 %v2773, %v2965
        %v2967 = vpop.f32.mrb[0].mxu0
        %v2968 = vadd.f32 %v2775, %v2967
        %v2969 = vpop.f32.mrb[0].mxu0
        %v2970 = vadd.f32 %v2777, %v2969
        %2971 = vmatprep.mubr.bf16.mxu0 %v1203
        %2972 = vmatmul.mubr.bf16.gmra.mrb[0].mxu0 %v1202
        %v2973 = vpop.f32.mrb[0].mxu0
        %v2974 = vadd.f32 %v2781, %v2973
        %v2975 = vpop.f32.mrb[0].mxu0
        %v2976 = vadd.f32 %v2783, %v2975
        %v2977 = vpop.f32.mrb[0].mxu0
        %v2978 = vadd.f32 %v2785, %v2977
        %v2979 = vpop.f32.mrb[0].mxu0
        %v2980 = vadd.f32 %v2787, %v2979
        %2981 = vmatprep.mubr.bf16.mxu0 %v1211
        %2982 = vmatmul.mubr.bf16.gmra.mrb[0].mxu0 %v1210
        %v2983 = vpop.f32.mrb[0].mxu0
        %v2984 = vadd.f32 %v2791, %v2983
        %v2985 = vpop.f32.mrb[0].mxu0
        %v2986 = vadd.f32 %v2793, %v2985
        %v2987 = vpop.f32.mrb[0].mxu0
        %v2988 = vadd.f32 %v2795, %v2987
        %v2989 = vpop.f32.mrb[0].mxu0
        %v2990 = vadd.f32 %v2797, %v2989
        %2991 = vmatprep.mubr.bf16.mxu0 %v1219
        %2992 = vmatmul.mubr.bf16.gmra.mrb[0].mxu0 %v1218
        %v2993 = vpop.f32.mrb[0].mxu0
        %v2994 = vadd.f32 %v2801, %v2993
        %v2995 = vpop.f32.mrb[0].mxu0
        %v2996 = vadd.f32 %v2803, %v2995
        %v2997 = vpop.f32.mrb[0].mxu0
        %v2998 = vadd.f32 %v2805, %v2997
        %v2999 = vpop.f32.mrb[0].mxu0
        %v3000 = vadd.f32 %v2807, %v2999
        %3001 = vmatprep.mubr.bf16.mxu0 %v1227
        %3002 = vmatmul.mubr.bf16.gmra.mrb[0].mxu0 %v1226
        %v3003 = vpop.f32.mrb[0].mxu0
        %v3004 = vadd.f32 %v2811, %v3003
        %v3005 = vpop.f32.mrb[0].mxu0
        %v3006 = vadd.f32 %v2813, %v3005
        %v3007 = vpop.f32.mrb[0].mxu0
        %v3008 = vadd.f32 %v2815, %v3007
        %v3009 = vpop.f32.mrb[0].mxu0
        %v3010 = vadd.f32 %v2817, %v3009
        %3011 = vmatprep.mubr.bf16.mxu0 %v1235
        %3012 = vmatmul.mubr.bf16.gmra.mrb[0].mxu0 %v1234
        %v3013 = vpop.f32.mrb[0].mxu0
        %v3014 = vadd.f32 %v2821, %v3013
        %v3015 = vpop.f32.mrb[0].mxu0
        %v3016 = vadd.f32 %v2823, %v3015
        %v3017 = vpop.f32.mrb[0].mxu0
        %v3018 = vadd.f32 %v2825, %v3017
        %v3019 = vpop.f32.mrb[0].mxu0
        %v3020 = vadd.f32 %v2827, %v3019
        %3021 = vmatprep.mubr.bf16.mxu0 %v1243
        %3022 = vmatmul.mubr.bf16.gmra.mrb[0].mxu0 %v1242
        %v3023 = vpop.f32.mrb[0].mxu0
        %v3024 = vadd.f32 %v2831, %v3023
        %v3025 = vpop.f32.mrb[0].mxu0
        %v3026 = vadd.f32 %v2833, %v3025
        %v3027 = vpop.f32.mrb[0].mxu0
        %v3028 = vadd.f32 %v2835, %v3027
        %v3029 = vpop.f32.mrb[0].mxu0
        %v3030 = vadd.f32 %v2837, %v3029
        %3031 = vmatprep.mubr.bf16.mxu0 %v1251
        %3032 = vmatmul.mubr.bf16.gmra.mrb[0].mxu0 %v1250
        %v3033 = vpop.f32.mrb[0].mxu0
        %v3034 = vadd.f32 %v2841, %v3033
        %v3035 = vpop.f32.mrb[0].mxu0
        %v3036 = vadd.f32 %v2843, %v3035
        %v3037 = vpop.f32.mrb[0].mxu0
        %v3038 = vadd.f32 %v2845, %v3037
        %v3039 = vpop.f32.mrb[0].mxu0
        %v3040 = vadd.f32 %v2847, %v3039
        %3041 = vmatprep.mubr.bf16.mxu0 %v1259
        %3042 = vmatmul.mubr.bf16.gmra.mrb[0].mxu0 %v1258
        %v3043 = vpop.f32.mrb[0].mxu0
        %v3044 = vadd.f32 %v2851, %v3043
        %v3045 = vpop.f32.mrb[0].mxu0
        %v3046 = vadd.f32 %v2853, %v3045
        %v3047 = vpop.f32.mrb[0].mxu0
        %v3048 = vadd.f32 %v2855, %v3047
        %v3049 = vpop.f32.mrb[0].mxu0
        %v3050 = vadd.f32 %v2857, %v3049
        %3051 = vmatprep.mubr.bf16.mxu0 %v1267
        %3052 = vmatmul.mubr.bf16.gmra.mrb[0].mxu0 %v1266
        %v3053 = vpop.f32.mrb[0].mxu0
        %v3054 = vadd.f32 %v2861, %v3053
        %v3055 = vpop.f32.mrb[0].mxu0
        %v3056 = vadd.f32 %v2863, %v3055
        %v3057 = vpop.f32.mrb[0].mxu0
        %v3058 = vadd.f32 %v2865, %v3057
        %v3059 = vpop.f32.mrb[0].mxu0
        %v3060 = vadd.f32 %v2867, %v3059
        %3061 = vmatprep.mubr.bf16.mxu0 %v1275
        %3062 = vmatmul.mubr.bf16.gmra.mrb[0].mxu0 %v1274
        %v3063 = vpop.f32.mrb[0].mxu0
        %v3064 = vadd.f32 %v2871, %v3063
        %v3065 = vpop.f32.mrb[0].mxu0
        %v3066 = vadd.f32 %v2873, %v3065
        %v3067 = vpop.f32.mrb[0].mxu0
        %v3068 = vadd.f32 %v2875, %v3067
        %v3069 = vpop.f32.mrb[0].mxu0
        %v3070 = vadd.f32 %v2877, %v3069
        %3071 = vmatprep.mubr.bf16.mxu0 %v1283
        %3072 = vmatmul.mubr.bf16.gmra.mrb[0].mxu0 %v1282
        %v3073 = vpop.f32.mrb[0].mxu0
        %v3074 = vadd.f32 %v2881, %v3073
        %v3075 = vpop.f32.mrb[0].mxu0
        %v3076 = vadd.f32 %v2883, %v3075
        %v3077 = vpop.f32.mrb[0].mxu0
        %v3078 = vadd.f32 %v2885, %v3077
        %v3079 = vpop.f32.mrb[0].mxu0
        %v3080 = vadd.f32 %v2887, %v3079
        %3081 = vdwg.mxu0
        %3082 = vmatprep.subr.bf16.mxu0 %v2313
        %3083 = vmatpush1.bf16.msra.mxu0 %v2312
        %3084 = vmatprep.subr.bf16.mxu0 %v2317
        %3085 = vmatpush1.bf16.msra.mxu0 %v2316
        %3086 = vmatprep.subr.bf16.mxu0 %v2321
        %3087 = vmatpush1.bf16.msra.mxu0 %v2320
        %3088 = vmatprep.subr.bf16.mxu0 %v2325
        %3089 = vmatpush1.bf16.msra.mxu0 %v2324
        %3090 = vmatprep.subr.bf16.mxu0 %v2329
        %3091 = vmatpush1.bf16.msra.mxu0 %v2328
        %3092 = vmatprep.subr.bf16.mxu0 %v2333
        %3093 = vmatpush1.bf16.msra.mxu0 %v2332
        %3094 = vmatprep.subr.bf16.mxu0 %v2337
        %3095 = vmatpush1.bf16.msra.mxu0 %v2336
        %3096 = vmatprep.subr.bf16.mxu0 %v2341
        %3097 = vmatpush1.bf16.msra.mxu0 %v2340
        %3098 = vmatprep.subr.bf16.mxu0 %v2345
        %3099 = vmatpush1.bf16.msra.mxu0 %v2344
        %3100 = vmatprep.subr.bf16.mxu0 %v2349
        %3101 = vmatpush1.bf16.msra.mxu0 %v2348
        %3102 = vmatprep.subr.bf16.mxu0 %v2353
        %3103 = vmatpush1.bf16.msra.mxu0 %v2352
        %3104 = vmatprep.subr.bf16.mxu0 %v2357
        %3105 = vmatpush1.bf16.msra.mxu0 %v2356
        %3106 = vmatprep.subr.bf16.mxu0 %v2361
        %3107 = vmatpush1.bf16.msra.mxu0 %v2360
        %3108 = vmatprep.subr.bf16.mxu0 %v2365
        %3109 = vmatpush1.bf16.msra.mxu0 %v2364
        %3110 = vmatprep.subr.bf16.mxu0 %v2369
        %3111 = vmatpush1.bf16.msra.mxu0 %v2368
        %3112 = vmatprep.subr.bf16.mxu0 %v2373
        %3113 = vmatpush1.bf16.msra.mxu0 %v2372
        %3114 = vmatprep.mubr.bf16.mxu0 %v1165
        %3115 = vmatmul.mubr.bf16.gmra.mrb[0].mxu0 %v1164
        %v3116 = vpop.f32.mrb[0].mxu0
        %v3117 = vadd.f32 %v2924, %v3116
        %v3118 = vpop.f32.mrb[0].mxu0
        %v3119 = vadd.f32 %v2926, %v3118
        %v3120 = vpop.f32.mrb[0].mxu0
        %v3121 = vadd.f32 %v2928, %v3120
        %v3122 = vpop.f32.mrb[0].mxu0
        %v3123 = vadd.f32 %v2930, %v3122
        %3124 = vmatprep.mubr.bf16.mxu0 %v1173
        %3125 = vmatmul.mubr.bf16.gmra.mrb[0].mxu0 %v1172
        %v3126 = vpop.f32.mrb[0].mxu0
        %v3127 = vadd.f32 %v2934, %v3126
        %v3128 = vpop.f32.mrb[0].mxu0
        %v3129 = vadd.f32 %v2936, %v3128
        %v3130 = vpop.f32.mrb[0].mxu0
        %v3131 = vadd.f32 %v2938, %v3130
        %v3132 = vpop.f32.mrb[0].mxu0
        %v3133 = vadd.f32 %v2940, %v3132
        %3134 = vmatprep.mubr.bf16.mxu0 %v1181
        %3135 = vmatmul.mubr.bf16.gmra.mrb[0].mxu0 %v1180
        %v3136 = vpop.f32.mrb[0].mxu0
        %v3137 = vadd.f32 %v2944, %v3136
        %v3138 = vpop.f32.mrb[0].mxu0
        %v3139 = vadd.f32 %v2946, %v3138
        %v3140 = vpop.f32.mrb[0].mxu0
        %v3141 = vadd.f32 %v2948, %v3140
        %v3142 = vpop.f32.mrb[0].mxu0
        %v3143 = vadd.f32 %v2950, %v3142
        %3144 = vmatprep.mubr.bf16.mxu0 %v1189
        %3145 = vmatmul.mubr.bf16.gmra.mrb[0].mxu0 %v1188
        %v3146 = vpop.f32.mrb[0].mxu0
        %v3147 = vadd.f32 %v2954, %v3146
        %v3148 = vpop.f32.mrb[0].mxu0
        %v3149 = vadd.f32 %v2956, %v3148
        %v3150 = vpop.f32.mrb[0].mxu0
        %v3151 = vadd.f32 %v2958, %v3150
        %v3152 = vpop.f32.mrb[0].mxu0
        %v3153 = vadd.f32 %v2960, %v3152
        %3154 = vmatprep.mubr.bf16.mxu0 %v1197
        %3155 = vmatmul.mubr.bf16.gmra.mrb[0].mxu0 %v1196
        %v3156 = vpop.f32.mrb[0].mxu0
        %v3157 = vadd.f32 %v2964, %v3156
        %v3158 = vpop.f32.mrb[0].mxu0
        %v3159 = vadd.f32 %v2966, %v3158
        %v3160 = vpop.f32.mrb[0].mxu0
        %v3161 = vadd.f32 %v2968, %v3160
        %v3162 = vpop.f32.mrb[0].mxu0
        %v3163 = vadd.f32 %v2970, %v3162
        %3164 = vmatprep.mubr.bf16.mxu0 %v1205
        %3165 = vmatmul.mubr.bf16.gmra.mrb[0].mxu0 %v1204
        %v3166 = vpop.f32.mrb[0].mxu0
        %v3167 = vadd.f32 %v2974, %v3166
        %v3168 = vpop.f32.mrb[0].mxu0
        %v3169 = vadd.f32 %v2976, %v3168
        %v3170 = vpop.f32.mrb[0].mxu0
        %v3171 = vadd.f32 %v2978, %v3170
        %v3172 = vpop.f32.mrb[0].mxu0
        %v3173 = vadd.f32 %v2980, %v3172
        %3174 = vmatprep.mubr.bf16.mxu0 %v1213
        %3175 = vmatmul.mubr.bf16.gmra.mrb[0].mxu0 %v1212
        %v3176 = vpop.f32.mrb[0].mxu0
        %v3177 = vadd.f32 %v2984, %v3176
        %v3178 = vpop.f32.mrb[0].mxu0
        %v3179 = vadd.f32 %v2986, %v3178
        %v3180 = vpop.f32.mrb[0].mxu0
        %v3181 = vadd.f32 %v2988, %v3180
        %v3182 = vpop.f32.mrb[0].mxu0
        %v3183 = vadd.f32 %v2990, %v3182
        %3184 = vmatprep.mubr.bf16.mxu0 %v1221
        %3185 = vmatmul.mubr.bf16.gmra.mrb[0].mxu0 %v1220
        %v3186 = vpop.f32.mrb[0].mxu0
        %v3187 = vadd.f32 %v2994, %v3186
        %v3188 = vpop.f32.mrb[0].mxu0
        %v3189 = vadd.f32 %v2996, %v3188
        %v3190 = vpop.f32.mrb[0].mxu0
        %v3191 = vadd.f32 %v2998, %v3190
        %v3192 = vpop.f32.mrb[0].mxu0
        %v3193 = vadd.f32 %v3000, %v3192
        %3194 = vmatprep.mubr.bf16.mxu0 %v1229
        %3195 = vmatmul.mubr.bf16.gmra.mrb[0].mxu0 %v1228
        %v3196 = vpop.f32.mrb[0].mxu0
        %v3197 = vadd.f32 %v3004, %v3196
        %v3198 = vpop.f32.mrb[0].mxu0
        %v3199 = vadd.f32 %v3006, %v3198
        %v3200 = vpop.f32.mrb[0].mxu0
        %v3201 = vadd.f32 %v3008, %v3200
        %v3202 = vpop.f32.mrb[0].mxu0
        %v3203 = vadd.f32 %v3010, %v3202
        %3204 = vmatprep.mubr.bf16.mxu0 %v1237
        %3205 = vmatmul.mubr.bf16.gmra.mrb[0].mxu0 %v1236
        %v3206 = vpop.f32.mrb[0].mxu0
        %v3207 = vadd.f32 %v3014, %v3206
        %v3208 = vpop.f32.mrb[0].mxu0
        %v3209 = vadd.f32 %v3016, %v3208
        %v3210 = vpop.f32.mrb[0].mxu0
        %v3211 = vadd.f32 %v3018, %v3210
        %v3212 = vpop.f32.mrb[0].mxu0
        %v3213 = vadd.f32 %v3020, %v3212
        %3214 = vmatprep.mubr.bf16.mxu0 %v1245
        %3215 = vmatmul.mubr.bf16.gmra.mrb[0].mxu0 %v1244
        %v3216 = vpop.f32.mrb[0].mxu0
        %v3217 = vadd.f32 %v3024, %v3216
        %v3218 = vpop.f32.mrb[0].mxu0
        %v3219 = vadd.f32 %v3026, %v3218
        %v3220 = vpop.f32.mrb[0].mxu0
        %v3221 = vadd.f32 %v3028, %v3220
        %v3222 = vpop.f32.mrb[0].mxu0
        %v3223 = vadd.f32 %v3030, %v3222
        %3224 = vmatprep.mubr.bf16.mxu0 %v1253
        %3225 = vmatmul.mubr.bf16.gmra.mrb[0].mxu0 %v1252
        %v3226 = vpop.f32.mrb[0].mxu0
        %v3227 = vadd.f32 %v3034, %v3226
        %v3228 = vpop.f32.mrb[0].mxu0
        %v3229 = vadd.f32 %v3036, %v3228
        %v3230 = vpop.f32.mrb[0].mxu0
        %v3231 = vadd.f32 %v3038, %v3230
        %v3232 = vpop.f32.mrb[0].mxu0
        %v3233 = vadd.f32 %v3040, %v3232
        %3234 = vmatprep.mubr.bf16.mxu0 %v1261
        %3235 = vmatmul.mubr.bf16.gmra.mrb[0].mxu0 %v1260
        %v3236 = vpop.f32.mrb[0].mxu0
        %v3237 = vadd.f32 %v3044, %v3236
        %v3238 = vpop.f32.mrb[0].mxu0
        %v3239 = vadd.f32 %v3046, %v3238
        %v3240 = vpop.f32.mrb[0].mxu0
        %v3241 = vadd.f32 %v3048, %v3240
        %v3242 = vpop.f32.mrb[0].mxu0
        %v3243 = vadd.f32 %v3050, %v3242
        %3244 = vmatprep.mubr.bf16.mxu0 %v1269
        %3245 = vmatmul.mubr.bf16.gmra.mrb[0].mxu0 %v1268
        %v3246 = vpop.f32.mrb[0].mxu0
        %v3247 = vadd.f32 %v3054, %v3246
        %v3248 = vpop.f32.mrb[0].mxu0
        %v3249 = vadd.f32 %v3056, %v3248
        %v3250 = vpop.f32.mrb[0].mxu0
        %v3251 = vadd.f32 %v3058, %v3250
        %v3252 = vpop.f32.mrb[0].mxu0
        %v3253 = vadd.f32 %v3060, %v3252
        %3254 = vmatprep.mubr.bf16.mxu0 %v1277
        %3255 = vmatmul.mubr.bf16.gmra.mrb[0].mxu0 %v1276
        %v3256 = vpop.f32.mrb[0].mxu0
        %v3257 = vadd.f32 %v3064, %v3256
        %v3258 = vpop.f32.mrb[0].mxu0
        %v3259 = vadd.f32 %v3066, %v3258
        %v3260 = vpop.f32.mrb[0].mxu0
        %v3261 = vadd.f32 %v3068, %v3260
        %v3262 = vpop.f32.mrb[0].mxu0
        %v3263 = vadd.f32 %v3070, %v3262
        %3264 = vmatprep.mubr.bf16.mxu0 %v1285
        %3265 = vmatmul.mubr.bf16.gmra.mrb[0].mxu0 %v1284
        %v3266 = vpop.f32.mrb[0].mxu0
        %v3267 = vadd.f32 %v3074, %v3266
        %v3268 = vpop.f32.mrb[0].mxu0
        %v3269 = vadd.f32 %v3076, %v3268
        %v3270 = vpop.f32.mrb[0].mxu0
        %v3271 = vadd.f32 %v3078, %v3270
        %v3272 = vpop.f32.mrb[0].mxu0
        %v3273 = vadd.f32 %v3080, %v3272
        %3274 = vdwg.mxu0
        %3275 = vmatprep.subr.bf16.mxu0 %v2377
        %3276 = vmatpush1.bf16.msra.mxu0 %v2376
        %3277 = vmatprep.subr.bf16.mxu0 %v2381
        %3278 = vmatpush1.bf16.msra.mxu0 %v2380
        %3279 = vmatprep.subr.bf16.mxu0 %v2385
        %3280 = vmatpush1.bf16.msra.mxu0 %v2384
        %3281 = vmatprep.subr.bf16.mxu0 %v2389
        %3282 = vmatpush1.bf16.msra.mxu0 %v2388
        %3283 = vmatprep.subr.bf16.mxu0 %v2393
        %3284 = vmatpush1.bf16.msra.mxu0 %v2392
        %3285 = vmatprep.subr.bf16.mxu0 %v2397
        %3286 = vmatpush1.bf16.msra.mxu0 %v2396
        %3287 = vmatprep.subr.bf16.mxu0 %v2401
        %3288 = vmatpush1.bf16.msra.mxu0 %v2400
        %3289 = vmatprep.subr.bf16.mxu0 %v2405
        %3290 = vmatpush1.bf16.msra.mxu0 %v2404
        %3291 = vmatprep.subr.bf16.mxu0 %v2409
        %3292 = vmatpush1.bf16.msra.mxu0 %v2408
        %3293 = vmatprep.subr.bf16.mxu0 %v2413
        %3294 = vmatpush1.bf16.msra.mxu0 %v2412
        %3295 = vmatprep.subr.bf16.mxu0 %v2417
        %3296 = vmatpush1.bf16.msra.mxu0 %v2416
        %3297 = vmatprep.subr.bf16.mxu0 %v2421
        %3298 = vmatpush1.bf16.msra.mxu0 %v2420
        %3299 = vmatprep.subr.bf16.mxu0 %v2425
        %3300 = vmatpush1.bf16.msra.mxu0 %v2424
        %3301 = vmatprep.subr.bf16.mxu0 %v2429
        %3302 = vmatpush1.bf16.msra.mxu0 %v2428
        %3303 = vmatprep.subr.bf16.mxu0 %v2433
        %3304 = vmatpush1.bf16.msra.mxu0 %v2432
        %3305 = vmatprep.subr.bf16.mxu0 %v2437
        %3306 = vmatpush1.bf16.msra.mxu0 %v2436
        %3307 = vmatprep.mubr.bf16.mxu0 %v1167
        %3308 = vmatmul.mubr.bf16.gmra.mrb[0].mxu0 %v1166
        %v3309 = vpop.f32.mrb[0].mxu0
        %v3310 = vadd.f32 %v3117, %v3309
        %v3311 = vpop.f32.mrb[0].mxu0
        %v3312 = vadd.f32 %v3119, %v3311
        %v3313 = vpop.f32.mrb[0].mxu0
        %v3314 = vadd.f32 %v3121, %v3313
        %v3315 = vpop.f32.mrb[0].mxu0
        %v3316 = vadd.f32 %v3123, %v3315
        %3317 = vmatprep.mubr.bf16.mxu0 %v1175
        %3318 = vmatmul.mubr.bf16.gmra.mrb[0].mxu0 %v1174
        %v3319 = vpop.f32.mrb[0].mxu0
        %v3320 = vadd.f32 %v3127, %v3319
        %v3321 = vpop.f32.mrb[0].mxu0
        %v3322 = vadd.f32 %v3129, %v3321
        %v3323 = vpop.f32.mrb[0].mxu0
        %v3324 = vadd.f32 %v3131, %v3323
        %v3325 = vpop.f32.mrb[0].mxu0
        %v3326 = vadd.f32 %v3133, %v3325
        %3327 = vmatprep.mubr.bf16.mxu0 %v1183
        %3328 = vmatmul.mubr.bf16.gmra.mrb[0].mxu0 %v1182
        %v3329 = vpop.f32.mrb[0].mxu0
        %v3330 = vadd.f32 %v3137, %v3329
        %v3331 = vpop.f32.mrb[0].mxu0
        %v3332 = vadd.f32 %v3139, %v3331
        %v3333 = vpop.f32.mrb[0].mxu0
        %v3334 = vadd.f32 %v3141, %v3333
        %v3335 = vpop.f32.mrb[0].mxu0
        %v3336 = vadd.f32 %v3143, %v3335
        %3337 = vmatprep.mubr.bf16.mxu0 %v1191
        %3338 = vmatmul.mubr.bf16.gmra.mrb[0].mxu0 %v1190
        %v3339 = vpop.f32.mrb[0].mxu0
        %v3340 = vadd.f32 %v3147, %v3339
        %v3341 = vpop.f32.mrb[0].mxu0
        %v3342 = vadd.f32 %v3149, %v3341
        %v3343 = vpop.f32.mrb[0].mxu0
        %v3344 = vadd.f32 %v3151, %v3343
        %v3345 = vpop.f32.mrb[0].mxu0
        %v3346 = vadd.f32 %v3153, %v3345
        %3347 = vmatprep.mubr.bf16.mxu0 %v1199
        %3348 = vmatmul.mubr.bf16.gmra.mrb[0].mxu0 %v1198
        %v3349 = vpop.f32.mrb[0].mxu0
        %v3350 = vadd.f32 %v3157, %v3349
        %v3351 = vpop.f32.mrb[0].mxu0
        %v3352 = vadd.f32 %v3159, %v3351
        %v3353 = vpop.f32.mrb[0].mxu0
        %v3354 = vadd.f32 %v3161, %v3353
        %v3355 = vpop.f32.mrb[0].mxu0
        %v3356 = vadd.f32 %v3163, %v3355
        %3357 = vmatprep.mubr.bf16.mxu0 %v1207
        %3358 = vmatmul.mubr.bf16.gmra.mrb[0].mxu0 %v1206
        %v3359 = vpop.f32.mrb[0].mxu0
        %v3360 = vadd.f32 %v3167, %v3359
        %v3361 = vpop.f32.mrb[0].mxu0
        %v3362 = vadd.f32 %v3169, %v3361
        %v3363 = vpop.f32.mrb[0].mxu0
        %v3364 = vadd.f32 %v3171, %v3363
        %v3365 = vpop.f32.mrb[0].mxu0
        %v3366 = vadd.f32 %v3173, %v3365
        %3367 = vmatprep.mubr.bf16.mxu0 %v1215
        %3368 = vmatmul.mubr.bf16.gmra.mrb[0].mxu0 %v1214
        %v3369 = vpop.f32.mrb[0].mxu0
        %v3370 = vadd.f32 %v3177, %v3369
        %v3371 = vpop.f32.mrb[0].mxu0
        %v3372 = vadd.f32 %v3179, %v3371
        %v3373 = vpop.f32.mrb[0].mxu0
        %v3374 = vadd.f32 %v3181, %v3373
        %v3375 = vpop.f32.mrb[0].mxu0
        %v3376 = vadd.f32 %v3183, %v3375
        %3377 = vmatprep.mubr.bf16.mxu0 %v1223
        %3378 = vmatmul.mubr.bf16.gmra.mrb[0].mxu0 %v1222
        %v3379 = vpop.f32.mrb[0].mxu0
        %v3380 = vadd.f32 %v3187, %v3379
        %v3381 = vpop.f32.mrb[0].mxu0
        %v3382 = vadd.f32 %v3189, %v3381
        %v3383 = vpop.f32.mrb[0].mxu0
        %v3384 = vadd.f32 %v3191, %v3383
        %v3385 = vpop.f32.mrb[0].mxu0
        %v3386 = vadd.f32 %v3193, %v3385
        %3387 = vmatprep.mubr.bf16.mxu0 %v1231
        %3388 = vmatmul.mubr.bf16.gmra.mrb[0].mxu0 %v1230
        %v3389 = vpop.f32.mrb[0].mxu0
        %v3390 = vadd.f32 %v3197, %v3389
        %v3391 = vpop.f32.mrb[0].mxu0
        %v3392 = vadd.f32 %v3199, %v3391
        %v3393 = vpop.f32.mrb[0].mxu0
        %v3394 = vadd.f32 %v3201, %v3393
        %v3395 = vpop.f32.mrb[0].mxu0
        %v3396 = vadd.f32 %v3203, %v3395
        %3397 = vmatprep.mubr.bf16.mxu0 %v1239
        %3398 = vmatmul.mubr.bf16.gmra.mrb[0].mxu0 %v1238
        %v3399 = vpop.f32.mrb[0].mxu0
        %v3400 = vadd.f32 %v3207, %v3399
        %v3401 = vpop.f32.mrb[0].mxu0
        %v3402 = vadd.f32 %v3209, %v3401
        %v3403 = vpop.f32.mrb[0].mxu0
        %v3404 = vadd.f32 %v3211, %v3403
        %v3405 = vpop.f32.mrb[0].mxu0
        %v3406 = vadd.f32 %v3213, %v3405
        %3407 = vmatprep.mubr.bf16.mxu0 %v1247
        %3408 = vmatmul.mubr.bf16.gmra.mrb[0].mxu0 %v1246
        %v3409 = vpop.f32.mrb[0].mxu0
        %v3410 = vadd.f32 %v3217, %v3409
        %v3411 = vpop.f32.mrb[0].mxu0
        %v3412 = vadd.f32 %v3219, %v3411
        %v3413 = vpop.f32.mrb[0].mxu0
        %v3414 = vadd.f32 %v3221, %v3413
        %v3415 = vpop.f32.mrb[0].mxu0
        %v3416 = vadd.f32 %v3223, %v3415
        %3417 = vmatprep.mubr.bf16.mxu0 %v1255
        %3418 = vmatmul.mubr.bf16.gmra.mrb[0].mxu0 %v1254
        %v3419 = vpop.f32.mrb[0].mxu0
        %v3420 = vadd.f32 %v3227, %v3419
        %v3421 = vpop.f32.mrb[0].mxu0
        %v3422 = vadd.f32 %v3229, %v3421
        %v3423 = vpop.f32.mrb[0].mxu0
        %v3424 = vadd.f32 %v3231, %v3423
        %v3425 = vpop.f32.mrb[0].mxu0
        %v3426 = vadd.f32 %v3233, %v3425
        %3427 = vmatprep.mubr.bf16.mxu0 %v1263
        %3428 = vmatmul.mubr.bf16.gmra.mrb[0].mxu0 %v1262
        %v3429 = vpop.f32.mrb[0].mxu0
        %v3430 = vadd.f32 %v3237, %v3429
        %v3431 = vpop.f32.mrb[0].mxu0
        %v3432 = vadd.f32 %v3239, %v3431
        %v3433 = vpop.f32.mrb[0].mxu0
        %v3434 = vadd.f32 %v3241, %v3433
        %v3435 = vpop.f32.mrb[0].mxu0
        %v3436 = vadd.f32 %v3243, %v3435
        %3437 = vmatprep.mubr.bf16.mxu0 %v1271
        %3438 = vmatmul.mubr.bf16.gmra.mrb[0].mxu0 %v1270
        %v3439 = vpop.f32.mrb[0].mxu0
        %v3440 = vadd.f32 %v3247, %v3439
        %v3441 = vpop.f32.mrb[0].mxu0
        %v3442 = vadd.f32 %v3249, %v3441
        %v3443 = vpop.f32.mrb[0].mxu0
        %v3444 = vadd.f32 %v3251, %v3443
        %v3445 = vpop.f32.mrb[0].mxu0
        %v3446 = vadd.f32 %v3253, %v3445
        %3447 = vmatprep.mubr.bf16.mxu0 %v1279
        %3448 = vmatmul.mubr.bf16.gmra.mrb[0].mxu0 %v1278
        %v3449 = vpop.f32.mrb[0].mxu0
        %v3450 = vadd.f32 %v3257, %v3449
        %v3451 = vpop.f32.mrb[0].mxu0
        %v3452 = vadd.f32 %v3259, %v3451
        %v3453 = vpop.f32.mrb[0].mxu0
        %v3454 = vadd.f32 %v3261, %v3453
        %v3455 = vpop.f32.mrb[0].mxu0
        %v3456 = vadd.f32 %v3263, %v3455
        %3457 = vmatprep.mubr.bf16.mxu0 %v1287
        %3458 = vmatmul.mubr.bf16.gmra.mrb[0].mxu0 %v1286
        %v3459 = vpop.f32.mrb[0].mxu0
        %v3460 = vadd.f32 %v3267, %v3459
        %v3461 = vpop.f32.mrb[0].mxu0
        %v3462 = vadd.f32 %v3269, %v3461
        %v3463 = vpop.f32.mrb[0].mxu0
        %v3464 = vadd.f32 %v3271, %v3463
        %v3465 = vpop.f32.mrb[0].mxu0
        %v3466 = vadd.f32 %v3273, %v3465
        %3467 = vdwg.mxu0
        %3468 = vmatprep.subr.bf16.mxu0 %v2187
        %3469 = vmatpush1.bf16.msra.mxu0 %v2186
        %3470 = vmatprep.subr.bf16.mxu0 %v2191
        %3471 = vmatpush1.bf16.msra.mxu0 %v2190
        %3472 = vmatprep.subr.bf16.mxu0 %v2195
        %3473 = vmatpush1.bf16.msra.mxu0 %v2194
        %3474 = vmatprep.subr.bf16.mxu0 %v2199
        %3475 = vmatpush1.bf16.msra.mxu0 %v2198
        %3476 = vmatprep.subr.bf16.mxu0 %v2203
        %3477 = vmatpush1.bf16.msra.mxu0 %v2202
        %3478 = vmatprep.subr.bf16.mxu0 %v2207
        %3479 = vmatpush1.bf16.msra.mxu0 %v2206
        %3480 = vmatprep.subr.bf16.mxu0 %v2211
        %3481 = vmatpush1.bf16.msra.mxu0 %v2210
        %3482 = vmatprep.subr.bf16.mxu0 %v2215
        %3483 = vmatpush1.bf16.msra.mxu0 %v2214
        %3484 = vmatprep.subr.bf16.mxu0 %v2219
        %3485 = vmatpush1.bf16.msra.mxu0 %v2218
        %3486 = vmatprep.subr.bf16.mxu0 %v2223
        %3487 = vmatpush1.bf16.msra.mxu0 %v2222
        %3488 = vmatprep.subr.bf16.mxu0 %v2227
        %3489 = vmatpush1.bf16.msra.mxu0 %v2226
        %3490 = vmatprep.subr.bf16.mxu0 %v2231
        %3491 = vmatpush1.bf16.msra.mxu0 %v2230
        %3492 = vmatprep.subr.bf16.mxu0 %v2235
        %3493 = vmatpush1.bf16.msra.mxu0 %v2234
        %3494 = vmatprep.subr.bf16.mxu0 %v2239
        %3495 = vmatpush1.bf16.msra.mxu0 %v2238
        %3496 = vmatprep.subr.bf16.mxu0 %v2243
        %3497 = vmatpush1.bf16.msra.mxu0 %v2242
        %3498 = vmatprep.subr.bf16.mxu0 %v2247
        %3499 = vmatpush1.bf16.msra.mxu0 %v2246
        %3500 = vmatprep.mubr.bf16.mxu0 %v1161
        %3501 = vmatmul.mubr.bf16.gmra.mrb[0].mxu0 %v1160
        %v3502 = vpop.f32.mrb[0].mxu0
        %v3503 = vadd.f32 %v767, %v3502
        %v3504 = vpop.f32.mrb[0].mxu0
        %v3505 = vadd.f32 %v771, %v3504
        %v3506 = vpop.f32.mrb[0].mxu0
        %v3507 = vadd.f32 %v767, %v3506
        %v3508 = vpop.f32.mrb[0].mxu0
        %v3509 = vadd.f32 %v771, %v3508
        %3510 = vmatprep.mubr.bf16.mxu0 %v1169
        %3511 = vmatmul.mubr.bf16.gmra.mrb[0].mxu0 %v1168
        %v3512 = vpop.f32.mrb[0].mxu0
        %v3513 = vadd.f32 %v767, %v3512
        %v3514 = vpop.f32.mrb[0].mxu0
        %v3515 = vadd.f32 %v771, %v3514
        %v3516 = vpop.f32.mrb[0].mxu0
        %v3517 = vadd.f32 %v767, %v3516
        %v3518 = vpop.f32.mrb[0].mxu0
        %v3519 = vadd.f32 %v771, %v3518
        %3520 = vmatprep.mubr.bf16.mxu0 %v1177
        %3521 = vmatmul.mubr.bf16.gmra.mrb[0].mxu0 %v1176
        %v3522 = vpop.f32.mrb[0].mxu0
        %v3523 = vadd.f32 %v767, %v3522
        %v3524 = vpop.f32.mrb[0].mxu0
        %v3525 = vadd.f32 %v771, %v3524
        %v3526 = vpop.f32.mrb[0].mxu0
        %v3527 = vadd.f32 %v767, %v3526
        %v3528 = vpop.f32.mrb[0].mxu0
        %v3529 = vadd.f32 %v771, %v3528
        %3530 = vmatprep.mubr.bf16.mxu0 %v1185
        %3531 = vmatmul.mubr.bf16.gmra.mrb[0].mxu0 %v1184
        %v3532 = vpop.f32.mrb[0].mxu0
        %v3533 = vadd.f32 %v767, %v3532
        %v3534 = vpop.f32.mrb[0].mxu0
        %v3535 = vadd.f32 %v771, %v3534
        %v3536 = vpop.f32.mrb[0].mxu0
        %v3537 = vadd.f32 %v767, %v3536
        %v3538 = vpop.f32.mrb[0].mxu0
        %v3539 = vadd.f32 %v771, %v3538
        %3540 = vmatprep.mubr.bf16.mxu0 %v1193
        %3541 = vmatmul.mubr.bf16.gmra.mrb[0].mxu0 %v1192
        %v3542 = vpop.f32.mrb[0].mxu0
        %v3543 = vadd.f32 %v767, %v3542
        %v3544 = vpop.f32.mrb[0].mxu0
        %v3545 = vadd.f32 %v771, %v3544
        %v3546 = vpop.f32.mrb[0].mxu0
        %v3547 = vadd.f32 %v767, %v3546
        %v3548 = vpop.f32.mrb[0].mxu0
        %v3549 = vadd.f32 %v771, %v3548
        %3550 = vmatprep.mubr.bf16.mxu0 %v1201
        %3551 = vmatmul.mubr.bf16.gmra.mrb[0].mxu0 %v1200
        %v3552 = vpop.f32.mrb[0].mxu0
        %v3553 = vadd.f32 %v767, %v3552
        %v3554 = vpop.f32.mrb[0].mxu0
        %v3555 = vadd.f32 %v771, %v3554
        %v3556 = vpop.f32.mrb[0].mxu0
        %v3557 = vadd.f32 %v767, %v3556
        %v3558 = vpop.f32.mrb[0].mxu0
        %v3559 = vadd.f32 %v771, %v3558
        %3560 = vmatprep.mubr.bf16.mxu0 %v1209
        %3561 = vmatmul.mubr.bf16.gmra.mrb[0].mxu0 %v1208
        %v3562 = vpop.f32.mrb[0].mxu0
        %v3563 = vadd.f32 %v767, %v3562
        %v3564 = vpop.f32.mrb[0].mxu0
        %v3565 = vadd.f32 %v771, %v3564
        %v3566 = vpop.f32.mrb[0].mxu0
        %v3567 = vadd.f32 %v767, %v3566
        %v3568 = vpop.f32.mrb[0].mxu0
        %v3569 = vadd.f32 %v771, %v3568
        %3570 = vmatprep.mubr.bf16.mxu0 %v1217
        %3571 = vmatmul.mubr.bf16.gmra.mrb[0].mxu0 %v1216
        %v3572 = vpop.f32.mrb[0].mxu0
        %v3573 = vadd.f32 %v767, %v3572
        %v3574 = vpop.f32.mrb[0].mxu0
        %v3575 = vadd.f32 %v771, %v3574
        %v3576 = vpop.f32.mrb[0].mxu0
        %v3577 = vadd.f32 %v767, %v3576
        %v3578 = vpop.f32.mrb[0].mxu0
        %v3579 = vadd.f32 %v771, %v3578
        %3580 = vmatprep.mubr.bf16.mxu0 %v1225
        %3581 = vmatmul.mubr.bf16.gmra.mrb[0].mxu0 %v1224
        %v3582 = vpop.f32.mrb[0].mxu0
        %v3583 = vadd.f32 %v767, %v3582
        %v3584 = vpop.f32.mrb[0].mxu0
        %v3585 = vadd.f32 %v771, %v3584
        %v3586 = vpop.f32.mrb[0].mxu0
        %v3587 = vadd.f32 %v767, %v3586
        %v3588 = vpop.f32.mrb[0].mxu0
        %v3589 = vadd.f32 %v771, %v3588
        %3590 = vmatprep.mubr.bf16.mxu0 %v1233
        %3591 = vmatmul.mubr.bf16.gmra.mrb[0].mxu0 %v1232
        %v3592 = vpop.f32.mrb[0].mxu0
        %v3593 = vadd.f32 %v767, %v3592
        %v3594 = vpop.f32.mrb[0].mxu0
        %v3595 = vadd.f32 %v771, %v3594
        %v3596 = vpop.f32.mrb[0].mxu0
        %v3597 = vadd.f32 %v767, %v3596
        %v3598 = vpop.f32.mrb[0].mxu0
        %v3599 = vadd.f32 %v771, %v3598
        %3600 = vmatprep.mubr.bf16.mxu0 %v1241
        %3601 = vmatmul.mubr.bf16.gmra.mrb[0].mxu0 %v1240
        %v3602 = vpop.f32.mrb[0].mxu0
        %v3603 = vadd.f32 %v767, %v3602
        %v3604 = vpop.f32.mrb[0].mxu0
        %v3605 = vadd.f32 %v771, %v3604
        %v3606 = vpop.f32.mrb[0].mxu0
        %v3607 = vadd.f32 %v767, %v3606
        %v3608 = vpop.f32.mrb[0].mxu0
        %v3609 = vadd.f32 %v771, %v3608
        %3610 = vmatprep.mubr.bf16.mxu0 %v1249
        %3611 = vmatmul.mubr.bf16.gmra.mrb[0].mxu0 %v1248
        %v3612 = vpop.f32.mrb[0].mxu0
        %v3613 = vadd.f32 %v767, %v3612
        %v3614 = vpop.f32.mrb[0].mxu0
        %v3615 = vadd.f32 %v771, %v3614
        %v3616 = vpop.f32.mrb[0].mxu0
        %v3617 = vadd.f32 %v767, %v3616
        %v3618 = vpop.f32.mrb[0].mxu0
        %v3619 = vadd.f32 %v771, %v3618
        %3620 = vmatprep.mubr.bf16.mxu0 %v1257
        %3621 = vmatmul.mubr.bf16.gmra.mrb[0].mxu0 %v1256
        %v3622 = vpop.f32.mrb[0].mxu0
        %v3623 = vadd.f32 %v767, %v3622
        %v3624 = vpop.f32.mrb[0].mxu0
        %v3625 = vadd.f32 %v771, %v3624
        %v3626 = vpop.f32.mrb[0].mxu0
        %v3627 = vadd.f32 %v767, %v3626
        %v3628 = vpop.f32.mrb[0].mxu0
        %v3629 = vadd.f32 %v771, %v3628
        %3630 = vmatprep.mubr.bf16.mxu0 %v1265
        %3631 = vmatmul.mubr.bf16.gmra.mrb[0].mxu0 %v1264
        %v3632 = vpop.f32.mrb[0].mxu0
        %v3633 = vadd.f32 %v767, %v3632
        %v3634 = vpop.f32.mrb[0].mxu0
        %v3635 = vadd.f32 %v771, %v3634
        %v3636 = vpop.f32.mrb[0].mxu0
        %v3637 = vadd.f32 %v767, %v3636
        %v3638 = vpop.f32.mrb[0].mxu0
        %v3639 = vadd.f32 %v771, %v3638
        %3640 = vmatprep.mubr.bf16.mxu0 %v1273
        %3641 = vmatmul.mubr.bf16.gmra.mrb[0].mxu0 %v1272
        %v3642 = vpop.f32.mrb[0].mxu0
        %v3643 = vadd.f32 %v767, %v3642
        %v3644 = vpop.f32.mrb[0].mxu0
        %v3645 = vadd.f32 %v771, %v3644
        %v3646 = vpop.f32.mrb[0].mxu0
        %v3647 = vadd.f32 %v767, %v3646
        %v3648 = vpop.f32.mrb[0].mxu0
        %v3649 = vadd.f32 %v771, %v3648
        %3650 = vmatprep.mubr.bf16.mxu0 %v1281
        %3651 = vmatmul.mubr.bf16.gmra.mrb[0].mxu0 %v1280
        %v3652 = vpop.f32.mrb[0].mxu0
        %v3653 = vadd.f32 %v767, %v3652
        %v3654 = vpop.f32.mrb[0].mxu0
        %v3655 = vadd.f32 %v771, %v3654
        %v3656 = vpop.f32.mrb[0].mxu0
        %v3657 = vadd.f32 %v767, %v3656
        %v3658 = vpop.f32.mrb[0].mxu0
        %v3659 = vadd.f32 %v771, %v3658
        %3660 = vdwg.mxu0
        %3661 = vmatprep.subr.bf16.mxu0 %v2251
        %3662 = vmatpush1.bf16.msra.mxu0 %v2250
        %3663 = vmatprep.subr.bf16.mxu0 %v2255
        %3664 = vmatpush1.bf16.msra.mxu0 %v2254
        %3665 = vmatprep.subr.bf16.mxu0 %v2259
        %3666 = vmatpush1.bf16.msra.mxu0 %v2258
        %3667 = vmatprep.subr.bf16.mxu0 %v2263
        %3668 = vmatpush1.bf16.msra.mxu0 %v2262
        %3669 = vmatprep.subr.bf16.mxu0 %v2267
        %3670 = vmatpush1.bf16.msra.mxu0 %v2266
        %3671 = vmatprep.subr.bf16.mxu0 %v2271
        %3672 = vmatpush1.bf16.msra.mxu0 %v2270
        %3673 = vmatprep.subr.bf16.mxu0 %v2275
        %3674 = vmatpush1.bf16.msra.mxu0 %v2274
        %3675 = vmatprep.subr.bf16.mxu0 %v2279
        %3676 = vmatpush1.bf16.msra.mxu0 %v2278
        %3677 = vmatprep.subr.bf16.mxu0 %v2283
        %3678 = vmatpush1.bf16.msra.mxu0 %v2282
        %3679 = vmatprep.subr.bf16.mxu0 %v2287
        %3680 = vmatpush1.bf16.msra.mxu0 %v2286
        %3681 = vmatprep.subr.bf16.mxu0 %v2291
        %3682 = vmatpush1.bf16.msra.mxu0 %v2290
        %3683 = vmatprep.subr.bf16.mxu0 %v2295
        %3684 = vmatpush1.bf16.msra.mxu0 %v2294
        %3685 = vmatprep.subr.bf16.mxu0 %v2299
        %3686 = vmatpush1.bf16.msra.mxu0 %v2298
        %3687 = vmatprep.subr.bf16.mxu0 %v2303
        %3688 = vmatpush1.bf16.msra.mxu0 %v2302
        %3689 = vmatprep.subr.bf16.mxu0 %v2307
        %3690 = vmatpush1.bf16.msra.mxu0 %v2306
        %3691 = vmatprep.subr.bf16.mxu0 %v2311
        %3692 = vmatpush1.bf16.msra.mxu0 %v2310
        %3693 = vmatprep.mubr.bf16.mxu0 %v1163
        %3694 = vmatmul.mubr.bf16.gmra.mrb[0].mxu0 %v1162
        %v3695 = vpop.f32.mrb[0].mxu0
        %v3696 = vadd.f32 %v3503, %v3695
        %v3697 = vpop.f32.mrb[0].mxu0
        %v3698 = vadd.f32 %v3505, %v3697
        %v3699 = vpop.f32.mrb[0].mxu0
        %v3700 = vadd.f32 %v3507, %v3699
        %v3701 = vpop.f32.mrb[0].mxu0
        %v3702 = vadd.f32 %v3509, %v3701
        %3703 = vmatprep.mubr.bf16.mxu0 %v1171
        %3704 = vmatmul.mubr.bf16.gmra.mrb[0].mxu0 %v1170
        %v3705 = vpop.f32.mrb[0].mxu0
        %v3706 = vadd.f32 %v3513, %v3705
        %v3707 = vpop.f32.mrb[0].mxu0
        %v3708 = vadd.f32 %v3515, %v3707
        %v3709 = vpop.f32.mrb[0].mxu0
        %v3710 = vadd.f32 %v3517, %v3709
        %v3711 = vpop.f32.mrb[0].mxu0
        %v3712 = vadd.f32 %v3519, %v3711
        %3713 = vmatprep.mubr.bf16.mxu0 %v1179
        %3714 = vmatmul.mubr.bf16.gmra.mrb[0].mxu0 %v1178
        %v3715 = vpop.f32.mrb[0].mxu0
        %v3716 = vadd.f32 %v3523, %v3715
        %v3717 = vpop.f32.mrb[0].mxu0
        %v3718 = vadd.f32 %v3525, %v3717
        %v3719 = vpop.f32.mrb[0].mxu0
        %v3720 = vadd.f32 %v3527, %v3719
        %v3721 = vpop.f32.mrb[0].mxu0
        %v3722 = vadd.f32 %v3529, %v3721
        %3723 = vmatprep.mubr.bf16.mxu0 %v1187
        %3724 = vmatmul.mubr.bf16.gmra.mrb[0].mxu0 %v1186
        %v3725 = vpop.f32.mrb[0].mxu0
        %v3726 = vadd.f32 %v3533, %v3725
        %v3727 = vpop.f32.mrb[0].mxu0
        %v3728 = vadd.f32 %v3535, %v3727
        %v3729 = vpop.f32.mrb[0].mxu0
        %v3730 = vadd.f32 %v3537, %v3729
        %v3731 = vpop.f32.mrb[0].mxu0
        %v3732 = vadd.f32 %v3539, %v3731
        %3733 = vmatprep.mubr.bf16.mxu0 %v1195
        %3734 = vmatmul.mubr.bf16.gmra.mrb[0].mxu0 %v1194
        %v3735 = vpop.f32.mrb[0].mxu0
        %v3736 = vadd.f32 %v3543, %v3735
        %v3737 = vpop.f32.mrb[0].mxu0
        %v3738 = vadd.f32 %v3545, %v3737
        %v3739 = vpop.f32.mrb[0].mxu0
        %v3740 = vadd.f32 %v3547, %v3739
        %v3741 = vpop.f32.mrb[0].mxu0
        %v3742 = vadd.f32 %v3549, %v3741
        %3743 = vmatprep.mubr.bf16.mxu0 %v1203
        %3744 = vmatmul.mubr.bf16.gmra.mrb[0].mxu0 %v1202
        %v3745 = vpop.f32.mrb[0].mxu0
        %v3746 = vadd.f32 %v3553, %v3745
        %v3747 = vpop.f32.mrb[0].mxu0
        %v3748 = vadd.f32 %v3555, %v3747
        %v3749 = vpop.f32.mrb[0].mxu0
        %v3750 = vadd.f32 %v3557, %v3749
        %v3751 = vpop.f32.mrb[0].mxu0
        %v3752 = vadd.f32 %v3559, %v3751
        %3753 = vmatprep.mubr.bf16.mxu0 %v1211
        %3754 = vmatmul.mubr.bf16.gmra.mrb[0].mxu0 %v1210
        %v3755 = vpop.f32.mrb[0].mxu0
        %v3756 = vadd.f32 %v3563, %v3755
        %v3757 = vpop.f32.mrb[0].mxu0
        %v3758 = vadd.f32 %v3565, %v3757
        %v3759 = vpop.f32.mrb[0].mxu0
        %v3760 = vadd.f32 %v3567, %v3759
        %v3761 = vpop.f32.mrb[0].mxu0
        %v3762 = vadd.f32 %v3569, %v3761
        %3763 = vmatprep.mubr.bf16.mxu0 %v1219
        %3764 = vmatmul.mubr.bf16.gmra.mrb[0].mxu0 %v1218
        %v3765 = vpop.f32.mrb[0].mxu0
        %v3766 = vadd.f32 %v3573, %v3765
        %v3767 = vpop.f32.mrb[0].mxu0
        %v3768 = vadd.f32 %v3575, %v3767
        %v3769 = vpop.f32.mrb[0].mxu0
        %v3770 = vadd.f32 %v3577, %v3769
        %v3771 = vpop.f32.mrb[0].mxu0
        %v3772 = vadd.f32 %v3579, %v3771
        %3773 = vmatprep.mubr.bf16.mxu0 %v1227
        %3774 = vmatmul.mubr.bf16.gmra.mrb[0].mxu0 %v1226
        %v3775 = vpop.f32.mrb[0].mxu0
        %v3776 = vadd.f32 %v3583, %v3775
        %v3777 = vpop.f32.mrb[0].mxu0
        %v3778 = vadd.f32 %v3585, %v3777
        %v3779 = vpop.f32.mrb[0].mxu0
        %v3780 = vadd.f32 %v3587, %v3779
        %v3781 = vpop.f32.mrb[0].mxu0
        %v3782 = vadd.f32 %v3589, %v3781
        %3783 = vmatprep.mubr.bf16.mxu0 %v1235
        %3784 = vmatmul.mubr.bf16.gmra.mrb[0].mxu0 %v1234
        %v3785 = vpop.f32.mrb[0].mxu0
        %v3786 = vadd.f32 %v3593, %v3785
        %v3787 = vpop.f32.mrb[0].mxu0
        %v3788 = vadd.f32 %v3595, %v3787
        %v3789 = vpop.f32.mrb[0].mxu0
        %v3790 = vadd.f32 %v3597, %v3789
        %v3791 = vpop.f32.mrb[0].mxu0
        %v3792 = vadd.f32 %v3599, %v3791
        %3793 = vmatprep.mubr.bf16.mxu0 %v1243
        %3794 = vmatmul.mubr.bf16.gmra.mrb[0].mxu0 %v1242
        %v3795 = vpop.f32.mrb[0].mxu0
        %v3796 = vadd.f32 %v3603, %v3795
        %v3797 = vpop.f32.mrb[0].mxu0
        %v3798 = vadd.f32 %v3605, %v3797
        %v3799 = vpop.f32.mrb[0].mxu0
        %v3800 = vadd.f32 %v3607, %v3799
        %v3801 = vpop.f32.mrb[0].mxu0
        %v3802 = vadd.f32 %v3609, %v3801
        %3803 = vmatprep.mubr.bf16.mxu0 %v1251
        %3804 = vmatmul.mubr.bf16.gmra.mrb[0].mxu0 %v1250
        %v3805 = vpop.f32.mrb[0].mxu0
        %v3806 = vadd.f32 %v3613, %v3805
        %v3807 = vpop.f32.mrb[0].mxu0
        %v3808 = vadd.f32 %v3615, %v3807
        %v3809 = vpop.f32.mrb[0].mxu0
        %v3810 = vadd.f32 %v3617, %v3809
        %v3811 = vpop.f32.mrb[0].mxu0
        %v3812 = vadd.f32 %v3619, %v3811
        %3813 = vmatprep.mubr.bf16.mxu0 %v1259
        %3814 = vmatmul.mubr.bf16.gmra.mrb[0].mxu0 %v1258
        %v3815 = vpop.f32.mrb[0].mxu0
        %v3816 = vadd.f32 %v3623, %v3815
        %v3817 = vpop.f32.mrb[0].mxu0
        %v3818 = vadd.f32 %v3625, %v3817
        %v3819 = vpop.f32.mrb[0].mxu0
        %v3820 = vadd.f32 %v3627, %v3819
        %v3821 = vpop.f32.mrb[0].mxu0
        %v3822 = vadd.f32 %v3629, %v3821
        %3823 = vmatprep.mubr.bf16.mxu0 %v1267
        %3824 = vmatmul.mubr.bf16.gmra.mrb[0].mxu0 %v1266
        %v3825 = vpop.f32.mrb[0].mxu0
        %v3826 = vadd.f32 %v3633, %v3825
        %v3827 = vpop.f32.mrb[0].mxu0
        %v3828 = vadd.f32 %v3635, %v3827
        %v3829 = vpop.f32.mrb[0].mxu0
        %v3830 = vadd.f32 %v3637, %v3829
        %v3831 = vpop.f32.mrb[0].mxu0
        %v3832 = vadd.f32 %v3639, %v3831
        %3833 = vmatprep.mubr.bf16.mxu0 %v1275
        %3834 = vmatmul.mubr.bf16.gmra.mrb[0].mxu0 %v1274
        %v3835 = vpop.f32.mrb[0].mxu0
        %v3836 = vadd.f32 %v3643, %v3835
        %v3837 = vpop.f32.mrb[0].mxu0
        %v3838 = vadd.f32 %v3645, %v3837
        %v3839 = vpop.f32.mrb[0].mxu0
        %v3840 = vadd.f32 %v3647, %v3839
        %v3841 = vpop.f32.mrb[0].mxu0
        %v3842 = vadd.f32 %v3649, %v3841
        %3843 = vmatprep.mubr.bf16.mxu0 %v1283
        %3844 = vmatmul.mubr.bf16.gmra.mrb[0].mxu0 %v1282
        %v3845 = vpop.f32.mrb[0].mxu0
        %v3846 = vadd.f32 %v3653, %v3845
        %v3847 = vpop.f32.mrb[0].mxu0
        %v3848 = vadd.f32 %v3655, %v3847
        %v3849 = vpop.f32.mrb[0].mxu0
        %v3850 = vadd.f32 %v3657, %v3849
        %v3851 = vpop.f32.mrb[0].mxu0
        %v3852 = vadd.f32 %v3659, %v3851
        %3853 = vdwg.mxu0
        %3854 = vmatprep.subr.bf16.mxu0 %v2315
        %3855 = vmatpush1.bf16.msra.mxu0 %v2314
        %3856 = vmatprep.subr.bf16.mxu0 %v2319
        %3857 = vmatpush1.bf16.msra.mxu0 %v2318
        %3858 = vmatprep.subr.bf16.mxu0 %v2323
        %3859 = vmatpush1.bf16.msra.mxu0 %v2322
        %3860 = vmatprep.subr.bf16.mxu0 %v2327
        %3861 = vmatpush1.bf16.msra.mxu0 %v2326
        %3862 = vmatprep.subr.bf16.mxu0 %v2331
        %3863 = vmatpush1.bf16.msra.mxu0 %v2330
        %3864 = vmatprep.subr.bf16.mxu0 %v2335
        %3865 = vmatpush1.bf16.msra.mxu0 %v2334
        %3866 = vmatprep.subr.bf16.mxu0 %v2339
        %3867 = vmatpush1.bf16.msra.mxu0 %v2338
        %3868 = vmatprep.subr.bf16.mxu0 %v2343
        %3869 = vmatpush1.bf16.msra.mxu0 %v2342
        %3870 = vmatprep.subr.bf16.mxu0 %v2347
        %3871 = vmatpush1.bf16.msra.mxu0 %v2346
        %3872 = vmatprep.subr.bf16.mxu0 %v2351
        %3873 = vmatpush1.bf16.msra.mxu0 %v2350
        %3874 = vmatprep.subr.bf16.mxu0 %v2355
        %3875 = vmatpush1.bf16.msra.mxu0 %v2354
        %3876 = vmatprep.subr.bf16.mxu0 %v2359
        %3877 = vmatpush1.bf16.msra.mxu0 %v2358
        %3878 = vmatprep.subr.bf16.mxu0 %v2363
        %3879 = vmatpush1.bf16.msra.mxu0 %v2362
        %3880 = vmatprep.subr.bf16.mxu0 %v2367
        %3881 = vmatpush1.bf16.msra.mxu0 %v2366
        %3882 = vmatprep.subr.bf16.mxu0 %v2371
        %3883 = vmatpush1.bf16.msra.mxu0 %v2370
        %3884 = vmatprep.subr.bf16.mxu0 %v2375
        %3885 = vmatpush1.bf16.msra.mxu0 %v2374
        %3886 = vmatprep.mubr.bf16.mxu0 %v1165
        %3887 = vmatmul.mubr.bf16.gmra.mrb[0].mxu0 %v1164
        %v3888 = vpop.f32.mrb[0].mxu0
        %v3889 = vadd.f32 %v3696, %v3888
        %v3890 = vpop.f32.mrb[0].mxu0
        %v3891 = vadd.f32 %v3698, %v3890
        %v3892 = vpop.f32.mrb[0].mxu0
        %v3893 = vadd.f32 %v3700, %v3892
        %v3894 = vpop.f32.mrb[0].mxu0
        %v3895 = vadd.f32 %v3702, %v3894
        %3896 = vmatprep.mubr.bf16.mxu0 %v1173
        %3897 = vmatmul.mubr.bf16.gmra.mrb[0].mxu0 %v1172
        %v3898 = vpop.f32.mrb[0].mxu0
        %v3899 = vadd.f32 %v3706, %v3898
        %v3900 = vpop.f32.mrb[0].mxu0
        %v3901 = vadd.f32 %v3708, %v3900
        %v3902 = vpop.f32.mrb[0].mxu0
        %v3903 = vadd.f32 %v3710, %v3902
        %v3904 = vpop.f32.mrb[0].mxu0
        %v3905 = vadd.f32 %v3712, %v3904
        %3906 = vmatprep.mubr.bf16.mxu0 %v1181
        %3907 = vmatmul.mubr.bf16.gmra.mrb[0].mxu0 %v1180
        %v3908 = vpop.f32.mrb[0].mxu0
        %v3909 = vadd.f32 %v3716, %v3908
        %v3910 = vpop.f32.mrb[0].mxu0
        %v3911 = vadd.f32 %v3718, %v3910
        %v3912 = vpop.f32.mrb[0].mxu0
        %v3913 = vadd.f32 %v3720, %v3912
        %v3914 = vpop.f32.mrb[0].mxu0
        %v3915 = vadd.f32 %v3722, %v3914
        %3916 = vmatprep.mubr.bf16.mxu0 %v1189
        %3917 = vmatmul.mubr.bf16.gmra.mrb[0].mxu0 %v1188
        %v3918 = vpop.f32.mrb[0].mxu0
        %v3919 = vadd.f32 %v3726, %v3918
        %v3920 = vpop.f32.mrb[0].mxu0
        %v3921 = vadd.f32 %v3728, %v3920
        %v3922 = vpop.f32.mrb[0].mxu0
        %v3923 = vadd.f32 %v3730, %v3922
        %v3924 = vpop.f32.mrb[0].mxu0
        %v3925 = vadd.f32 %v3732, %v3924
        %3926 = vmatprep.mubr.bf16.mxu0 %v1197
        %3927 = vmatmul.mubr.bf16.gmra.mrb[0].mxu0 %v1196
        %v3928 = vpop.f32.mrb[0].mxu0
        %v3929 = vadd.f32 %v3736, %v3928
        %v3930 = vpop.f32.mrb[0].mxu0
        %v3931 = vadd.f32 %v3738, %v3930
        %v3932 = vpop.f32.mrb[0].mxu0
        %v3933 = vadd.f32 %v3740, %v3932
        %v3934 = vpop.f32.mrb[0].mxu0
        %v3935 = vadd.f32 %v3742, %v3934
        %3936 = vmatprep.mubr.bf16.mxu0 %v1205
        %3937 = vmatmul.mubr.bf16.gmra.mrb[0].mxu0 %v1204
        %v3938 = vpop.f32.mrb[0].mxu0
        %v3939 = vadd.f32 %v3746, %v3938
        %v3940 = vpop.f32.mrb[0].mxu0
        %v3941 = vadd.f32 %v3748, %v3940
        %v3942 = vpop.f32.mrb[0].mxu0
        %v3943 = vadd.f32 %v3750, %v3942
        %v3944 = vpop.f32.mrb[0].mxu0
        %v3945 = vadd.f32 %v3752, %v3944
        %3946 = vmatprep.mubr.bf16.mxu0 %v1213
        %3947 = vmatmul.mubr.bf16.gmra.mrb[0].mxu0 %v1212
        %v3948 = vpop.f32.mrb[0].mxu0
        %v3949 = vadd.f32 %v3756, %v3948
        %v3950 = vpop.f32.mrb[0].mxu0
        %v3951 = vadd.f32 %v3758, %v3950
        %v3952 = vpop.f32.mrb[0].mxu0
        %v3953 = vadd.f32 %v3760, %v3952
        %v3954 = vpop.f32.mrb[0].mxu0
        %v3955 = vadd.f32 %v3762, %v3954
        %3956 = vmatprep.mubr.bf16.mxu0 %v1221
        %3957 = vmatmul.mubr.bf16.gmra.mrb[0].mxu0 %v1220
        %v3958 = vpop.f32.mrb[0].mxu0
        %v3959 = vadd.f32 %v3766, %v3958
        %v3960 = vpop.f32.mrb[0].mxu0
        %v3961 = vadd.f32 %v3768, %v3960
        %v3962 = vpop.f32.mrb[0].mxu0
        %v3963 = vadd.f32 %v3770, %v3962
        %v3964 = vpop.f32.mrb[0].mxu0
        %v3965 = vadd.f32 %v3772, %v3964
        %3966 = vmatprep.mubr.bf16.mxu0 %v1229
        %3967 = vmatmul.mubr.bf16.gmra.mrb[0].mxu0 %v1228
        %v3968 = vpop.f32.mrb[0].mxu0
        %v3969 = vadd.f32 %v3776, %v3968
        %v3970 = vpop.f32.mrb[0].mxu0
        %v3971 = vadd.f32 %v3778, %v3970
        %v3972 = vpop.f32.mrb[0].mxu0
        %v3973 = vadd.f32 %v3780, %v3972
        %v3974 = vpop.f32.mrb[0].mxu0
        %v3975 = vadd.f32 %v3782, %v3974
        %3976 = vmatprep.mubr.bf16.mxu0 %v1237
        %3977 = vmatmul.mubr.bf16.gmra.mrb[0].mxu0 %v1236
        %v3978 = vpop.f32.mrb[0].mxu0
        %v3979 = vadd.f32 %v3786, %v3978
        %v3980 = vpop.f32.mrb[0].mxu0
        %v3981 = vadd.f32 %v3788, %v3980
        %v3982 = vpop.f32.mrb[0].mxu0
        %v3983 = vadd.f32 %v3790, %v3982
        %v3984 = vpop.f32.mrb[0].mxu0
        %v3985 = vadd.f32 %v3792, %v3984
        %3986 = vmatprep.mubr.bf16.mxu0 %v1245
        %3987 = vmatmul.mubr.bf16.gmra.mrb[0].mxu0 %v1244
        %v3988 = vpop.f32.mrb[0].mxu0
        %v3989 = vadd.f32 %v3796, %v3988
        %v3990 = vpop.f32.mrb[0].mxu0
        %v3991 = vadd.f32 %v3798, %v3990
        %v3992 = vpop.f32.mrb[0].mxu0
        %v3993 = vadd.f32 %v3800, %v3992
        %v3994 = vpop.f32.mrb[0].mxu0
        %v3995 = vadd.f32 %v3802, %v3994
        %3996 = vmatprep.mubr.bf16.mxu0 %v1253
        %3997 = vmatmul.mubr.bf16.gmra.mrb[0].mxu0 %v1252
        %v3998 = vpop.f32.mrb[0].mxu0
        %v3999 = vadd.f32 %v3806, %v3998
        %v4000 = vpop.f32.mrb[0].mxu0
        %v4001 = vadd.f32 %v3808, %v4000
        %v4002 = vpop.f32.mrb[0].mxu0
        %v4003 = vadd.f32 %v3810, %v4002
        %v4004 = vpop.f32.mrb[0].mxu0
        %v4005 = vadd.f32 %v3812, %v4004
        %4006 = vmatprep.mubr.bf16.mxu0 %v1261
        %4007 = vmatmul.mubr.bf16.gmra.mrb[0].mxu0 %v1260
        %v4008 = vpop.f32.mrb[0].mxu0
        %v4009 = vadd.f32 %v3816, %v4008
        %v4010 = vpop.f32.mrb[0].mxu0
        %v4011 = vadd.f32 %v3818, %v4010
        %v4012 = vpop.f32.mrb[0].mxu0
        %v4013 = vadd.f32 %v3820, %v4012
        %v4014 = vpop.f32.mrb[0].mxu0
        %v4015 = vadd.f32 %v3822, %v4014
        %4016 = vmatprep.mubr.bf16.mxu0 %v1269
        %4017 = vmatmul.mubr.bf16.gmra.mrb[0].mxu0 %v1268
        %v4018 = vpop.f32.mrb[0].mxu0
        %v4019 = vadd.f32 %v3826, %v4018
        %v4020 = vpop.f32.mrb[0].mxu0
        %v4021 = vadd.f32 %v3828, %v4020
        %v4022 = vpop.f32.mrb[0].mxu0
        %v4023 = vadd.f32 %v3830, %v4022
        %v4024 = vpop.f32.mrb[0].mxu0
        %v4025 = vadd.f32 %v3832, %v4024
        %4026 = vmatprep.mubr.bf16.mxu0 %v1277
        %4027 = vmatmul.mubr.bf16.gmra.mrb[0].mxu0 %v1276
        %v4028 = vpop.f32.mrb[0].mxu0
        %v4029 = vadd.f32 %v3836, %v4028
        %v4030 = vpop.f32.mrb[0].mxu0
        %v4031 = vadd.f32 %v3838, %v4030
        %v4032 = vpop.f32.mrb[0].mxu0
        %v4033 = vadd.f32 %v3840, %v4032
        %v4034 = vpop.f32.mrb[0].mxu0
        %v4035 = vadd.f32 %v3842, %v4034
        %4036 = vmatprep.mubr.bf16.mxu0 %v1285
        %4037 = vmatmul.mubr.bf16.gmra.mrb[0].mxu0 %v1284
        %v4038 = vpop.f32.mrb[0].mxu0
        %v4039 = vadd.f32 %v3846, %v4038
        %v4040 = vpop.f32.mrb[0].mxu0
        %v4041 = vadd.f32 %v3848, %v4040
        %v4042 = vpop.f32.mrb[0].mxu0
        %v4043 = vadd.f32 %v3850, %v4042
        %v4044 = vpop.f32.mrb[0].mxu0
        %v4045 = vadd.f32 %v3852, %v4044
        %4046 = vdwg.mxu0
        %4047 = vmatprep.subr.bf16.mxu0 %v2379
        %4048 = vmatpush1.bf16.msra.mxu0 %v2378
        %4049 = vmatprep.subr.bf16.mxu0 %v2383
        %4050 = vmatpush1.bf16.msra.mxu0 %v2382
        %4051 = vmatprep.subr.bf16.mxu0 %v2387
        %4052 = vmatpush1.bf16.msra.mxu0 %v2386
        %4053 = vmatprep.subr.bf16.mxu0 %v2391
        %4054 = vmatpush1.bf16.msra.mxu0 %v2390
        %4055 = vmatprep.subr.bf16.mxu0 %v2395
        %4056 = vmatpush1.bf16.msra.mxu0 %v2394
        %4057 = vmatprep.subr.bf16.mxu0 %v2399
        %4058 = vmatpush1.bf16.msra.mxu0 %v2398
        %4059 = vmatprep.subr.bf16.mxu0 %v2403
        %4060 = vmatpush1.bf16.msra.mxu0 %v2402
        %4061 = vmatprep.subr.bf16.mxu0 %v2407
        %4062 = vmatpush1.bf16.msra.mxu0 %v2406
        %4063 = vmatprep.subr.bf16.mxu0 %v2411
        %4064 = vmatpush1.bf16.msra.mxu0 %v2410
        %4065 = vmatprep.subr.bf16.mxu0 %v2415
        %4066 = vmatpush1.bf16.msra.mxu0 %v2414
        %4067 = vmatprep.subr.bf16.mxu0 %v2419
        %4068 = vmatpush1.bf16.msra.mxu0 %v2418
        %4069 = vmatprep.subr.bf16.mxu0 %v2423
        %4070 = vmatpush1.bf16.msra.mxu0 %v2422
        %4071 = vmatprep.subr.bf16.mxu0 %v2427
        %4072 = vmatpush1.bf16.msra.mxu0 %v2426
        %4073 = vmatprep.subr.bf16.mxu0 %v2431
        %4074 = vmatpush1.bf16.msra.mxu0 %v2430
        %4075 = vmatprep.subr.bf16.mxu0 %v2435
        %4076 = vmatpush1.bf16.msra.mxu0 %v2434
        %4077 = vmatprep.subr.bf16.mxu0 %v2439
        %4078 = vmatpush1.bf16.msra.mxu0 %v2438
        %4079 = vmatprep.mubr.bf16.mxu0 %v1167
        %4080 = vmatmul.mubr.bf16.gmra.mrb[0].mxu0 %v1166
        %v4081 = vpop.f32.mrb[0].mxu0
        %v4082 = vadd.f32 %v3889, %v4081
        %v4083 = vpop.f32.mrb[0].mxu0
        %v4084 = vadd.f32 %v3891, %v4083
        %v4085 = vpop.f32.mrb[0].mxu0
        %v4086 = vadd.f32 %v3893, %v4085
        %v4087 = vpop.f32.mrb[0].mxu0
        %v4088 = vadd.f32 %v3895, %v4087
        %4089 = vmatprep.mubr.bf16.mxu0 %v1175
        %4090 = vmatmul.mubr.bf16.gmra.mrb[0].mxu0 %v1174
        %v4091 = vpop.f32.mrb[0].mxu0
        %v4092 = vadd.f32 %v3899, %v4091
        %v4093 = vpop.f32.mrb[0].mxu0
        %v4094 = vadd.f32 %v3901, %v4093
        %v4095 = vpop.f32.mrb[0].mxu0
        %v4096 = vadd.f32 %v3903, %v4095
        %v4097 = vpop.f32.mrb[0].mxu0
        %v4098 = vadd.f32 %v3905, %v4097
        %4099 = vmatprep.mubr.bf16.mxu0 %v1183
        %4100 = vmatmul.mubr.bf16.gmra.mrb[0].mxu0 %v1182
        %v4101 = vpop.f32.mrb[0].mxu0
        %v4102 = vadd.f32 %v3909, %v4101
        %v4103 = vpop.f32.mrb[0].mxu0
        %v4104 = vadd.f32 %v3911, %v4103
        %v4105 = vpop.f32.mrb[0].mxu0
        %v4106 = vadd.f32 %v3913, %v4105
        %v4107 = vpop.f32.mrb[0].mxu0
        %v4108 = vadd.f32 %v3915, %v4107
        %4109 = vmatprep.mubr.bf16.mxu0 %v1191
        %4110 = vmatmul.mubr.bf16.gmra.mrb[0].mxu0 %v1190
        %v4111 = vpop.f32.mrb[0].mxu0
        %v4112 = vadd.f32 %v3919, %v4111
        %v4113 = vpop.f32.mrb[0].mxu0
        %v4114 = vadd.f32 %v3921, %v4113
        %v4115 = vpop.f32.mrb[0].mxu0
        %v4116 = vadd.f32 %v3923, %v4115
        %v4117 = vpop.f32.mrb[0].mxu0
        %v4118 = vadd.f32 %v3925, %v4117
        %4119 = vmatprep.mubr.bf16.mxu0 %v1199
        %4120 = vmatmul.mubr.bf16.gmra.mrb[0].mxu0 %v1198
        %v4121 = vpop.f32.mrb[0].mxu0
        %v4122 = vadd.f32 %v3929, %v4121
        %v4123 = vpop.f32.mrb[0].mxu0
        %v4124 = vadd.f32 %v3931, %v4123
        %v4125 = vpop.f32.mrb[0].mxu0
        %v4126 = vadd.f32 %v3933, %v4125
        %v4127 = vpop.f32.mrb[0].mxu0
        %v4128 = vadd.f32 %v3935, %v4127
        %4129 = vmatprep.mubr.bf16.mxu0 %v1207
        %4130 = vmatmul.mubr.bf16.gmra.mrb[0].mxu0 %v1206
        %v4131 = vpop.f32.mrb[0].mxu0
        %v4132 = vadd.f32 %v3939, %v4131
        %v4133 = vpop.f32.mrb[0].mxu0
        %v4134 = vadd.f32 %v3941, %v4133
        %v4135 = vpop.f32.mrb[0].mxu0
        %v4136 = vadd.f32 %v3943, %v4135
        %v4137 = vpop.f32.mrb[0].mxu0
        %v4138 = vadd.f32 %v3945, %v4137
        %4139 = vmatprep.mubr.bf16.mxu0 %v1215
        %4140 = vmatmul.mubr.bf16.gmra.mrb[0].mxu0 %v1214
        %v4141 = vpop.f32.mrb[0].mxu0
        %v4142 = vadd.f32 %v3949, %v4141
        %v4143 = vpop.f32.mrb[0].mxu0
        %v4144 = vadd.f32 %v3951, %v4143
        %v4145 = vpop.f32.mrb[0].mxu0
        %v4146 = vadd.f32 %v3953, %v4145
        %v4147 = vpop.f32.mrb[0].mxu0
        %v4148 = vadd.f32 %v3955, %v4147
        %4149 = vmatprep.mubr.bf16.mxu0 %v1223
        %4150 = vmatmul.mubr.bf16.gmra.mrb[0].mxu0 %v1222
        %v4151 = vpop.f32.mrb[0].mxu0
        %v4152 = vadd.f32 %v3959, %v4151
        %v4153 = vpop.f32.mrb[0].mxu0
        %v4154 = vadd.f32 %v3961, %v4153
        %v4155 = vpop.f32.mrb[0].mxu0
        %v4156 = vadd.f32 %v3963, %v4155
        %v4157 = vpop.f32.mrb[0].mxu0
        %v4158 = vadd.f32 %v3965, %v4157
        %4159 = vmatprep.mubr.bf16.mxu0 %v1231
        %4160 = vmatmul.mubr.bf16.gmra.mrb[0].mxu0 %v1230
        %v4161 = vpop.f32.mrb[0].mxu0
        %v4162 = vadd.f32 %v3969, %v4161
        %v4163 = vpop.f32.mrb[0].mxu0
        %v4164 = vadd.f32 %v3971, %v4163
        %v4165 = vpop.f32.mrb[0].mxu0
        %v4166 = vadd.f32 %v3973, %v4165
        %v4167 = vpop.f32.mrb[0].mxu0
        %v4168 = vadd.f32 %v3975, %v4167
        %4169 = vmatprep.mubr.bf16.mxu0 %v1239
        %4170 = vmatmul.mubr.bf16.gmra.mrb[0].mxu0 %v1238
        %v4171 = vpop.f32.mrb[0].mxu0
        %v4172 = vadd.f32 %v3979, %v4171
        %v4173 = vpop.f32.mrb[0].mxu0
        %v4174 = vadd.f32 %v3981, %v4173
        %v4175 = vpop.f32.mrb[0].mxu0
        %v4176 = vadd.f32 %v3983, %v4175
        %v4177 = vpop.f32.mrb[0].mxu0
        %v4178 = vadd.f32 %v3985, %v4177
        %4179 = vmatprep.mubr.bf16.mxu0 %v1247
        %4180 = vmatmul.mubr.bf16.gmra.mrb[0].mxu0 %v1246
        %v4181 = vpop.f32.mrb[0].mxu0
        %v4182 = vadd.f32 %v3989, %v4181
        %v4183 = vpop.f32.mrb[0].mxu0
        %v4184 = vadd.f32 %v3991, %v4183
        %v4185 = vpop.f32.mrb[0].mxu0
        %v4186 = vadd.f32 %v3993, %v4185
        %v4187 = vpop.f32.mrb[0].mxu0
        %v4188 = vadd.f32 %v3995, %v4187
        %4189 = vmatprep.mubr.bf16.mxu0 %v1255
        %4190 = vmatmul.mubr.bf16.gmra.mrb[0].mxu0 %v1254
        %v4191 = vpop.f32.mrb[0].mxu0
        %v4192 = vadd.f32 %v3999, %v4191
        %v4193 = vpop.f32.mrb[0].mxu0
        %v4194 = vadd.f32 %v4001, %v4193
        %v4195 = vpop.f32.mrb[0].mxu0
        %v4196 = vadd.f32 %v4003, %v4195
        %v4197 = vpop.f32.mrb[0].mxu0
        %v4198 = vadd.f32 %v4005, %v4197
        %4199 = vmatprep.mubr.bf16.mxu0 %v1263
        %4200 = vmatmul.mubr.bf16.gmra.mrb[0].mxu0 %v1262
        %v4201 = vpop.f32.mrb[0].mxu0
        %v4202 = vadd.f32 %v4009, %v4201
        %v4203 = vpop.f32.mrb[0].mxu0
        %v4204 = vadd.f32 %v4011, %v4203
        %v4205 = vpop.f32.mrb[0].mxu0
        %v4206 = vadd.f32 %v4013, %v4205
        %v4207 = vpop.f32.mrb[0].mxu0
        %v4208 = vadd.f32 %v4015, %v4207
        %4209 = vmatprep.mubr.bf16.mxu0 %v1271
        %4210 = vmatmul.mubr.bf16.gmra.mrb[0].mxu0 %v1270
        %v4211 = vpop.f32.mrb[0].mxu0
        %v4212 = vadd.f32 %v4019, %v4211
        %v4213 = vpop.f32.mrb[0].mxu0
        %v4214 = vadd.f32 %v4021, %v4213
        %v4215 = vpop.f32.mrb[0].mxu0
        %v4216 = vadd.f32 %v4023, %v4215
        %v4217 = vpop.f32.mrb[0].mxu0
        %v4218 = vadd.f32 %v4025, %v4217
        %4219 = vmatprep.mubr.bf16.mxu0 %v1279
        %4220 = vmatmul.mubr.bf16.gmra.mrb[0].mxu0 %v1278
        %v4221 = vpop.f32.mrb[0].mxu0
        %v4222 = vadd.f32 %v4029, %v4221
        %v4223 = vpop.f32.mrb[0].mxu0
        %v4224 = vadd.f32 %v4031, %v4223
        %v4225 = vpop.f32.mrb[0].mxu0
        %v4226 = vadd.f32 %v4033, %v4225
        %v4227 = vpop.f32.mrb[0].mxu0
        %v4228 = vadd.f32 %v4035, %v4227
        %4229 = vmatprep.mubr.bf16.mxu0 %v1287
        %4230 = vmatmul.mubr.bf16.gmra.mrb[0].mxu0 %v1286
        %v4231 = vpop.f32.mrb[0].mxu0
        %v4232 = vadd.f32 %v4039, %v4231
        %v4233 = vpop.f32.mrb[0].mxu0
        %v4234 = vadd.f32 %v4041, %v4233
        %v4235 = vpop.f32.mrb[0].mxu0
        %v4236 = vadd.f32 %v4043, %v4235
        %v4237 = vpop.f32.mrb[0].mxu0
        %v4238 = vadd.f32 %v4045, %v4237
        %4239 = vdwg.mxu0
        %v4240 = vmax.f32 %v3310, 0.0
        %v4241 = vmax.f32 %v3312, 0.0
        %v4242 = vmax.f32 %v4082, 0.0
        %v4243 = vmax.f32 %v4084, 0.0
        %v4244 = vmax.f32 %v3314, 0.0
        %v4245 = vmax.f32 %v3316, 0.0
        %v4246 = vmax.f32 %v4086, 0.0
        %v4247 = vmax.f32 %v4088, 0.0
        %v4248 = vmax.f32 %v3320, 0.0
        %v4249 = vmax.f32 %v3322, 0.0
        %v4250 = vmax.f32 %v4092, 0.0
        %v4251 = vmax.f32 %v4094, 0.0
        %v4252 = vmax.f32 %v3324, 0.0
        %v4253 = vmax.f32 %v3326, 0.0
        %v4254 = vmax.f32 %v4096, 0.0
        %v4255 = vmax.f32 %v4098, 0.0
        %v4256 = vmax.f32 %v3330, 0.0
        %v4257 = vmax.f32 %v3332, 0.0
        %v4258 = vmax.f32 %v4102, 0.0
        %v4259 = vmax.f32 %v4104, 0.0
        %v4260 = vmax.f32 %v3334, 0.0
        %v4261 = vmax.f32 %v3336, 0.0
        %v4262 = vmax.f32 %v4106, 0.0
        %v4263 = vmax.f32 %v4108, 0.0
        %v4264 = vmax.f32 %v3340, 0.0
        %v4265 = vmax.f32 %v3342, 0.0
        %v4266 = vmax.f32 %v4112, 0.0
        %v4267 = vmax.f32 %v4114, 0.0
        %v4268 = vmax.f32 %v3344, 0.0
        %v4269 = vmax.f32 %v3346, 0.0
        %v4270 = vmax.f32 %v4116, 0.0
        %v4271 = vmax.f32 %v4118, 0.0
        %v4272 = vmax.f32 %v3350, 0.0
        %v4273 = vmax.f32 %v3352, 0.0
        %v4274 = vmax.f32 %v4122, 0.0
        %v4275 = vmax.f32 %v4124, 0.0
        %v4276 = vmax.f32 %v3354, 0.0
        %v4277 = vmax.f32 %v3356, 0.0
        %v4278 = vmax.f32 %v4126, 0.0
        %v4279 = vmax.f32 %v4128, 0.0
        %v4280 = vmax.f32 %v3360, 0.0
        %v4281 = vmax.f32 %v3362, 0.0
        %v4282 = vmax.f32 %v4132, 0.0
        %v4283 = vmax.f32 %v4134, 0.0
        %v4284 = vmax.f32 %v3364, 0.0
        %v4285 = vmax.f32 %v3366, 0.0
        %v4286 = vmax.f32 %v4136, 0.0
        %v4287 = vmax.f32 %v4138, 0.0
        %v4288 = vmax.f32 %v3370, 0.0
        %v4289 = vmax.f32 %v3372, 0.0
        %v4290 = vmax.f32 %v4142, 0.0
        %v4291 = vmax.f32 %v4144, 0.0
        %v4292 = vmax.f32 %v3374, 0.0
        %v4293 = vmax.f32 %v3376, 0.0
        %v4294 = vmax.f32 %v4146, 0.0
        %v4295 = vmax.f32 %v4148, 0.0
        %v4296 = vmax.f32 %v3380, 0.0
        %v4297 = vmax.f32 %v3382, 0.0
        %v4298 = vmax.f32 %v4152, 0.0
        %v4299 = vmax.f32 %v4154, 0.0
        %v4300 = vmax.f32 %v3384, 0.0
        %v4301 = vmax.f32 %v3386, 0.0
        %v4302 = vmax.f32 %v4156, 0.0
        %v4303 = vmax.f32 %v4158, 0.0
        %v4304 = vmax.f32 %v3390, 0.0
        %v4305 = vmax.f32 %v3392, 0.0
        %v4306 = vmax.f32 %v4162, 0.0
        %v4307 = vmax.f32 %v4164, 0.0
        %v4308 = vmax.f32 %v3394, 0.0
        %v4309 = vmax.f32 %v3396, 0.0
        %v4310 = vmax.f32 %v4166, 0.0
        %v4311 = vmax.f32 %v4168, 0.0
        %v4312 = vmax.f32 %v3400, 0.0
        %v4313 = vmax.f32 %v3402, 0.0
        %v4314 = vmax.f32 %v4172, 0.0
        %v4315 = vmax.f32 %v4174, 0.0
        %v4316 = vmax.f32 %v3404, 0.0
        %v4317 = vmax.f32 %v3406, 0.0
        %v4318 = vmax.f32 %v4176, 0.0
        %v4319 = vmax.f32 %v4178, 0.0
        %v4320 = vmax.f32 %v3410, 0.0
        %v4321 = vmax.f32 %v3412, 0.0
        %v4322 = vmax.f32 %v4182, 0.0
        %v4323 = vmax.f32 %v4184, 0.0
        %v4324 = vmax.f32 %v3414, 0.0
        %v4325 = vmax.f32 %v3416, 0.0
        %v4326 = vmax.f32 %v4186, 0.0
        %v4327 = vmax.f32 %v4188, 0.0
        %v4328 = vmax.f32 %v3420, 0.0
        %v4329 = vmax.f32 %v3422, 0.0
        %v4330 = vmax.f32 %v4192, 0.0
        %v4331 = vmax.f32 %v4194, 0.0
        %v4332 = vmax.f32 %v3424, 0.0
        %v4333 = vmax.f32 %v3426, 0.0
        %v4334 = vmax.f32 %v4196, 0.0
        %v4335 = vmax.f32 %v4198, 0.0
        %v4336 = vmax.f32 %v3430, 0.0
        %v4337 = vmax.f32 %v3432, 0.0
        %v4338 = vmax.f32 %v4202, 0.0
        %v4339 = vmax.f32 %v4204, 0.0
        %v4340 = vmax.f32 %v3434, 0.0
        %v4341 = vmax.f32 %v3436, 0.0
        %v4342 = vmax.f32 %v4206, 0.0
        %v4343 = vmax.f32 %v4208, 0.0
        %v4344 = vmax.f32 %v3440, 0.0
        %v4345 = vmax.f32 %v3442, 0.0
        %v4346 = vmax.f32 %v4212, 0.0
        %v4347 = vmax.f32 %v4214, 0.0
        %v4348 = vmax.f32 %v3444, 0.0
        %v4349 = vmax.f32 %v3446, 0.0
        %v4350 = vmax.f32 %v4216, 0.0
        %v4351 = vmax.f32 %v4218, 0.0
        %v4352 = vmax.f32 %v3450, 0.0
        %v4353 = vmax.f32 %v3452, 0.0
        %v4354 = vmax.f32 %v4222, 0.0
        %v4355 = vmax.f32 %v4224, 0.0
        %v4356 = vmax.f32 %v3454, 0.0
        %v4357 = vmax.f32 %v3456, 0.0
        %v4358 = vmax.f32 %v4226, 0.0
        %v4359 = vmax.f32 %v4228, 0.0
        %v4360 = vmax.f32 %v3460, 0.0
        %v4361 = vmax.f32 %v3462, 0.0
        %v4362 = vmax.f32 %v4232, 0.0
        %v4363 = vmax.f32 %v4234, 0.0
        %v4364 = vmax.f32 %v3464, 0.0
        %v4365 = vmax.f32 %v3466, 0.0
        %v4366 = vmax.f32 %v4236, 0.0
        %v4367 = vmax.f32 %v4238, 0.0
        %4368 = vst [vmem:[%s354] sm:$0xff] %v4240
        %4369 = vst [vmem:[%s354 + $0x8] sm:$0xff] %v4241
        %4370 = vst [vmem:[%s354 + $0x10] sm:$0xff] %v4242
        %4371 = vst [vmem:[%s354 + $0x18] sm:$0xff] %v4243
        %4372 = vst [vmem:[%s354 + $0x20] sm:$0xff] %v4244
        %4373 = vst [vmem:[%s354 + $0x28] sm:$0xff] %v4245
        %4374 = vst [vmem:[%s354 + $0x30] sm:$0xff] %v4246
        %4375 = vst [vmem:[%s354 + $0x38] sm:$0xff] %v4247
        %4376 = vst [vmem:[%s354 + $0x40] sm:$0xff] %v4248
        %4377 = vst [vmem:[%s354 + $0x48] sm:$0xff] %v4249
        %4378 = vst [vmem:[%s354 + $0x50] sm:$0xff] %v4250
        %4379 = vst [vmem:[%s354 + $0x58] sm:$0xff] %v4251
        %4380 = vst [vmem:[%s354 + $0x60] sm:$0xff] %v4252
        %4381 = vst [vmem:[%s354 + $0x68] sm:$0xff] %v4253
        %4382 = vst [vmem:[%s354 + $0x70] sm:$0xff] %v4254
        %4383 = vst [vmem:[%s354 + $0x78] sm:$0xff] %v4255
        %4384 = vst [vmem:[%s354 + $0x80] sm:$0xff] %v4256
        %4385 = vst [vmem:[%s354 + $0x88] sm:$0xff] %v4257
        %4386 = vst [vmem:[%s354 + $0x90] sm:$0xff] %v4258
        %4387 = vst [vmem:[%s354 + $0x98] sm:$0xff] %v4259
        %4388 = vst [vmem:[%s354 + $0xa0] sm:$0xff] %v4260
        %4389 = vst [vmem:[%s354 + $0xa8] sm:$0xff] %v4261
        %4390 = vst [vmem:[%s354 + $0xb0] sm:$0xff] %v4262
        %4391 = vst [vmem:[%s354 + $0xb8] sm:$0xff] %v4263
        %4392 = vst [vmem:[%s354 + $0xc0] sm:$0xff] %v4264
        %4393 = vst [vmem:[%s354 + $0xc8] sm:$0xff] %v4265
        %4394 = vst [vmem:[%s354 + $0xd0] sm:$0xff] %v4266
        %4395 = vst [vmem:[%s354 + $0xd8] sm:$0xff] %v4267
        %4396 = vst [vmem:[%s354 + $0xe0] sm:$0xff] %v4268
        %4397 = vst [vmem:[%s354 + $0xe8] sm:$0xff] %v4269
        %4398 = vst [vmem:[%s354 + $0xf0] sm:$0xff] %v4270
        %4399 = vst [vmem:[%s354 + $0xf8] sm:$0xff] %v4271
        %4400 = vst [vmem:[%s354 + $0x100] sm:$0xff] %v4272
        %4401 = vst [vmem:[%s354 + $0x108] sm:$0xff] %v4273
        %4402 = vst [vmem:[%s354 + $0x110] sm:$0xff] %v4274
        %4403 = vst [vmem:[%s354 + $0x118] sm:$0xff] %v4275
        %4404 = vst [vmem:[%s354 + $0x120] sm:$0xff] %v4276
        %4405 = vst [vmem:[%s354 + $0x128] sm:$0xff] %v4277
        %4406 = vst [vmem:[%s354 + $0x130] sm:$0xff] %v4278
        %4407 = vst [vmem:[%s354 + $0x138] sm:$0xff] %v4279
        %4408 = vst [vmem:[%s354 + $0x140] sm:$0xff] %v4280
        %4409 = vst [vmem:[%s354 + $0x148] sm:$0xff] %v4281
        %4410 = vst [vmem:[%s354 + $0x150] sm:$0xff] %v4282
        %4411 = vst [vmem:[%s354 + $0x158] sm:$0xff] %v4283
        %4412 = vst [vmem:[%s354 + $0x160] sm:$0xff] %v4284
        %4413 = vst [vmem:[%s354 + $0x168] sm:$0xff] %v4285
        %4414 = vst [vmem:[%s354 + $0x170] sm:$0xff] %v4286
        %4415 = vst [vmem:[%s354 + $0x178] sm:$0xff] %v4287
        %4416 = vst [vmem:[%s354 + $0x180] sm:$0xff] %v4288
        %4417 = vst [vmem:[%s354 + $0x188] sm:$0xff] %v4289
        %4418 = vst [vmem:[%s354 + $0x190] sm:$0xff] %v4290
        %4419 = vst [vmem:[%s354 + $0x198] sm:$0xff] %v4291
        %4420 = vst [vmem:[%s354 + $0x1a0] sm:$0xff] %v4292
        %4421 = vst [vmem:[%s354 + $0x1a8] sm:$0xff] %v4293
        %4422 = vst [vmem:[%s354 + $0x1b0] sm:$0xff] %v4294
        %4423 = vst [vmem:[%s354 + $0x1b8] sm:$0xff] %v4295
        %4424 = vst [vmem:[%s354 + $0x1c0] sm:$0xff] %v4296
        %4425 = vst [vmem:[%s354 + $0x1c8] sm:$0xff] %v4297
        %4426 = vst [vmem:[%s354 + $0x1d0] sm:$0xff] %v4298
        %4427 = vst [vmem:[%s354 + $0x1d8] sm:$0xff] %v4299
        %4428 = vst [vmem:[%s354 + $0x1e0] sm:$0xff] %v4300
        %4429 = vst [vmem:[%s354 + $0x1e8] sm:$0xff] %v4301
        %4430 = vst [vmem:[%s354 + $0x1f0] sm:$0xff] %v4302
        %4431 = vst [vmem:[%s354 + $0x1f8] sm:$0xff] %v4303
        %4432 = vst [vmem:[%s354 + $0x200] sm:$0xff] %v4304
        %4433 = vst [vmem:[%s354 + $0x208] sm:$0xff] %v4305
        %4434 = vst [vmem:[%s354 + $0x210] sm:$0xff] %v4306
        %4435 = vst [vmem:[%s354 + $0x218] sm:$0xff] %v4307
        %4436 = vst [vmem:[%s354 + $0x220] sm:$0xff] %v4308
        %4437 = vst [vmem:[%s354 + $0x228] sm:$0xff] %v4309
        %4438 = vst [vmem:[%s354 + $0x230] sm:$0xff] %v4310
        %4439 = vst [vmem:[%s354 + $0x238] sm:$0xff] %v4311
        %4440 = vst [vmem:[%s354 + $0x240] sm:$0xff] %v4312
        %4441 = vst [vmem:[%s354 + $0x248] sm:$0xff] %v4313
        %4442 = vst [vmem:[%s354 + $0x250] sm:$0xff] %v4314
        %4443 = vst [vmem:[%s354 + $0x258] sm:$0xff] %v4315
        %4444 = vst [vmem:[%s354 + $0x260] sm:$0xff] %v4316
        %4445 = vst [vmem:[%s354 + $0x268] sm:$0xff] %v4317
        %4446 = vst [vmem:[%s354 + $0x270] sm:$0xff] %v4318
        %4447 = vst [vmem:[%s354 + $0x278] sm:$0xff] %v4319
        %4448 = vst [vmem:[%s354 + $0x280] sm:$0xff] %v4320
        %4449 = vst [vmem:[%s354 + $0x288] sm:$0xff] %v4321
        %4450 = vst [vmem:[%s354 + $0x290] sm:$0xff] %v4322
        %4451 = vst [vmem:[%s354 + $0x298] sm:$0xff] %v4323
        %4452 = vst [vmem:[%s354 + $0x2a0] sm:$0xff] %v4324
        %4453 = vst [vmem:[%s354 + $0x2a8] sm:$0xff] %v4325
        %4454 = vst [vmem:[%s354 + $0x2b0] sm:$0xff] %v4326
        %4455 = vst [vmem:[%s354 + $0x2b8] sm:$0xff] %v4327
        %4456 = vst [vmem:[%s354 + $0x2c0] sm:$0xff] %v4328
        %4457 = vst [vmem:[%s354 + $0x2c8] sm:$0xff] %v4329
        %4458 = vst [vmem:[%s354 + $0x2d0] sm:$0xff] %v4330
        %4459 = vst [vmem:[%s354 + $0x2d8] sm:$0xff] %v4331
        %4460 = vst [vmem:[%s354 + $0x2e0] sm:$0xff] %v4332
        %4461 = vst [vmem:[%s354 + $0x2e8] sm:$0xff] %v4333
        %4462 = vst [vmem:[%s354 + $0x2f0] sm:$0xff] %v4334
        %4463 = vst [vmem:[%s354 + $0x2f8] sm:$0xff] %v4335
        %4464 = vst [vmem:[%s354 + $0x300] sm:$0xff] %v4336
        %4465 = vst [vmem:[%s354 + $0x308] sm:$0xff] %v4337
        %4466 = vst [vmem:[%s354 + $0x310] sm:$0xff] %v4338
        %4467 = vst [vmem:[%s354 + $0x318] sm:$0xff] %v4339
        %4468 = vst [vmem:[%s354 + $0x320] sm:$0xff] %v4340
        %4469 = vst [vmem:[%s354 + $0x328] sm:$0xff] %v4341
        %4470 = vst [vmem:[%s354 + $0x330] sm:$0xff] %v4342
        %4471 = vst [vmem:[%s354 + $0x338] sm:$0xff] %v4343
        %4472 = vst [vmem:[%s354 + $0x340] sm:$0xff] %v4344
        %4473 = vst [vmem:[%s354 + $0x348] sm:$0xff] %v4345
        %4474 = vst [vmem:[%s354 + $0x350] sm:$0xff] %v4346
        %4475 = vst [vmem:[%s354 + $0x358] sm:$0xff] %v4347
        %4476 = vst [vmem:[%s354 + $0x360] sm:$0xff] %v4348
        %4477 = vst [vmem:[%s354 + $0x368] sm:$0xff] %v4349
        %4478 = vst [vmem:[%s354 + $0x370] sm:$0xff] %v4350
        %4479 = vst [vmem:[%s354 + $0x378] sm:$0xff] %v4351
        %4480 = vst [vmem:[%s354 + $0x380] sm:$0xff] %v4352
        %4481 = vst [vmem:[%s354 + $0x388] sm:$0xff] %v4353
        %4482 = vst [vmem:[%s354 + $0x390] sm:$0xff] %v4354
        %4483 = vst [vmem:[%s354 + $0x398] sm:$0xff] %v4355
        %4484 = vst [vmem:[%s354 + $0x3a0] sm:$0xff] %v4356
        %4485 = vst [vmem:[%s354 + $0x3a8] sm:$0xff] %v4357
        %4486 = vst [vmem:[%s354 + $0x3b0] sm:$0xff] %v4358
        %4487 = vst [vmem:[%s354 + $0x3b8] sm:$0xff] %v4359
        %4488 = vst [vmem:[%s354 + $0x3c0] sm:$0xff] %v4360
        %4489 = vst [vmem:[%s354 + $0x3c8] sm:$0xff] %v4361
        %4490 = vst [vmem:[%s354 + $0x3d0] sm:$0xff] %v4362
        %4491 = vst [vmem:[%s354 + $0x3d8] sm:$0xff] %v4363
        %4492 = vst [vmem:[%s354 + $0x3e0] sm:$0xff] %v4364
        %4493 = vst [vmem:[%s354 + $0x3e8] sm:$0xff] %v4365
        %4494 = vst [vmem:[%s354 + $0x3f0] sm:$0xff] %v4366
        %4495 = vst [vmem:[%s354 + $0x3f8] sm:$0xff] %v4367
        %v4496 = vpack.c.bf16 %v4244, %v4240
        %v4497 = vpack.c.bf16 %v4245, %v4241
        %v4498 = vpack.c.bf16 %v4252, %v4248
        %v4499 = vpack.c.bf16 %v4253, %v4249
        %v4500 = vpack.c.bf16 %v4260, %v4256
        %v4501 = vpack.c.bf16 %v4261, %v4257
        %v4502 = vpack.c.bf16 %v4268, %v4264
        %v4503 = vpack.c.bf16 %v4269, %v4265
        %v4504 = vpack.c.bf16 %v4276, %v4272
        %v4505 = vpack.c.bf16 %v4277, %v4273
        %v4506 = vpack.c.bf16 %v4284, %v4280
        %v4507 = vpack.c.bf16 %v4285, %v4281
        %v4508 = vpack.c.bf16 %v4292, %v4288
        %v4509 = vpack.c.bf16 %v4293, %v4289
        %v4510 = vpack.c.bf16 %v4300, %v4296
        %v4511 = vpack.c.bf16 %v4301, %v4297
        %v4512 = vpack.c.bf16 %v4308, %v4304
        %v4513 = vpack.c.bf16 %v4309, %v4305
        %v4514 = vpack.c.bf16 %v4316, %v4312
        %v4515 = vpack.c.bf16 %v4317, %v4313
        %v4516 = vpack.c.bf16 %v4324, %v4320
        %v4517 = vpack.c.bf16 %v4325, %v4321
        %v4518 = vpack.c.bf16 %v4332, %v4328
        %v4519 = vpack.c.bf16 %v4333, %v4329
        %v4520 = vpack.c.bf16 %v4340, %v4336
        %v4521 = vpack.c.bf16 %v4341, %v4337
        %v4522 = vpack.c.bf16 %v4348, %v4344
        %v4523 = vpack.c.bf16 %v4349, %v4345
        %v4524 = vpack.c.bf16 %v4356, %v4352
        %v4525 = vpack.c.bf16 %v4357, %v4353
        %v4526 = vpack.c.bf16 %v4364, %v4360
        %v4527 = vpack.c.bf16 %v4365, %v4361
        %v4528 = vld [vmem:[#allocation7] sm:$0xff]
        %v4529 = vld [vmem:[#allocation7 + $0x8] sm:$0xff]
        %v4530 = vld [vmem:[#allocation7 + $0x10] sm:$0xff]
        %v4531 = vld [vmem:[#allocation7 + $0x18] sm:$0xff]
        %v4532 = vld [vmem:[#allocation7 + $0x20] sm:$0xff]
        %v4533 = vld [vmem:[#allocation7 + $0x28] sm:$0xff]
        %v4534 = vld [vmem:[#allocation7 + $0x30] sm:$0xff]
        %v4535 = vld [vmem:[#allocation7 + $0x38] sm:$0xff]
        %v4536 = vld [vmem:[#allocation7 + $0x40] sm:$0xff]
        %v4537 = vld [vmem:[#allocation7 + $0x48] sm:$0xff]
        %v4538 = vld [vmem:[#allocation7 + $0x50] sm:$0xff]
        %v4539 = vld [vmem:[#allocation7 + $0x58] sm:$0xff]
        %v4540 = vld [vmem:[#allocation7 + $0x60] sm:$0xff]
        %v4541 = vld [vmem:[#allocation7 + $0x68] sm:$0xff]
        %v4542 = vld [vmem:[#allocation7 + $0x70] sm:$0xff]
        %v4543 = vld [vmem:[#allocation7 + $0x78] sm:$0xff]
        %v4544 = vld [vmem:[#allocation7 + $0x80] sm:$0xff]
        %v4545 = vld [vmem:[#allocation7 + $0x88] sm:$0xff]
        %v4546 = vld [vmem:[#allocation7 + $0x90] sm:$0xff]
        %v4547 = vld [vmem:[#allocation7 + $0x98] sm:$0xff]
        %v4548 = vld [vmem:[#allocation7 + $0xa0] sm:$0xff]
        %v4549 = vld [vmem:[#allocation7 + $0xa8] sm:$0xff]
        %v4550 = vld [vmem:[#allocation7 + $0xb0] sm:$0xff]
        %v4551 = vld [vmem:[#allocation7 + $0xb8] sm:$0xff]
        %v4552 = vld [vmem:[#allocation7 + $0xc0] sm:$0xff]
        %v4553 = vld [vmem:[#allocation7 + $0xc8] sm:$0xff]
        %v4554 = vld [vmem:[#allocation7 + $0xd0] sm:$0xff]
        %v4555 = vld [vmem:[#allocation7 + $0xd8] sm:$0xff]
        %v4556 = vld [vmem:[#allocation7 + $0xe0] sm:$0xff]
        %v4557 = vld [vmem:[#allocation7 + $0xe8] sm:$0xff]
        %v4558 = vld [vmem:[#allocation7 + $0xf0] sm:$0xff]
        %v4559 = vld [vmem:[#allocation7 + $0xf8] sm:$0xff]
        %v4560 = vld [vmem:[%s4] sm:$0x3]
        %v4562 = vlaneseq
        %v4563 = vshrl.u32 %v4562, 7
        %v4564 = vsub.s32 0, %v4563
        %v4565 = vrot.slane %v4560, %v4564
        %v4566 = vlaneseq
        %v4567 = vshrl.u32 %v4566, 7
        %v4568 = vsub.s32 1, %v4567
        %v4569 = vrot.slane %v4560, %v4568
        %v4604 = vunpack.c.l.b16 %v4528
        %v4605 = vunpack.c.h.b16 %v4528
        %v4606 = vunpack.c.l.b16 %v4529
        %v4607 = vunpack.c.h.b16 %v4529
        %v4608 = vunpack.c.l.b16 %v4530
        %v4609 = vunpack.c.h.b16 %v4530
        %v4610 = vunpack.c.l.b16 %v4531
        %v4611 = vunpack.c.h.b16 %v4531
        %v4612 = vunpack.c.l.b16 %v4532
        %v4613 = vunpack.c.h.b16 %v4532
        %v4614 = vunpack.c.l.b16 %v4533
        %v4615 = vunpack.c.h.b16 %v4533
        %v4616 = vunpack.c.l.b16 %v4534
        %v4617 = vunpack.c.h.b16 %v4534
        %v4618 = vunpack.c.l.b16 %v4535
        %v4619 = vunpack.c.h.b16 %v4535
        %v4620 = vunpack.c.l.b16 %v4536
        %v4621 = vunpack.c.h.b16 %v4536
        %v4622 = vunpack.c.l.b16 %v4537
        %v4623 = vunpack.c.h.b16 %v4537
        %v4624 = vunpack.c.l.b16 %v4538
        %v4625 = vunpack.c.h.b16 %v4538
        %v4626 = vunpack.c.l.b16 %v4539
        %v4627 = vunpack.c.h.b16 %v4539
        %v4628 = vunpack.c.l.b16 %v4540
        %v4629 = vunpack.c.h.b16 %v4540
        %v4630 = vunpack.c.l.b16 %v4541
        %v4631 = vunpack.c.h.b16 %v4541
        %v4632 = vunpack.c.l.b16 %v4542
        %v4633 = vunpack.c.h.b16 %v4542
        %v4634 = vunpack.c.l.b16 %v4543
        %v4635 = vunpack.c.h.b16 %v4543
        %v4636 = vunpack.c.l.b16 %v4544
        %v4637 = vunpack.c.h.b16 %v4544
        %v4638 = vunpack.c.l.b16 %v4545
        %v4639 = vunpack.c.h.b16 %v4545
        %v4640 = vunpack.c.l.b16 %v4546
        %v4641 = vunpack.c.h.b16 %v4546
        %v4642 = vunpack.c.l.b16 %v4547
        %v4643 = vunpack.c.h.b16 %v4547
        %v4644 = vunpack.c.l.b16 %v4548
        %v4645 = vunpack.c.h.b16 %v4548
        %v4646 = vunpack.c.l.b16 %v4549
        %v4647 = vunpack.c.h.b16 %v4549
        %v4648 = vunpack.c.l.b16 %v4550
        %v4649 = vunpack.c.h.b16 %v4550
        %v4650 = vunpack.c.l.b16 %v4551
        %v4651 = vunpack.c.h.b16 %v4551
        %v4652 = vunpack.c.l.b16 %v4552
        %v4653 = vunpack.c.h.b16 %v4552
        %v4654 = vunpack.c.l.b16 %v4553
        %v4655 = vunpack.c.h.b16 %v4553
        %v4656 = vunpack.c.l.b16 %v4554
        %v4657 = vunpack.c.h.b16 %v4554
        %v4658 = vunpack.c.l.b16 %v4555
        %v4659 = vunpack.c.h.b16 %v4555
        %v4660 = vunpack.c.l.b16 %v4556
        %v4661 = vunpack.c.h.b16 %v4556
        %v4662 = vunpack.c.l.b16 %v4557
        %v4663 = vunpack.c.h.b16 %v4557
        %v4664 = vunpack.c.l.b16 %v4558
        %v4665 = vunpack.c.h.b16 %v4558
        %v4666 = vunpack.c.l.b16 %v4559
        %v4667 = vunpack.c.h.b16 %v4559
        %v4668 = vpack.c.b16 %v4606, %v4604
        %v4669 = vpack.c.b16 %v4607, %v4605
        %v4670 = vpack.c.b16 %v4610, %v4608
        %v4671 = vpack.c.b16 %v4611, %v4609
        %v4672 = vpack.c.b16 %v4614, %v4612
        %v4673 = vpack.c.b16 %v4615, %v4613
        %v4674 = vpack.c.b16 %v4618, %v4616
        %v4675 = vpack.c.b16 %v4619, %v4617
        %v4676 = vpack.c.b16 %v4622, %v4620
        %v4677 = vpack.c.b16 %v4623, %v4621
        %v4678 = vpack.c.b16 %v4626, %v4624
        %v4679 = vpack.c.b16 %v4627, %v4625
        %v4680 = vpack.c.b16 %v4630, %v4628
        %v4681 = vpack.c.b16 %v4631, %v4629
        %v4682 = vpack.c.b16 %v4634, %v4632
        %v4683 = vpack.c.b16 %v4635, %v4633
        %v4684 = vpack.c.b16 %v4638, %v4636
        %v4685 = vpack.c.b16 %v4639, %v4637
        %v4686 = vpack.c.b16 %v4642, %v4640
        %v4687 = vpack.c.b16 %v4643, %v4641
        %v4688 = vpack.c.b16 %v4646, %v4644
        %v4689 = vpack.c.b16 %v4647, %v4645
        %v4690 = vpack.c.b16 %v4650, %v4648
        %v4691 = vpack.c.b16 %v4651, %v4649
        %v4692 = vpack.c.b16 %v4654, %v4652
        %v4693 = vpack.c.b16 %v4655, %v4653
        %v4694 = vpack.c.b16 %v4658, %v4656
        %v4695 = vpack.c.b16 %v4659, %v4657
        %v4696 = vpack.c.b16 %v4662, %v4660
        %v4697 = vpack.c.b16 %v4663, %v4661
        %v4698 = vpack.c.b16 %v4666, %v4664
        %v4699 = vpack.c.b16 %v4667, %v4665
        %4732 = vmatprep.subr.bf16.mxu0 %v4669
        %4733 = vmatpush1.bf16.msra.mxu0 %v4668
        %4734 = vmatprep.subr.bf16.mxu0 %v4671
        %4735 = vmatpush1.bf16.msra.mxu0 %v4670
        %4736 = vmatprep.subr.bf16.mxu0 %v4673
        %4737 = vmatpush1.bf16.msra.mxu0 %v4672
        %4738 = vmatprep.subr.bf16.mxu0 %v4675
        %4739 = vmatpush1.bf16.msra.mxu0 %v4674
        %4740 = vmatprep.subr.bf16.mxu0 %v4677
        %4741 = vmatpush1.bf16.msra.mxu0 %v4676
        %4742 = vmatprep.subr.bf16.mxu0 %v4679
        %4743 = vmatpush1.bf16.msra.mxu0 %v4678
        %4744 = vmatprep.subr.bf16.mxu0 %v4681
        %4745 = vmatpush1.bf16.msra.mxu0 %v4680
        %4746 = vmatprep.subr.bf16.mxu0 %v4683
        %4747 = vmatpush1.bf16.msra.mxu0 %v4682
        %4748 = vmatprep.subr.bf16.mxu0 %v4685
        %4749 = vmatpush1.bf16.msra.mxu0 %v4684
        %4750 = vmatprep.subr.bf16.mxu0 %v4687
        %4751 = vmatpush1.bf16.msra.mxu0 %v4686
        %4752 = vmatprep.subr.bf16.mxu0 %v4689
        %4753 = vmatpush1.bf16.msra.mxu0 %v4688
        %4754 = vmatprep.subr.bf16.mxu0 %v4691
        %4755 = vmatpush1.bf16.msra.mxu0 %v4690
        %4756 = vmatprep.subr.bf16.mxu0 %v4693
        %4757 = vmatpush1.bf16.msra.mxu0 %v4692
        %4758 = vmatprep.subr.bf16.mxu0 %v4695
        %4759 = vmatpush1.bf16.msra.mxu0 %v4694
        %4760 = vmatprep.subr.bf16.mxu0 %v4697
        %4761 = vmatpush1.bf16.msra.mxu0 %v4696
        %4762 = vmatprep.subr.bf16.mxu0 %v4699
        %4763 = vmatpush1.bf16.msra.mxu0 %v4698
        %4764 = vmatprep.mubr.bf16.mxu0 %v4497
        %4765 = vmatmul.mubr.bf16.gmra.mrb[0].mxu0 %v4496
        %v4766 = vpop.f32.mrb[0].mxu0
        %v4767 = vadd.f32 %v4565, %v4766
        %v4768 = vpop.f32.mrb[0].mxu0
        %v4769 = vadd.f32 %v4569, %v4768
        %v4770 = vpop.f32.mrb[0].mxu0
        %v4771 = vadd.f32 %v4565, %v4770
        %v4772 = vpop.f32.mrb[0].mxu0
        %v4773 = vadd.f32 %v4569, %v4772
        %4774 = vmatprep.mubr.bf16.mxu0 %v4499
        %4775 = vmatmul.mubr.bf16.gmra.mrb[0].mxu0 %v4498
        %v4776 = vpop.f32.mrb[0].mxu0
        %v4777 = vadd.f32 %v4565, %v4776
        %v4778 = vpop.f32.mrb[0].mxu0
        %v4779 = vadd.f32 %v4569, %v4778
        %v4780 = vpop.f32.mrb[0].mxu0
        %v4781 = vadd.f32 %v4565, %v4780
        %v4782 = vpop.f32.mrb[0].mxu0
        %v4783 = vadd.f32 %v4569, %v4782
        %4784 = vmatprep.mubr.bf16.mxu0 %v4501
        %4785 = vmatmul.mubr.bf16.gmra.mrb[0].mxu0 %v4500
        %v4786 = vpop.f32.mrb[0].mxu0
        %v4787 = vadd.f32 %v4565, %v4786
        %v4788 = vpop.f32.mrb[0].mxu0
        %v4789 = vadd.f32 %v4569, %v4788
        %v4790 = vpop.f32.mrb[0].mxu0
        %v4791 = vadd.f32 %v4565, %v4790
        %v4792 = vpop.f32.mrb[0].mxu0
        %v4793 = vadd.f32 %v4569, %v4792
        %4794 = vmatprep.mubr.bf16.mxu0 %v4503
        %4795 = vmatmul.mubr.bf16.gmra.mrb[0].mxu0 %v4502
        %v4796 = vpop.f32.mrb[0].mxu0
        %v4797 = vadd.f32 %v4565, %v4796
        %v4798 = vpop.f32.mrb[0].mxu0
        %v4799 = vadd.f32 %v4569, %v4798
        %v4800 = vpop.f32.mrb[0].mxu0
        %v4801 = vadd.f32 %v4565, %v4800
        %v4802 = vpop.f32.mrb[0].mxu0
        %v4803 = vadd.f32 %v4569, %v4802
        %4804 = vmatprep.mubr.bf16.mxu0 %v4505
        %4805 = vmatmul.mubr.bf16.gmra.mrb[0].mxu0 %v4504
        %v4806 = vpop.f32.mrb[0].mxu0
        %v4807 = vadd.f32 %v4565, %v4806
        %v4808 = vpop.f32.mrb[0].mxu0
        %v4809 = vadd.f32 %v4569, %v4808
        %v4810 = vpop.f32.mrb[0].mxu0
        %v4811 = vadd.f32 %v4565, %v4810
        %v4812 = vpop.f32.mrb[0].mxu0
        %v4813 = vadd.f32 %v4569, %v4812
        %4814 = vmatprep.mubr.bf16.mxu0 %v4507
        %4815 = vmatmul.mubr.bf16.gmra.mrb[0].mxu0 %v4506
        %v4816 = vpop.f32.mrb[0].mxu0
        %v4817 = vadd.f32 %v4565, %v4816
        %v4818 = vpop.f32.mrb[0].mxu0
        %v4819 = vadd.f32 %v4569, %v4818
        %v4820 = vpop.f32.mrb[0].mxu0
        %v4821 = vadd.f32 %v4565, %v4820
        %v4822 = vpop.f32.mrb[0].mxu0
        %v4823 = vadd.f32 %v4569, %v4822
        %4824 = vmatprep.mubr.bf16.mxu0 %v4509
        %4825 = vmatmul.mubr.bf16.gmra.mrb[0].mxu0 %v4508
        %v4826 = vpop.f32.mrb[0].mxu0
        %v4827 = vadd.f32 %v4565, %v4826
        %v4828 = vpop.f32.mrb[0].mxu0
        %v4829 = vadd.f32 %v4569, %v4828
        %v4830 = vpop.f32.mrb[0].mxu0
        %v4831 = vadd.f32 %v4565, %v4830
        %v4832 = vpop.f32.mrb[0].mxu0
        %v4833 = vadd.f32 %v4569, %v4832
        %4834 = vmatprep.mubr.bf16.mxu0 %v4511
        %4835 = vmatmul.mubr.bf16.gmra.mrb[0].mxu0 %v4510
        %v4836 = vpop.f32.mrb[0].mxu0
        %v4837 = vadd.f32 %v4565, %v4836
        %v4838 = vpop.f32.mrb[0].mxu0
        %v4839 = vadd.f32 %v4569, %v4838
        %v4840 = vpop.f32.mrb[0].mxu0
        %v4841 = vadd.f32 %v4565, %v4840
        %v4842 = vpop.f32.mrb[0].mxu0
        %v4843 = vadd.f32 %v4569, %v4842
        %4844 = vmatprep.mubr.bf16.mxu0 %v4513
        %4845 = vmatmul.mubr.bf16.gmra.mrb[0].mxu0 %v4512
        %v4846 = vpop.f32.mrb[0].mxu0
        %v4847 = vadd.f32 %v4565, %v4846
        %v4848 = vpop.f32.mrb[0].mxu0
        %v4849 = vadd.f32 %v4569, %v4848
        %v4850 = vpop.f32.mrb[0].mxu0
        %v4851 = vadd.f32 %v4565, %v4850
        %v4852 = vpop.f32.mrb[0].mxu0
        %v4853 = vadd.f32 %v4569, %v4852
        %4854 = vmatprep.mubr.bf16.mxu0 %v4515
        %4855 = vmatmul.mubr.bf16.gmra.mrb[0].mxu0 %v4514
        %v4856 = vpop.f32.mrb[0].mxu0
        %v4857 = vadd.f32 %v4565, %v4856
        %v4858 = vpop.f32.mrb[0].mxu0
        %v4859 = vadd.f32 %v4569, %v4858
        %v4860 = vpop.f32.mrb[0].mxu0
        %v4861 = vadd.f32 %v4565, %v4860
        %v4862 = vpop.f32.mrb[0].mxu0
        %v4863 = vadd.f32 %v4569, %v4862
        %4864 = vmatprep.mubr.bf16.mxu0 %v4517
        %4865 = vmatmul.mubr.bf16.gmra.mrb[0].mxu0 %v4516
        %v4866 = vpop.f32.mrb[0].mxu0
        %v4867 = vadd.f32 %v4565, %v4866
        %v4868 = vpop.f32.mrb[0].mxu0
        %v4869 = vadd.f32 %v4569, %v4868
        %v4870 = vpop.f32.mrb[0].mxu0
        %v4871 = vadd.f32 %v4565, %v4870
        %v4872 = vpop.f32.mrb[0].mxu0
        %v4873 = vadd.f32 %v4569, %v4872
        %4874 = vmatprep.mubr.bf16.mxu0 %v4519
        %4875 = vmatmul.mubr.bf16.gmra.mrb[0].mxu0 %v4518
        %v4876 = vpop.f32.mrb[0].mxu0
        %v4877 = vadd.f32 %v4565, %v4876
        %v4878 = vpop.f32.mrb[0].mxu0
        %v4879 = vadd.f32 %v4569, %v4878
        %v4880 = vpop.f32.mrb[0].mxu0
        %v4881 = vadd.f32 %v4565, %v4880
        %v4882 = vpop.f32.mrb[0].mxu0
        %v4883 = vadd.f32 %v4569, %v4882
        %4884 = vmatprep.mubr.bf16.mxu0 %v4521
        %4885 = vmatmul.mubr.bf16.gmra.mrb[0].mxu0 %v4520
        %v4886 = vpop.f32.mrb[0].mxu0
        %v4887 = vadd.f32 %v4565, %v4886
        %v4888 = vpop.f32.mrb[0].mxu0
        %v4889 = vadd.f32 %v4569, %v4888
        %v4890 = vpop.f32.mrb[0].mxu0
        %v4891 = vadd.f32 %v4565, %v4890
        %v4892 = vpop.f32.mrb[0].mxu0
        %v4893 = vadd.f32 %v4569, %v4892
        %4894 = vmatprep.mubr.bf16.mxu0 %v4523
        %4895 = vmatmul.mubr.bf16.gmra.mrb[0].mxu0 %v4522
        %v4896 = vpop.f32.mrb[0].mxu0
        %v4897 = vadd.f32 %v4565, %v4896
        %v4898 = vpop.f32.mrb[0].mxu0
        %v4899 = vadd.f32 %v4569, %v4898
        %v4900 = vpop.f32.mrb[0].mxu0
        %v4901 = vadd.f32 %v4565, %v4900
        %v4902 = vpop.f32.mrb[0].mxu0
        %v4903 = vadd.f32 %v4569, %v4902
        %4904 = vmatprep.mubr.bf16.mxu0 %v4525
        %4905 = vmatmul.mubr.bf16.gmra.mrb[0].mxu0 %v4524
        %v4906 = vpop.f32.mrb[0].mxu0
        %v4907 = vadd.f32 %v4565, %v4906
        %v4908 = vpop.f32.mrb[0].mxu0
        %v4909 = vadd.f32 %v4569, %v4908
        %v4910 = vpop.f32.mrb[0].mxu0
        %v4911 = vadd.f32 %v4565, %v4910
        %v4912 = vpop.f32.mrb[0].mxu0
        %v4913 = vadd.f32 %v4569, %v4912
        %4914 = vmatprep.mubr.bf16.mxu0 %v4527
        %4915 = vmatmul.mubr.bf16.gmra.mrb[0].mxu0 %v4526
        %v4916 = vpop.f32.mrb[0].mxu0
        %v4917 = vadd.f32 %v4565, %v4916
        %v4918 = vpop.f32.mrb[0].mxu0
        %v4919 = vadd.f32 %v4569, %v4918
        %v4920 = vpop.f32.mrb[0].mxu0
        %v4921 = vadd.f32 %v4565, %v4920
        %v4922 = vpop.f32.mrb[0].mxu0
        %v4923 = vadd.f32 %v4569, %v4922
        %4924 = vdwg.mxu0
        %v4925 = vtanh.pop %v4767
        %v4926 = vtanh.pop %v4771
        %v4927 = vtanh.pop %v4777
        %v4928 = vtanh.pop %v4781
        %v4929 = vtanh.pop %v4787
        %v4930 = vtanh.pop %v4791
        %v4931 = vtanh.pop %v4797
        %v4932 = vtanh.pop %v4801
        %v4933 = vtanh.pop %v4807
        %v4934 = vtanh.pop %v4811
        %v4935 = vtanh.pop %v4817
        %v4936 = vtanh.pop %v4821
        %v4937 = vtanh.pop %v4827
        %v4938 = vtanh.pop %v4831
        %v4939 = vtanh.pop %v4837
        %v4940 = vtanh.pop %v4841
        %v4941 = vtanh.pop %v4847
        %v4942 = vtanh.pop %v4851
        %v4943 = vtanh.pop %v4857
        %v4944 = vtanh.pop %v4861
        %v4945 = vtanh.pop %v4867
        %v4946 = vtanh.pop %v4871
        %v4947 = vtanh.pop %v4877
        %v4948 = vtanh.pop %v4881
        %v4949 = vtanh.pop %v4887
        %v4950 = vtanh.pop %v4891
        %v4951 = vtanh.pop %v4897
        %v4952 = vtanh.pop %v4901
        %v4953 = vtanh.pop %v4907
        %v4954 = vtanh.pop %v4911
        %v4955 = vtanh.pop %v4917
        %v4956 = vtanh.pop %v4921
        %v4957 = vsub.f32 0.0, %v4769
        %v4958 = vsub.f32 0.0, %v4773
        %v4959 = vsub.f32 0.0, %v4779
        %v4960 = vsub.f32 0.0, %v4783
        %v4961 = vsub.f32 0.0, %v4789
        %v4962 = vsub.f32 0.0, %v4793
        %v4963 = vsub.f32 0.0, %v4799
        %v4964 = vsub.f32 0.0, %v4803
        %v4965 = vsub.f32 0.0, %v4809
        %v4966 = vsub.f32 0.0, %v4813
        %v4967 = vsub.f32 0.0, %v4819
        %v4968 = vsub.f32 0.0, %v4823
        %v4969 = vsub.f32 0.0, %v4829
        %v4970 = vsub.f32 0.0, %v4833
        %v4971 = vsub.f32 0.0, %v4839
        %v4972 = vsub.f32 0.0, %v4843
        %v4973 = vsub.f32 0.0, %v4849
        %v4974 = vsub.f32 0.0, %v4853
        %v4975 = vsub.f32 0.0, %v4859
        %v4976 = vsub.f32 0.0, %v4863
        %v4977 = vsub.f32 0.0, %v4869
        %v4978 = vsub.f32 0.0, %v4873
        %v4979 = vsub.f32 0.0, %v4879
        %v4980 = vsub.f32 0.0, %v4883
        %v4981 = vsub.f32 0.0, %v4889
        %v4982 = vsub.f32 0.0, %v4893
        %v4983 = vsub.f32 0.0, %v4899
        %v4984 = vsub.f32 0.0, %v4903
        %v4985 = vsub.f32 0.0, %v4909
        %v4986 = vsub.f32 0.0, %v4913
        %v4987 = vsub.f32 0.0, %v4919
        %v4988 = vsub.f32 0.0, %v4923
        %v4989 = vmul.f32 %v4957, 1.442695
        %v4990 = vpow.pop %v4989
        %v4991 = vmul.f32 %v4958, 1.442695
        %v4992 = vpow.pop %v4991
        %v4993 = vmul.f32 %v4959, 1.442695
        %v4994 = vpow.pop %v4993
        %v4995 = vmul.f32 %v4960, 1.442695
        %v4996 = vpow.pop %v4995
        %v4997 = vmul.f32 %v4961, 1.442695
        %v4998 = vpow.pop %v4997
        %v4999 = vmul.f32 %v4962, 1.442695
        %v5000 = vpow.pop %v4999
        %v5001 = vmul.f32 %v4963, 1.442695
        %v5002 = vpow.pop %v5001
        %v5003 = vmul.f32 %v4964, 1.442695
        %v5004 = vpow.pop %v5003
        %v5005 = vmul.f32 %v4965, 1.442695
        %v5006 = vpow.pop %v5005
        %v5007 = vmul.f32 %v4966, 1.442695
        %v5008 = vpow.pop %v5007
        %v5009 = vmul.f32 %v4967, 1.442695
        %v5010 = vpow.pop %v5009
        %v5011 = vmul.f32 %v4968, 1.442695
        %v5012 = vpow.pop %v5011
        %v5013 = vmul.f32 %v4969, 1.442695
        %v5014 = vpow.pop %v5013
        %v5015 = vmul.f32 %v4970, 1.442695
        %v5016 = vpow.pop %v5015
        %v5017 = vmul.f32 %v4971, 1.442695
        %v5018 = vpow.pop %v5017
        %v5019 = vmul.f32 %v4972, 1.442695
        %v5020 = vpow.pop %v5019
        %v5021 = vmul.f32 %v4973, 1.442695
        %v5022 = vpow.pop %v5021
        %v5023 = vmul.f32 %v4974, 1.442695
        %v5024 = vpow.pop %v5023
        %v5025 = vmul.f32 %v4975, 1.442695
        %v5026 = vpow.pop %v5025
        %v5027 = vmul.f32 %v4976, 1.442695
        %v5028 = vpow.pop %v5027
        %v5029 = vmul.f32 %v4977, 1.442695
        %v5030 = vpow.pop %v5029
        %v5031 = vmul.f32 %v4978, 1.442695
        %v5032 = vpow.pop %v5031
        %v5033 = vmul.f32 %v4979, 1.442695
        %v5034 = vpow.pop %v5033
        %v5035 = vmul.f32 %v4980, 1.442695
        %v5036 = vpow.pop %v5035
        %v5037 = vmul.f32 %v4981, 1.442695
        %v5038 = vpow.pop %v5037
        %v5039 = vmul.f32 %v4982, 1.442695
        %v5040 = vpow.pop %v5039
        %v5041 = vmul.f32 %v4983, 1.442695
        %v5042 = vpow.pop %v5041
        %v5043 = vmul.f32 %v4984, 1.442695
        %v5044 = vpow.pop %v5043
        %v5045 = vmul.f32 %v4985, 1.442695
        %v5046 = vpow.pop %v5045
        %v5047 = vmul.f32 %v4986, 1.442695
        %v5048 = vpow.pop %v5047
        %v5049 = vmul.f32 %v4987, 1.442695
        %v5050 = vpow.pop %v5049
        %v5051 = vmul.f32 %v4988, 1.442695
        %v5052 = vpow.pop %v5051
        %v5053 = vadd.f32 %v4990, 1.0
        %v5054 = vadd.f32 %v4992, 1.0
        %v5055 = vadd.f32 %v4994, 1.0
        %v5056 = vadd.f32 %v4996, 1.0
        %v5057 = vadd.f32 %v4998, 1.0
        %v5058 = vadd.f32 %v5000, 1.0
        %v5059 = vadd.f32 %v5002, 1.0
        %v5060 = vadd.f32 %v5004, 1.0
        %v5061 = vadd.f32 %v5006, 1.0
        %v5062 = vadd.f32 %v5008, 1.0
        %v5063 = vadd.f32 %v5010, 1.0
        %v5064 = vadd.f32 %v5012, 1.0
        %v5065 = vadd.f32 %v5014, 1.0
        %v5066 = vadd.f32 %v5016, 1.0
        %v5067 = vadd.f32 %v5018, 1.0
        %v5068 = vadd.f32 %v5020, 1.0
        %v5069 = vadd.f32 %v5022, 1.0
        %v5070 = vadd.f32 %v5024, 1.0
        %v5071 = vadd.f32 %v5026, 1.0
        %v5072 = vadd.f32 %v5028, 1.0
        %v5073 = vadd.f32 %v5030, 1.0
        %v5074 = vadd.f32 %v5032, 1.0
        %v5075 = vadd.f32 %v5034, 1.0
        %v5076 = vadd.f32 %v5036, 1.0
        %v5077 = vadd.f32 %v5038, 1.0
        %v5078 = vadd.f32 %v5040, 1.0
        %v5079 = vadd.f32 %v5042, 1.0
        %v5080 = vadd.f32 %v5044, 1.0
        %v5081 = vadd.f32 %v5046, 1.0
        %v5082 = vadd.f32 %v5048, 1.0
        %v5083 = vadd.f32 %v5050, 1.0
        %v5084 = vadd.f32 %v5052, 1.0
        %v5085 = vrcp.pop %v5053
        %v5086 = vmul.f32 1.0, %v5085
        %v5087 = vrcp.pop %v5054
        %v5088 = vmul.f32 1.0, %v5087
        %v5089 = vrcp.pop %v5055
        %v5090 = vmul.f32 1.0, %v5089
        %v5091 = vrcp.pop %v5056
        %v5092 = vmul.f32 1.0, %v5091
        %v5093 = vrcp.pop %v5057
        %v5094 = vmul.f32 1.0, %v5093
        %v5095 = vrcp.pop %v5058
        %v5096 = vmul.f32 1.0, %v5095
        %v5097 = vrcp.pop %v5059
        %v5098 = vmul.f32 1.0, %v5097
        %v5099 = vrcp.pop %v5060
        %v5100 = vmul.f32 1.0, %v5099
        %v5101 = vrcp.pop %v5061
        %v5102 = vmul.f32 1.0, %v5101
        %v5103 = vrcp.pop %v5062
        %v5104 = vmul.f32 1.0, %v5103
        %v5105 = vrcp.pop %v5063
        %v5106 = vmul.f32 1.0, %v5105
        %v5107 = vrcp.pop %v5064
        %v5108 = vmul.f32 1.0, %v5107
        %v5109 = vrcp.pop %v5065
        %v5110 = vmul.f32 1.0, %v5109
        %v5111 = vrcp.pop %v5066
        %v5112 = vmul.f32 1.0, %v5111
        %v5113 = vrcp.pop %v5067
        %v5114 = vmul.f32 1.0, %v5113
        %v5115 = vrcp.pop %v5068
        %v5116 = vmul.f32 1.0, %v5115
        %v5117 = vrcp.pop %v5069
        %v5118 = vmul.f32 1.0, %v5117
        %v5119 = vrcp.pop %v5070
        %v5120 = vmul.f32 1.0, %v5119
        %v5121 = vrcp.pop %v5071
        %v5122 = vmul.f32 1.0, %v5121
        %v5123 = vrcp.pop %v5072
        %v5124 = vmul.f32 1.0, %v5123
        %v5125 = vrcp.pop %v5073
        %v5126 = vmul.f32 1.0, %v5125
        %v5127 = vrcp.pop %v5074
        %v5128 = vmul.f32 1.0, %v5127
        %v5129 = vrcp.pop %v5075
        %v5130 = vmul.f32 1.0, %v5129
        %v5131 = vrcp.pop %v5076
        %v5132 = vmul.f32 1.0, %v5131
        %v5133 = vrcp.pop %v5077
        %v5134 = vmul.f32 1.0, %v5133
        %v5135 = vrcp.pop %v5078
        %v5136 = vmul.f32 1.0, %v5135
        %v5137 = vrcp.pop %v5079
        %v5138 = vmul.f32 1.0, %v5137
        %v5139 = vrcp.pop %v5080
        %v5140 = vmul.f32 1.0, %v5139
        %v5141 = vrcp.pop %v5081
        %v5142 = vmul.f32 1.0, %v5141
        %v5143 = vrcp.pop %v5082
        %v5144 = vmul.f32 1.0, %v5143
        %v5145 = vrcp.pop %v5083
        %v5146 = vmul.f32 1.0, %v5145
        %v5147 = vrcp.pop %v5084
        %v5148 = vmul.f32 1.0, %v5147
        %v5149 = vmul.f32 %v4925, %v5086
        %v5150 = vmul.f32 %v4926, %v5088
        %v5151 = vmul.f32 %v4927, %v5090
        %v5152 = vmul.f32 %v4928, %v5092
        %v5153 = vmul.f32 %v4929, %v5094
        %v5154 = vmul.f32 %v4930, %v5096
        %v5155 = vmul.f32 %v4931, %v5098
        %v5156 = vmul.f32 %v4932, %v5100
        %v5157 = vmul.f32 %v4933, %v5102
        %v5158 = vmul.f32 %v4934, %v5104
        %v5159 = vmul.f32 %v4935, %v5106
        %v5160 = vmul.f32 %v4936, %v5108
        %v5161 = vmul.f32 %v4937, %v5110
        %v5162 = vmul.f32 %v4938, %v5112
        %v5163 = vmul.f32 %v4939, %v5114
        %v5164 = vmul.f32 %v4940, %v5116
        %v5165 = vmul.f32 %v4941, %v5118
        %v5166 = vmul.f32 %v4942, %v5120
        %v5167 = vmul.f32 %v4943, %v5122
        %v5168 = vmul.f32 %v4944, %v5124
        %v5169 = vmul.f32 %v4945, %v5126
        %v5170 = vmul.f32 %v4946, %v5128
        %v5171 = vmul.f32 %v4947, %v5130
        %v5172 = vmul.f32 %v4948, %v5132
        %v5173 = vmul.f32 %v4949, %v5134
        %v5174 = vmul.f32 %v4950, %v5136
        %v5175 = vmul.f32 %v4951, %v5138
        %v5176 = vmul.f32 %v4952, %v5140
        %v5177 = vmul.f32 %v4953, %v5142
        %v5178 = vmul.f32 %v4954, %v5144
        %v5179 = vmul.f32 %v4955, %v5146
        %v5180 = vmul.f32 %v4956, %v5148
        %v5181 = vld [vmem:[%s5] sm:$0x1]
        %v5183 = vlaneseq
        %v5184 = vshrl.u32 %v5183, 7
        %v5185 = vsub.s32 0, %v5184
        %v5186 = vrot.slane %v5181, %v5185
        %v5188 = vmul.f32 %v5149, %v5186
        %v5189 = vmul.f32 %v5150, %v5186
        %v5190 = vmul.f32 %v5151, %v5186
        %v5191 = vmul.f32 %v5152, %v5186
        %v5192 = vmul.f32 %v5153, %v5186
        %v5193 = vmul.f32 %v5154, %v5186
        %v5194 = vmul.f32 %v5155, %v5186
        %v5195 = vmul.f32 %v5156, %v5186
        %v5196 = vmul.f32 %v5157, %v5186
        %v5197 = vmul.f32 %v5158, %v5186
        %v5198 = vmul.f32 %v5159, %v5186
        %v5199 = vmul.f32 %v5160, %v5186
        %v5200 = vmul.f32 %v5161, %v5186
        %v5201 = vmul.f32 %v5162, %v5186
        %v5202 = vmul.f32 %v5163, %v5186
        %v5203 = vmul.f32 %v5164, %v5186
        %v5204 = vmul.f32 %v5165, %v5186
        %v5205 = vmul.f32 %v5166, %v5186
        %v5206 = vmul.f32 %v5167, %v5186
        %v5207 = vmul.f32 %v5168, %v5186
        %v5208 = vmul.f32 %v5169, %v5186
        %v5209 = vmul.f32 %v5170, %v5186
        %v5210 = vmul.f32 %v5171, %v5186
        %v5211 = vmul.f32 %v5172, %v5186
        %v5212 = vmul.f32 %v5173, %v5186
        %v5213 = vmul.f32 %v5174, %v5186
        %v5214 = vmul.f32 %v5175, %v5186
        %v5215 = vmul.f32 %v5176, %v5186
        %v5216 = vmul.f32 %v5177, %v5186
        %v5217 = vmul.f32 %v5178, %v5186
        %v5218 = vmul.f32 %v5179, %v5186
        %v5219 = vmul.f32 %v5180, %v5186
        %5220 = vadd.xlane.f32.xlu0 %v5188
        %v5221 = vpop.xlane.xlu0 %5220
        %5222 = vadd.xlane.f32.xlu0 %v5189
        %v5223 = vpop.xlane.xlu0 %5222
        %5224 = vadd.xlane.f32.xlu0 %v5190
        %v5225 = vpop.xlane.xlu0 %5224
        %5226 = vadd.xlane.f32.xlu0 %v5191
        %v5227 = vpop.xlane.xlu0 %5226
        %5228 = vadd.xlane.f32.xlu0 %v5192
        %v5229 = vpop.xlane.xlu0 %5228
        %5230 = vadd.xlane.f32.xlu0 %v5193
        %v5231 = vpop.xlane.xlu0 %5230
        %5232 = vadd.xlane.f32.xlu0 %v5194
        %v5233 = vpop.xlane.xlu0 %5232
        %5234 = vadd.xlane.f32.xlu0 %v5195
        %v5235 = vpop.xlane.xlu0 %5234
        %5236 = vadd.xlane.f32.xlu0 %v5196
        %v5237 = vpop.xlane.xlu0 %5236
        %5238 = vadd.xlane.f32.xlu0 %v5197
        %v5239 = vpop.xlane.xlu0 %5238
        %5240 = vadd.xlane.f32.xlu0 %v5198
        %v5241 = vpop.xlane.xlu0 %5240
        %5242 = vadd.xlane.f32.xlu0 %v5199
        %v5243 = vpop.xlane.xlu0 %5242
        %5244 = vadd.xlane.f32.xlu0 %v5200
        %v5245 = vpop.xlane.xlu0 %5244
        %5246 = vadd.xlane.f32.xlu0 %v5201
        %v5247 = vpop.xlane.xlu0 %5246
        %5248 = vadd.xlane.f32.xlu0 %v5202
        %v5249 = vpop.xlane.xlu0 %5248
        %5250 = vadd.xlane.f32.xlu0 %v5203
        %v5251 = vpop.xlane.xlu0 %5250
        %5252 = vadd.xlane.f32.xlu0 %v5204
        %v5253 = vpop.xlane.xlu0 %5252
        %5254 = vadd.xlane.f32.xlu0 %v5205
        %v5255 = vpop.xlane.xlu0 %5254
        %5256 = vadd.xlane.f32.xlu0 %v5206
        %v5257 = vpop.xlane.xlu0 %5256
        %5258 = vadd.xlane.f32.xlu0 %v5207
        %v5259 = vpop.xlane.xlu0 %5258
        %5260 = vadd.xlane.f32.xlu0 %v5208
        %v5261 = vpop.xlane.xlu0 %5260
        %5262 = vadd.xlane.f32.xlu0 %v5209
        %v5263 = vpop.xlane.xlu0 %5262
        %5264 = vadd.xlane.f32.xlu0 %v5210
        %v5265 = vpop.xlane.xlu0 %5264
        %5266 = vadd.xlane.f32.xlu0 %v5211
        %v5267 = vpop.xlane.xlu0 %5266
        %5268 = vadd.xlane.f32.xlu0 %v5212
        %v5269 = vpop.xlane.xlu0 %5268
        %5270 = vadd.xlane.f32.xlu0 %v5213
        %v5271 = vpop.xlane.xlu0 %5270
        %5272 = vadd.xlane.f32.xlu0 %v5214
        %v5273 = vpop.xlane.xlu0 %5272
        %5274 = vadd.xlane.f32.xlu0 %v5215
        %v5275 = vpop.xlane.xlu0 %5274
        %5276 = vadd.xlane.f32.xlu0 %v5216
        %v5277 = vpop.xlane.xlu0 %5276
        %5278 = vadd.xlane.f32.xlu0 %v5217
        %v5279 = vpop.xlane.xlu0 %5278
        %5280 = vadd.xlane.f32.xlu0 %v5218
        %v5281 = vpop.xlane.xlu0 %5280
        %5282 = vadd.xlane.f32.xlu0 %v5219
        %v5283 = vpop.xlane.xlu0 %5282
        %v5284 = vld [vmem:[%s6] sm:$0x1]
        %v5286 = vlaneseq
        %v5287 = vshrl.u32 %v5286, 7
        %v5288 = vsub.s32 0, %v5287
        %v5289 = vrot.slane %v5284, %v5288
        %v5291 = vadd.f32 %v5221, %v5289
        %v5292 = vadd.f32 %v5223, %v5289
        %v5293 = vadd.f32 %v5225, %v5289
        %v5294 = vadd.f32 %v5227, %v5289
        %v5295 = vadd.f32 %v5229, %v5289
        %v5296 = vadd.f32 %v5231, %v5289
        %v5297 = vadd.f32 %v5233, %v5289
        %v5298 = vadd.f32 %v5235, %v5289
        %v5299 = vadd.f32 %v5237, %v5289
        %v5300 = vadd.f32 %v5239, %v5289
        %v5301 = vadd.f32 %v5241, %v5289
        %v5302 = vadd.f32 %v5243, %v5289
        %v5303 = vadd.f32 %v5245, %v5289
        %v5304 = vadd.f32 %v5247, %v5289
        %v5305 = vadd.f32 %v5249, %v5289
        %v5306 = vadd.f32 %v5251, %v5289
        %v5307 = vadd.f32 %v5253, %v5289
        %v5308 = vadd.f32 %v5255, %v5289
        %v5309 = vadd.f32 %v5257, %v5289
        %v5310 = vadd.f32 %v5259, %v5289
        %v5311 = vadd.f32 %v5261, %v5289
        %v5312 = vadd.f32 %v5263, %v5289
        %v5313 = vadd.f32 %v5265, %v5289
        %v5314 = vadd.f32 %v5267, %v5289
        %v5315 = vadd.f32 %v5269, %v5289
        %v5316 = vadd.f32 %v5271, %v5289
        %v5317 = vadd.f32 %v5273, %v5289
        %v5318 = vadd.f32 %v5275, %v5289
        %v5319 = vadd.f32 %v5277, %v5289
        %v5320 = vadd.f32 %v5279, %v5289
        %v5321 = vadd.f32 %v5281, %v5289
        %v5322 = vadd.f32 %v5283, %v5289
        %v5323 = vpack.c.bf16 %v4246, %v4242
        %v5324 = vpack.c.bf16 %v4247, %v4243
        %v5325 = vpack.c.bf16 %v4254, %v4250
        %v5326 = vpack.c.bf16 %v4255, %v4251
        %v5327 = vpack.c.bf16 %v4262, %v4258
        %v5328 = vpack.c.bf16 %v4263, %v4259
        %v5329 = vpack.c.bf16 %v4270, %v4266
        %v5330 = vpack.c.bf16 %v4271, %v4267
        %v5331 = vpack.c.bf16 %v4278, %v4274
        %v5332 = vpack.c.bf16 %v4279, %v4275
        %v5333 = vpack.c.bf16 %v4286, %v4282
        %v5334 = vpack.c.bf16 %v4287, %v4283
        %v5335 = vpack.c.bf16 %v4294, %v4290
        %v5336 = vpack.c.bf16 %v4295, %v4291
        %v5337 = vpack.c.bf16 %v4302, %v4298
        %v5338 = vpack.c.bf16 %v4303, %v4299
        %v5339 = vpack.c.bf16 %v4310, %v4306
        %v5340 = vpack.c.bf16 %v4311, %v4307
        %v5341 = vpack.c.bf16 %v4318, %v4314
        %v5342 = vpack.c.bf16 %v4319, %v4315
        %v5343 = vpack.c.bf16 %v4326, %v4322
        %v5344 = vpack.c.bf16 %v4327, %v4323
        %v5345 = vpack.c.bf16 %v4334, %v4330
        %v5346 = vpack.c.bf16 %v4335, %v4331
        %v5347 = vpack.c.bf16 %v4342, %v4338
        %v5348 = vpack.c.bf16 %v4343, %v4339
        %v5349 = vpack.c.bf16 %v4350, %v4346
        %v5350 = vpack.c.bf16 %v4351, %v4347
        %v5351 = vpack.c.bf16 %v4358, %v4354
        %v5352 = vpack.c.bf16 %v4359, %v4355
        %v5353 = vpack.c.bf16 %v4366, %v4362
        %v5354 = vpack.c.bf16 %v4367, %v4363
        %s5355 = scalar_lea.vmem [#allocation7], 256
        %v5356 = vld [vmem:[%s5355] sm:$0xff]
        %v5357 = vld [vmem:[%s5355 + $0x8] sm:$0xff]
        %v5358 = vld [vmem:[%s5355 + $0x10] sm:$0xff]
        %v5359 = vld [vmem:[%s5355 + $0x18] sm:$0xff]
        %v5360 = vld [vmem:[%s5355 + $0x20] sm:$0xff]
        %v5361 = vld [vmem:[%s5355 + $0x28] sm:$0xff]
        %v5362 = vld [vmem:[%s5355 + $0x30] sm:$0xff]
        %v5363 = vld [vmem:[%s5355 + $0x38] sm:$0xff]
        %v5364 = vld [vmem:[%s5355 + $0x40] sm:$0xff]
        %v5365 = vld [vmem:[%s5355 + $0x48] sm:$0xff]
        %v5366 = vld [vmem:[%s5355 + $0x50] sm:$0xff]
        %v5367 = vld [vmem:[%s5355 + $0x58] sm:$0xff]
        %v5368 = vld [vmem:[%s5355 + $0x60] sm:$0xff]
        %v5369 = vld [vmem:[%s5355 + $0x68] sm:$0xff]
        %v5370 = vld [vmem:[%s5355 + $0x70] sm:$0xff]
        %v5371 = vld [vmem:[%s5355 + $0x78] sm:$0xff]
        %v5372 = vld [vmem:[%s5355 + $0x80] sm:$0xff]
        %v5373 = vld [vmem:[%s5355 + $0x88] sm:$0xff]
        %v5374 = vld [vmem:[%s5355 + $0x90] sm:$0xff]
        %v5375 = vld [vmem:[%s5355 + $0x98] sm:$0xff]
        %v5376 = vld [vmem:[%s5355 + $0xa0] sm:$0xff]
        %v5377 = vld [vmem:[%s5355 + $0xa8] sm:$0xff]
        %v5378 = vld [vmem:[%s5355 + $0xb0] sm:$0xff]
        %v5379 = vld [vmem:[%s5355 + $0xb8] sm:$0xff]
        %v5380 = vld [vmem:[%s5355 + $0xc0] sm:$0xff]
        %v5381 = vld [vmem:[%s5355 + $0xc8] sm:$0xff]
        %v5382 = vld [vmem:[%s5355 + $0xd0] sm:$0xff]
        %v5383 = vld [vmem:[%s5355 + $0xd8] sm:$0xff]
        %v5384 = vld [vmem:[%s5355 + $0xe0] sm:$0xff]
        %v5385 = vld [vmem:[%s5355 + $0xe8] sm:$0xff]
        %v5386 = vld [vmem:[%s5355 + $0xf0] sm:$0xff]
        %v5387 = vld [vmem:[%s5355 + $0xf8] sm:$0xff]
        %s5388 = scalar_lea.vmem %s4, 2
        %v5389 = vld [vmem:[%s5388] sm:$0x3]
        %v5391 = vlaneseq
        %v5392 = vshrl.u32 %v5391, 7
        %v5393 = vsub.s32 0, %v5392
        %v5394 = vrot.slane %v5389, %v5393
        %v5395 = vlaneseq
        %v5396 = vshrl.u32 %v5395, 7
        %v5397 = vsub.s32 1, %v5396
        %v5398 = vrot.slane %v5389, %v5397
        %v5433 = vunpack.c.l.b16 %v5356
        %v5434 = vunpack.c.h.b16 %v5356
        %v5435 = vunpack.c.l.b16 %v5357
        %v5436 = vunpack.c.h.b16 %v5357
        %v5437 = vunpack.c.l.b16 %v5358
        %v5438 = vunpack.c.h.b16 %v5358
        %v5439 = vunpack.c.l.b16 %v5359
        %v5440 = vunpack.c.h.b16 %v5359
        %v5441 = vunpack.c.l.b16 %v5360
        %v5442 = vunpack.c.h.b16 %v5360
        %v5443 = vunpack.c.l.b16 %v5361
        %v5444 = vunpack.c.h.b16 %v5361
        %v5445 = vunpack.c.l.b16 %v5362
        %v5446 = vunpack.c.h.b16 %v5362
        %v5447 = vunpack.c.l.b16 %v5363
        %v5448 = vunpack.c.h.b16 %v5363
        %v5449 = vunpack.c.l.b16 %v5364
        %v5450 = vunpack.c.h.b16 %v5364
        %v5451 = vunpack.c.l.b16 %v5365
        %v5452 = vunpack.c.h.b16 %v5365
        %v5453 = vunpack.c.l.b16 %v5366
        %v5454 = vunpack.c.h.b16 %v5366
        %v5455 = vunpack.c.l.b16 %v5367
        %v5456 = vunpack.c.h.b16 %v5367
        %v5457 = vunpack.c.l.b16 %v5368
        %v5458 = vunpack.c.h.b16 %v5368
        %v5459 = vunpack.c.l.b16 %v5369
        %v5460 = vunpack.c.h.b16 %v5369
        %v5461 = vunpack.c.l.b16 %v5370
        %v5462 = vunpack.c.h.b16 %v5370
        %v5463 = vunpack.c.l.b16 %v5371
        %v5464 = vunpack.c.h.b16 %v5371
        %v5465 = vunpack.c.l.b16 %v5372
        %v5466 = vunpack.c.h.b16 %v5372
        %v5467 = vunpack.c.l.b16 %v5373
        %v5468 = vunpack.c.h.b16 %v5373
        %v5469 = vunpack.c.l.b16 %v5374
        %v5470 = vunpack.c.h.b16 %v5374
        %v5471 = vunpack.c.l.b16 %v5375
        %v5472 = vunpack.c.h.b16 %v5375
        %v5473 = vunpack.c.l.b16 %v5376
        %v5474 = vunpack.c.h.b16 %v5376
        %v5475 = vunpack.c.l.b16 %v5377
        %v5476 = vunpack.c.h.b16 %v5377
        %v5477 = vunpack.c.l.b16 %v5378
        %v5478 = vunpack.c.h.b16 %v5378
        %v5479 = vunpack.c.l.b16 %v5379
        %v5480 = vunpack.c.h.b16 %v5379
        %v5481 = vunpack.c.l.b16 %v5380
        %v5482 = vunpack.c.h.b16 %v5380
        %v5483 = vunpack.c.l.b16 %v5381
        %v5484 = vunpack.c.h.b16 %v5381
        %v5485 = vunpack.c.l.b16 %v5382
        %v5486 = vunpack.c.h.b16 %v5382
        %v5487 = vunpack.c.l.b16 %v5383
        %v5488 = vunpack.c.h.b16 %v5383
        %v5489 = vunpack.c.l.b16 %v5384
        %v5490 = vunpack.c.h.b16 %v5384
        %v5491 = vunpack.c.l.b16 %v5385
        %v5492 = vunpack.c.h.b16 %v5385
        %v5493 = vunpack.c.l.b16 %v5386
        %v5494 = vunpack.c.h.b16 %v5386
        %v5495 = vunpack.c.l.b16 %v5387
        %v5496 = vunpack.c.h.b16 %v5387
        %v5497 = vpack.c.b16 %v5435, %v5433
        %v5498 = vpack.c.b16 %v5436, %v5434
        %v5499 = vpack.c.b16 %v5439, %v5437
        %v5500 = vpack.c.b16 %v5440, %v5438
        %v5501 = vpack.c.b16 %v5443, %v5441
        %v5502 = vpack.c.b16 %v5444, %v5442
        %v5503 = vpack.c.b16 %v5447, %v5445
        %v5504 = vpack.c.b16 %v5448, %v5446
        %v5505 = vpack.c.b16 %v5451, %v5449
        %v5506 = vpack.c.b16 %v5452, %v5450
        %v5507 = vpack.c.b16 %v5455, %v5453
        %v5508 = vpack.c.b16 %v5456, %v5454
        %v5509 = vpack.c.b16 %v5459, %v5457
        %v5510 = vpack.c.b16 %v5460, %v5458
        %v5511 = vpack.c.b16 %v5463, %v5461
        %v5512 = vpack.c.b16 %v5464, %v5462
        %v5513 = vpack.c.b16 %v5467, %v5465
        %v5514 = vpack.c.b16 %v5468, %v5466
        %v5515 = vpack.c.b16 %v5471, %v5469
        %v5516 = vpack.c.b16 %v5472, %v5470
        %v5517 = vpack.c.b16 %v5475, %v5473
        %v5518 = vpack.c.b16 %v5476, %v5474
        %v5519 = vpack.c.b16 %v5479, %v5477
        %v5520 = vpack.c.b16 %v5480, %v5478
        %v5521 = vpack.c.b16 %v5483, %v5481
        %v5522 = vpack.c.b16 %v5484, %v5482
        %v5523 = vpack.c.b16 %v5487, %v5485
        %v5524 = vpack.c.b16 %v5488, %v5486
        %v5525 = vpack.c.b16 %v5491, %v5489
        %v5526 = vpack.c.b16 %v5492, %v5490
        %v5527 = vpack.c.b16 %v5495, %v5493
        %v5528 = vpack.c.b16 %v5496, %v5494
        %5561 = vmatprep.subr.bf16.mxu0 %v5498
        %5562 = vmatpush1.bf16.msra.mxu0 %v5497
        %5563 = vmatprep.subr.bf16.mxu0 %v5500
        %5564 = vmatpush1.bf16.msra.mxu0 %v5499
        %5565 = vmatprep.subr.bf16.mxu0 %v5502
        %5566 = vmatpush1.bf16.msra.mxu0 %v5501
        %5567 = vmatprep.subr.bf16.mxu0 %v5504
        %5568 = vmatpush1.bf16.msra.mxu0 %v5503
        %5569 = vmatprep.subr.bf16.mxu0 %v5506
        %5570 = vmatpush1.bf16.msra.mxu0 %v5505
        %5571 = vmatprep.subr.bf16.mxu0 %v5508
        %5572 = vmatpush1.bf16.msra.mxu0 %v5507
        %5573 = vmatprep.subr.bf16.mxu0 %v5510
        %5574 = vmatpush1.bf16.msra.mxu0 %v5509
        %5575 = vmatprep.subr.bf16.mxu0 %v5512
        %5576 = vmatpush1.bf16.msra.mxu0 %v5511
        %5577 = vmatprep.subr.bf16.mxu0 %v5514
        %5578 = vmatpush1.bf16.msra.mxu0 %v5513
        %5579 = vmatprep.subr.bf16.mxu0 %v5516
        %5580 = vmatpush1.bf16.msra.mxu0 %v5515
        %5581 = vmatprep.subr.bf16.mxu0 %v5518
        %5582 = vmatpush1.bf16.msra.mxu0 %v5517
        %5583 = vmatprep.subr.bf16.mxu0 %v5520
        %5584 = vmatpush1.bf16.msra.mxu0 %v5519
        %5585 = vmatprep.subr.bf16.mxu0 %v5522
        %5586 = vmatpush1.bf16.msra.mxu0 %v5521
        %5587 = vmatprep.subr.bf16.mxu0 %v5524
        %5588 = vmatpush1.bf16.msra.mxu0 %v5523
        %5589 = vmatprep.subr.bf16.mxu0 %v5526
        %5590 = vmatpush1.bf16.msra.mxu0 %v5525
        %5591 = vmatprep.subr.bf16.mxu0 %v5528
        %5592 = vmatpush1.bf16.msra.mxu0 %v5527
        %5593 = vmatprep.mubr.bf16.mxu0 %v5324
        %5594 = vmatmul.mubr.bf16.gmra.mrb[0].mxu0 %v5323
        %v5595 = vpop.f32.mrb[0].mxu0
        %v5596 = vadd.f32 %v5394, %v5595
        %v5597 = vpop.f32.mrb[0].mxu0
        %v5598 = vadd.f32 %v5398, %v5597
        %v5599 = vpop.f32.mrb[0].mxu0
        %v5600 = vadd.f32 %v5394, %v5599
        %v5601 = vpop.f32.mrb[0].mxu0
        %v5602 = vadd.f32 %v5398, %v5601
        %5603 = vmatprep.mubr.bf16.mxu0 %v5326
        %5604 = vmatmul.mubr.bf16.gmra.mrb[0].mxu0 %v5325
        %v5605 = vpop.f32.mrb[0].mxu0
        %v5606 = vadd.f32 %v5394, %v5605
        %v5607 = vpop.f32.mrb[0].mxu0
        %v5608 = vadd.f32 %v5398, %v5607
        %v5609 = vpop.f32.mrb[0].mxu0
        %v5610 = vadd.f32 %v5394, %v5609
        %v5611 = vpop.f32.mrb[0].mxu0
        %v5612 = vadd.f32 %v5398, %v5611
        %5613 = vmatprep.mubr.bf16.mxu0 %v5328
        %5614 = vmatmul.mubr.bf16.gmra.mrb[0].mxu0 %v5327
        %v5615 = vpop.f32.mrb[0].mxu0
        %v5616 = vadd.f32 %v5394, %v5615
        %v5617 = vpop.f32.mrb[0].mxu0
        %v5618 = vadd.f32 %v5398, %v5617
        %v5619 = vpop.f32.mrb[0].mxu0
        %v5620 = vadd.f32 %v5394, %v5619
        %v5621 = vpop.f32.mrb[0].mxu0
        %v5622 = vadd.f32 %v5398, %v5621
        %5623 = vmatprep.mubr.bf16.mxu0 %v5330
        %5624 = vmatmul.mubr.bf16.gmra.mrb[0].mxu0 %v5329
        %v5625 = vpop.f32.mrb[0].mxu0
        %v5626 = vadd.f32 %v5394, %v5625
        %v5627 = vpop.f32.mrb[0].mxu0
        %v5628 = vadd.f32 %v5398, %v5627
        %v5629 = vpop.f32.mrb[0].mxu0
        %v5630 = vadd.f32 %v5394, %v5629
        %v5631 = vpop.f32.mrb[0].mxu0
        %v5632 = vadd.f32 %v5398, %v5631
        %5633 = vmatprep.mubr.bf16.mxu0 %v5332
        %5634 = vmatmul.mubr.bf16.gmra.mrb[0].mxu0 %v5331
        %v5635 = vpop.f32.mrb[0].mxu0
        %v5636 = vadd.f32 %v5394, %v5635
        %v5637 = vpop.f32.mrb[0].mxu0
        %v5638 = vadd.f32 %v5398, %v5637
        %v5639 = vpop.f32.mrb[0].mxu0
        %v5640 = vadd.f32 %v5394, %v5639
        %v5641 = vpop.f32.mrb[0].mxu0
        %v5642 = vadd.f32 %v5398, %v5641
        %5643 = vmatprep.mubr.bf16.mxu0 %v5334
        %5644 = vmatmul.mubr.bf16.gmra.mrb[0].mxu0 %v5333
        %v5645 = vpop.f32.mrb[0].mxu0
        %v5646 = vadd.f32 %v5394, %v5645
        %v5647 = vpop.f32.mrb[0].mxu0
        %v5648 = vadd.f32 %v5398, %v5647
        %v5649 = vpop.f32.mrb[0].mxu0
        %v5650 = vadd.f32 %v5394, %v5649
        %v5651 = vpop.f32.mrb[0].mxu0
        %v5652 = vadd.f32 %v5398, %v5651
        %5653 = vmatprep.mubr.bf16.mxu0 %v5336
        %5654 = vmatmul.mubr.bf16.gmra.mrb[0].mxu0 %v5335
        %v5655 = vpop.f32.mrb[0].mxu0
        %v5656 = vadd.f32 %v5394, %v5655
        %v5657 = vpop.f32.mrb[0].mxu0
        %v5658 = vadd.f32 %v5398, %v5657
        %v5659 = vpop.f32.mrb[0].mxu0
        %v5660 = vadd.f32 %v5394, %v5659
        %v5661 = vpop.f32.mrb[0].mxu0
        %v5662 = vadd.f32 %v5398, %v5661
        %5663 = vmatprep.mubr.bf16.mxu0 %v5338
        %5664 = vmatmul.mubr.bf16.gmra.mrb[0].mxu0 %v5337
        %v5665 = vpop.f32.mrb[0].mxu0
        %v5666 = vadd.f32 %v5394, %v5665
        %v5667 = vpop.f32.mrb[0].mxu0
        %v5668 = vadd.f32 %v5398, %v5667
        %v5669 = vpop.f32.mrb[0].mxu0
        %v5670 = vadd.f32 %v5394, %v5669
        %v5671 = vpop.f32.mrb[0].mxu0
        %v5672 = vadd.f32 %v5398, %v5671
        %5673 = vmatprep.mubr.bf16.mxu0 %v5340
        %5674 = vmatmul.mubr.bf16.gmra.mrb[0].mxu0 %v5339
        %v5675 = vpop.f32.mrb[0].mxu0
        %v5676 = vadd.f32 %v5394, %v5675
        %v5677 = vpop.f32.mrb[0].mxu0
        %v5678 = vadd.f32 %v5398, %v5677
        %v5679 = vpop.f32.mrb[0].mxu0
        %v5680 = vadd.f32 %v5394, %v5679
        %v5681 = vpop.f32.mrb[0].mxu0
        %v5682 = vadd.f32 %v5398, %v5681
        %5683 = vmatprep.mubr.bf16.mxu0 %v5342
        %5684 = vmatmul.mubr.bf16.gmra.mrb[0].mxu0 %v5341
        %v5685 = vpop.f32.mrb[0].mxu0
        %v5686 = vadd.f32 %v5394, %v5685
        %v5687 = vpop.f32.mrb[0].mxu0
        %v5688 = vadd.f32 %v5398, %v5687
        %v5689 = vpop.f32.mrb[0].mxu0
        %v5690 = vadd.f32 %v5394, %v5689
        %v5691 = vpop.f32.mrb[0].mxu0
        %v5692 = vadd.f32 %v5398, %v5691
        %5693 = vmatprep.mubr.bf16.mxu0 %v5344
        %5694 = vmatmul.mubr.bf16.gmra.mrb[0].mxu0 %v5343
        %v5695 = vpop.f32.mrb[0].mxu0
        %v5696 = vadd.f32 %v5394, %v5695
        %v5697 = vpop.f32.mrb[0].mxu0
        %v5698 = vadd.f32 %v5398, %v5697
        %v5699 = vpop.f32.mrb[0].mxu0
        %v5700 = vadd.f32 %v5394, %v5699
        %v5701 = vpop.f32.mrb[0].mxu0
        %v5702 = vadd.f32 %v5398, %v5701
        %5703 = vmatprep.mubr.bf16.mxu0 %v5346
        %5704 = vmatmul.mubr.bf16.gmra.mrb[0].mxu0 %v5345
        %v5705 = vpop.f32.mrb[0].mxu0
        %v5706 = vadd.f32 %v5394, %v5705
        %v5707 = vpop.f32.mrb[0].mxu0
        %v5708 = vadd.f32 %v5398, %v5707
        %v5709 = vpop.f32.mrb[0].mxu0
        %v5710 = vadd.f32 %v5394, %v5709
        %v5711 = vpop.f32.mrb[0].mxu0
        %v5712 = vadd.f32 %v5398, %v5711
        %5713 = vmatprep.mubr.bf16.mxu0 %v5348
        %5714 = vmatmul.mubr.bf16.gmra.mrb[0].mxu0 %v5347
        %v5715 = vpop.f32.mrb[0].mxu0
        %v5716 = vadd.f32 %v5394, %v5715
        %v5717 = vpop.f32.mrb[0].mxu0
        %v5718 = vadd.f32 %v5398, %v5717
        %v5719 = vpop.f32.mrb[0].mxu0
        %v5720 = vadd.f32 %v5394, %v5719
        %v5721 = vpop.f32.mrb[0].mxu0
        %v5722 = vadd.f32 %v5398, %v5721
        %5723 = vmatprep.mubr.bf16.mxu0 %v5350
        %5724 = vmatmul.mubr.bf16.gmra.mrb[0].mxu0 %v5349
        %v5725 = vpop.f32.mrb[0].mxu0
        %v5726 = vadd.f32 %v5394, %v5725
        %v5727 = vpop.f32.mrb[0].mxu0
        %v5728 = vadd.f32 %v5398, %v5727
        %v5729 = vpop.f32.mrb[0].mxu0
        %v5730 = vadd.f32 %v5394, %v5729
        %v5731 = vpop.f32.mrb[0].mxu0
        %v5732 = vadd.f32 %v5398, %v5731
        %5733 = vmatprep.mubr.bf16.mxu0 %v5352
        %5734 = vmatmul.mubr.bf16.gmra.mrb[0].mxu0 %v5351
        %v5735 = vpop.f32.mrb[0].mxu0
        %v5736 = vadd.f32 %v5394, %v5735
        %v5737 = vpop.f32.mrb[0].mxu0
        %v5738 = vadd.f32 %v5398, %v5737
        %v5739 = vpop.f32.mrb[0].mxu0
        %v5740 = vadd.f32 %v5394, %v5739
        %v5741 = vpop.f32.mrb[0].mxu0
        %v5742 = vadd.f32 %v5398, %v5741
        %5743 = vmatprep.mubr.bf16.mxu0 %v5354
        %5744 = vmatmul.mubr.bf16.gmra.mrb[0].mxu0 %v5353
        %v5745 = vpop.f32.mrb[0].mxu0
        %v5746 = vadd.f32 %v5394, %v5745
        %v5747 = vpop.f32.mrb[0].mxu0
        %v5748 = vadd.f32 %v5398, %v5747
        %v5749 = vpop.f32.mrb[0].mxu0
        %v5750 = vadd.f32 %v5394, %v5749
        %v5751 = vpop.f32.mrb[0].mxu0
        %v5752 = vadd.f32 %v5398, %v5751
        %5753 = vdwg.mxu0
        %v5754 = vtanh.pop %v5596
        %v5755 = vtanh.pop %v5600
        %v5756 = vtanh.pop %v5606
        %v5757 = vtanh.pop %v5610
        %v5758 = vtanh.pop %v5616
        %v5759 = vtanh.pop %v5620
        %v5760 = vtanh.pop %v5626
        %v5761 = vtanh.pop %v5630
        %v5762 = vtanh.pop %v5636
        %v5763 = vtanh.pop %v5640
        %v5764 = vtanh.pop %v5646
        %v5765 = vtanh.pop %v5650
        %v5766 = vtanh.pop %v5656
        %v5767 = vtanh.pop %v5660
        %v5768 = vtanh.pop %v5666
        %v5769 = vtanh.pop %v5670
        %v5770 = vtanh.pop %v5676
        %v5771 = vtanh.pop %v5680
        %v5772 = vtanh.pop %v5686
        %v5773 = vtanh.pop %v5690
        %v5774 = vtanh.pop %v5696
        %v5775 = vtanh.pop %v5700
        %v5776 = vtanh.pop %v5706
        %v5777 = vtanh.pop %v5710
        %v5778 = vtanh.pop %v5716
        %v5779 = vtanh.pop %v5720
        %v5780 = vtanh.pop %v5726
        %v5781 = vtanh.pop %v5730
        %v5782 = vtanh.pop %v5736
        %v5783 = vtanh.pop %v5740
        %v5784 = vtanh.pop %v5746
        %v5785 = vtanh.pop %v5750
        %v5786 = vsub.f32 0.0, %v5598
        %v5787 = vsub.f32 0.0, %v5602
        %v5788 = vsub.f32 0.0, %v5608
        %v5789 = vsub.f32 0.0, %v5612
        %v5790 = vsub.f32 0.0, %v5618
        %v5791 = vsub.f32 0.0, %v5622
        %v5792 = vsub.f32 0.0, %v5628
        %v5793 = vsub.f32 0.0, %v5632
        %v5794 = vsub.f32 0.0, %v5638
        %v5795 = vsub.f32 0.0, %v5642
        %v5796 = vsub.f32 0.0, %v5648
        %v5797 = vsub.f32 0.0, %v5652
        %v5798 = vsub.f32 0.0, %v5658
        %v5799 = vsub.f32 0.0, %v5662
        %v5800 = vsub.f32 0.0, %v5668
        %v5801 = vsub.f32 0.0, %v5672
        %v5802 = vsub.f32 0.0, %v5678
        %v5803 = vsub.f32 0.0, %v5682
        %v5804 = vsub.f32 0.0, %v5688
        %v5805 = vsub.f32 0.0, %v5692
        %v5806 = vsub.f32 0.0, %v5698
        %v5807 = vsub.f32 0.0, %v5702
        %v5808 = vsub.f32 0.0, %v5708
        %v5809 = vsub.f32 0.0, %v5712
        %v5810 = vsub.f32 0.0, %v5718
        %v5811 = vsub.f32 0.0, %v5722
        %v5812 = vsub.f32 0.0, %v5728
        %v5813 = vsub.f32 0.0, %v5732
        %v5814 = vsub.f32 0.0, %v5738
        %v5815 = vsub.f32 0.0, %v5742
        %v5816 = vsub.f32 0.0, %v5748
        %v5817 = vsub.f32 0.0, %v5752
        %v5818 = vmul.f32 %v5786, 1.442695
        %v5819 = vpow.pop %v5818
        %v5820 = vmul.f32 %v5787, 1.442695
        %v5821 = vpow.pop %v5820
        %v5822 = vmul.f32 %v5788, 1.442695
        %v5823 = vpow.pop %v5822
        %v5824 = vmul.f32 %v5789, 1.442695
        %v5825 = vpow.pop %v5824
        %v5826 = vmul.f32 %v5790, 1.442695
        %v5827 = vpow.pop %v5826
        %v5828 = vmul.f32 %v5791, 1.442695
        %v5829 = vpow.pop %v5828
        %v5830 = vmul.f32 %v5792, 1.442695
        %v5831 = vpow.pop %v5830
        %v5832 = vmul.f32 %v5793, 1.442695
        %v5833 = vpow.pop %v5832
        %v5834 = vmul.f32 %v5794, 1.442695
        %v5835 = vpow.pop %v5834
        %v5836 = vmul.f32 %v5795, 1.442695
        %v5837 = vpow.pop %v5836
        %v5838 = vmul.f32 %v5796, 1.442695
        %v5839 = vpow.pop %v5838
        %v5840 = vmul.f32 %v5797, 1.442695
        %v5841 = vpow.pop %v5840
        %v5842 = vmul.f32 %v5798, 1.442695
        %v5843 = vpow.pop %v5842
        %v5844 = vmul.f32 %v5799, 1.442695
        %v5845 = vpow.pop %v5844
        %v5846 = vmul.f32 %v5800, 1.442695
        %v5847 = vpow.pop %v5846
        %v5848 = vmul.f32 %v5801, 1.442695
        %v5849 = vpow.pop %v5848
        %v5850 = vmul.f32 %v5802, 1.442695
        %v5851 = vpow.pop %v5850
        %v5852 = vmul.f32 %v5803, 1.442695
        %v5853 = vpow.pop %v5852
        %v5854 = vmul.f32 %v5804, 1.442695
        %v5855 = vpow.pop %v5854
        %v5856 = vmul.f32 %v5805, 1.442695
        %v5857 = vpow.pop %v5856
        %v5858 = vmul.f32 %v5806, 1.442695
        %v5859 = vpow.pop %v5858
        %v5860 = vmul.f32 %v5807, 1.442695
        %v5861 = vpow.pop %v5860
        %v5862 = vmul.f32 %v5808, 1.442695
        %v5863 = vpow.pop %v5862
        %v5864 = vmul.f32 %v5809, 1.442695
        %v5865 = vpow.pop %v5864
        %v5866 = vmul.f32 %v5810, 1.442695
        %v5867 = vpow.pop %v5866
        %v5868 = vmul.f32 %v5811, 1.442695
        %v5869 = vpow.pop %v5868
        %v5870 = vmul.f32 %v5812, 1.442695
        %v5871 = vpow.pop %v5870
        %v5872 = vmul.f32 %v5813, 1.442695
        %v5873 = vpow.pop %v5872
        %v5874 = vmul.f32 %v5814, 1.442695
        %v5875 = vpow.pop %v5874
        %v5876 = vmul.f32 %v5815, 1.442695
        %v5877 = vpow.pop %v5876
        %v5878 = vmul.f32 %v5816, 1.442695
        %v5879 = vpow.pop %v5878
        %v5880 = vmul.f32 %v5817, 1.442695
        %v5881 = vpow.pop %v5880
        %v5882 = vadd.f32 %v5819, 1.0
        %v5883 = vadd.f32 %v5821, 1.0
        %v5884 = vadd.f32 %v5823, 1.0
        %v5885 = vadd.f32 %v5825, 1.0
        %v5886 = vadd.f32 %v5827, 1.0
        %v5887 = vadd.f32 %v5829, 1.0
        %v5888 = vadd.f32 %v5831, 1.0
        %v5889 = vadd.f32 %v5833, 1.0
        %v5890 = vadd.f32 %v5835, 1.0
        %v5891 = vadd.f32 %v5837, 1.0
        %v5892 = vadd.f32 %v5839, 1.0
        %v5893 = vadd.f32 %v5841, 1.0
        %v5894 = vadd.f32 %v5843, 1.0
        %v5895 = vadd.f32 %v5845, 1.0
        %v5896 = vadd.f32 %v5847, 1.0
        %v5897 = vadd.f32 %v5849, 1.0
        %v5898 = vadd.f32 %v5851, 1.0
        %v5899 = vadd.f32 %v5853, 1.0
        %v5900 = vadd.f32 %v5855, 1.0
        %v5901 = vadd.f32 %v5857, 1.0
        %v5902 = vadd.f32 %v5859, 1.0
        %v5903 = vadd.f32 %v5861, 1.0
        %v5904 = vadd.f32 %v5863, 1.0
        %v5905 = vadd.f32 %v5865, 1.0
        %v5906 = vadd.f32 %v5867, 1.0
        %v5907 = vadd.f32 %v5869, 1.0
        %v5908 = vadd.f32 %v5871, 1.0
        %v5909 = vadd.f32 %v5873, 1.0
        %v5910 = vadd.f32 %v5875, 1.0
        %v5911 = vadd.f32 %v5877, 1.0
        %v5912 = vadd.f32 %v5879, 1.0
        %v5913 = vadd.f32 %v5881, 1.0
        %v5914 = vrcp.pop %v5882
        %v5915 = vmul.f32 1.0, %v5914
        %v5916 = vrcp.pop %v5883
        %v5917 = vmul.f32 1.0, %v5916
        %v5918 = vrcp.pop %v5884
        %v5919 = vmul.f32 1.0, %v5918
        %v5920 = vrcp.pop %v5885
        %v5921 = vmul.f32 1.0, %v5920
        %v5922 = vrcp.pop %v5886
        %v5923 = vmul.f32 1.0, %v5922
        %v5924 = vrcp.pop %v5887
        %v5925 = vmul.f32 1.0, %v5924
        %v5926 = vrcp.pop %v5888
        %v5927 = vmul.f32 1.0, %v5926
        %v5928 = vrcp.pop %v5889
        %v5929 = vmul.f32 1.0, %v5928
        %v5930 = vrcp.pop %v5890
        %v5931 = vmul.f32 1.0, %v5930
        %v5932 = vrcp.pop %v5891
        %v5933 = vmul.f32 1.0, %v5932
        %v5934 = vrcp.pop %v5892
        %v5935 = vmul.f32 1.0, %v5934
        %v5936 = vrcp.pop %v5893
        %v5937 = vmul.f32 1.0, %v5936
        %v5938 = vrcp.pop %v5894
        %v5939 = vmul.f32 1.0, %v5938
        %v5940 = vrcp.pop %v5895
        %v5941 = vmul.f32 1.0, %v5940
        %v5942 = vrcp.pop %v5896
        %v5943 = vmul.f32 1.0, %v5942
        %v5944 = vrcp.pop %v5897
        %v5945 = vmul.f32 1.0, %v5944
        %v5946 = vrcp.pop %v5898
        %v5947 = vmul.f32 1.0, %v5946
        %v5948 = vrcp.pop %v5899
        %v5949 = vmul.f32 1.0, %v5948
        %v5950 = vrcp.pop %v5900
        %v5951 = vmul.f32 1.0, %v5950
        %v5952 = vrcp.pop %v5901
        %v5953 = vmul.f32 1.0, %v5952
        %v5954 = vrcp.pop %v5902
        %v5955 = vmul.f32 1.0, %v5954
        %v5956 = vrcp.pop %v5903
        %v5957 = vmul.f32 1.0, %v5956
        %v5958 = vrcp.pop %v5904
        %v5959 = vmul.f32 1.0, %v5958
        %v5960 = vrcp.pop %v5905
        %v5961 = vmul.f32 1.0, %v5960
        %v5962 = vrcp.pop %v5906
        %v5963 = vmul.f32 1.0, %v5962
        %v5964 = vrcp.pop %v5907
        %v5965 = vmul.f32 1.0, %v5964
        %v5966 = vrcp.pop %v5908
        %v5967 = vmul.f32 1.0, %v5966
        %v5968 = vrcp.pop %v5909
        %v5969 = vmul.f32 1.0, %v5968
        %v5970 = vrcp.pop %v5910
        %v5971 = vmul.f32 1.0, %v5970
        %v5972 = vrcp.pop %v5911
        %v5973 = vmul.f32 1.0, %v5972
        %v5974 = vrcp.pop %v5912
        %v5975 = vmul.f32 1.0, %v5974
        %v5976 = vrcp.pop %v5913
        %v5977 = vmul.f32 1.0, %v5976
        %v5978 = vmul.f32 %v5754, %v5915
        %v5979 = vmul.f32 %v5755, %v5917
        %v5980 = vmul.f32 %v5756, %v5919
        %v5981 = vmul.f32 %v5757, %v5921
        %v5982 = vmul.f32 %v5758, %v5923
        %v5983 = vmul.f32 %v5759, %v5925
        %v5984 = vmul.f32 %v5760, %v5927
        %v5985 = vmul.f32 %v5761, %v5929
        %v5986 = vmul.f32 %v5762, %v5931
        %v5987 = vmul.f32 %v5763, %v5933
        %v5988 = vmul.f32 %v5764, %v5935
        %v5989 = vmul.f32 %v5765, %v5937
        %v5990 = vmul.f32 %v5766, %v5939
        %v5991 = vmul.f32 %v5767, %v5941
        %v5992 = vmul.f32 %v5768, %v5943
        %v5993 = vmul.f32 %v5769, %v5945
        %v5994 = vmul.f32 %v5770, %v5947
        %v5995 = vmul.f32 %v5771, %v5949
        %v5996 = vmul.f32 %v5772, %v5951
        %v5997 = vmul.f32 %v5773, %v5953
        %v5998 = vmul.f32 %v5774, %v5955
        %v5999 = vmul.f32 %v5775, %v5957
        %v6000 = vmul.f32 %v5776, %v5959
        %v6001 = vmul.f32 %v5777, %v5961
        %v6002 = vmul.f32 %v5778, %v5963
        %v6003 = vmul.f32 %v5779, %v5965
        %v6004 = vmul.f32 %v5780, %v5967
        %v6005 = vmul.f32 %v5781, %v5969
        %v6006 = vmul.f32 %v5782, %v5971
        %v6007 = vmul.f32 %v5783, %v5973
        %v6008 = vmul.f32 %v5784, %v5975
        %v6009 = vmul.f32 %v5785, %v5977
        %s6010 = scalar_lea.vmem %s5, 1
        %v6011 = vld [vmem:[%s6010] sm:$0x1]
        %v6013 = vlaneseq
        %v6014 = vshrl.u32 %v6013, 7
        %v6015 = vsub.s32 0, %v6014
        %v6016 = vrot.slane %v6011, %v6015
        %v6018 = vmul.f32 %v5978, %v6016
        %v6019 = vmul.f32 %v5979, %v6016
        %v6020 = vmul.f32 %v5980, %v6016
        %v6021 = vmul.f32 %v5981, %v6016
        %v6022 = vmul.f32 %v5982, %v6016
        %v6023 = vmul.f32 %v5983, %v6016
        %v6024 = vmul.f32 %v5984, %v6016
        %v6025 = vmul.f32 %v5985, %v6016
        %v6026 = vmul.f32 %v5986, %v6016
        %v6027 = vmul.f32 %v5987, %v6016
        %v6028 = vmul.f32 %v5988, %v6016
        %v6029 = vmul.f32 %v5989, %v6016
        %v6030 = vmul.f32 %v5990, %v6016
        %v6031 = vmul.f32 %v5991, %v6016
        %v6032 = vmul.f32 %v5992, %v6016
        %v6033 = vmul.f32 %v5993, %v6016
        %v6034 = vmul.f32 %v5994, %v6016
        %v6035 = vmul.f32 %v5995, %v6016
        %v6036 = vmul.f32 %v5996, %v6016
        %v6037 = vmul.f32 %v5997, %v6016
        %v6038 = vmul.f32 %v5998, %v6016
        %v6039 = vmul.f32 %v5999, %v6016
        %v6040 = vmul.f32 %v6000, %v6016
        %v6041 = vmul.f32 %v6001, %v6016
        %v6042 = vmul.f32 %v6002, %v6016
        %v6043 = vmul.f32 %v6003, %v6016
        %v6044 = vmul.f32 %v6004, %v6016
        %v6045 = vmul.f32 %v6005, %v6016
        %v6046 = vmul.f32 %v6006, %v6016
        %v6047 = vmul.f32 %v6007, %v6016
        %v6048 = vmul.f32 %v6008, %v6016
        %v6049 = vmul.f32 %v6009, %v6016
        %6050 = vadd.xlane.f32.xlu0 %v6018
        %v6051 = vpop.xlane.xlu0 %6050
        %6052 = vadd.xlane.f32.xlu0 %v6019
        %v6053 = vpop.xlane.xlu0 %6052
        %6054 = vadd.xlane.f32.xlu0 %v6020
        %v6055 = vpop.xlane.xlu0 %6054
        %6056 = vadd.xlane.f32.xlu0 %v6021
        %v6057 = vpop.xlane.xlu0 %6056
        %6058 = vadd.xlane.f32.xlu0 %v6022
        %v6059 = vpop.xlane.xlu0 %6058
        %6060 = vadd.xlane.f32.xlu0 %v6023
        %v6061 = vpop.xlane.xlu0 %6060
        %6062 = vadd.xlane.f32.xlu0 %v6024
        %v6063 = vpop.xlane.xlu0 %6062
        %6064 = vadd.xlane.f32.xlu0 %v6025
        %v6065 = vpop.xlane.xlu0 %6064
        %6066 = vadd.xlane.f32.xlu0 %v6026
        %v6067 = vpop.xlane.xlu0 %6066
        %6068 = vadd.xlane.f32.xlu0 %v6027
        %v6069 = vpop.xlane.xlu0 %6068
        %6070 = vadd.xlane.f32.xlu0 %v6028
        %v6071 = vpop.xlane.xlu0 %6070
        %6072 = vadd.xlane.f32.xlu0 %v6029
        %v6073 = vpop.xlane.xlu0 %6072
        %6074 = vadd.xlane.f32.xlu0 %v6030
        %v6075 = vpop.xlane.xlu0 %6074
        %6076 = vadd.xlane.f32.xlu0 %v6031
        %v6077 = vpop.xlane.xlu0 %6076
        %6078 = vadd.xlane.f32.xlu0 %v6032
        %v6079 = vpop.xlane.xlu0 %6078
        %6080 = vadd.xlane.f32.xlu0 %v6033
        %v6081 = vpop.xlane.xlu0 %6080
        %6082 = vadd.xlane.f32.xlu0 %v6034
        %v6083 = vpop.xlane.xlu0 %6082
        %6084 = vadd.xlane.f32.xlu0 %v6035
        %v6085 = vpop.xlane.xlu0 %6084
        %6086 = vadd.xlane.f32.xlu0 %v6036
        %v6087 = vpop.xlane.xlu0 %6086
        %6088 = vadd.xlane.f32.xlu0 %v6037
        %v6089 = vpop.xlane.xlu0 %6088
        %6090 = vadd.xlane.f32.xlu0 %v6038
        %v6091 = vpop.xlane.xlu0 %6090
        %6092 = vadd.xlane.f32.xlu0 %v6039
        %v6093 = vpop.xlane.xlu0 %6092
        %6094 = vadd.xlane.f32.xlu0 %v6040
        %v6095 = vpop.xlane.xlu0 %6094
        %6096 = vadd.xlane.f32.xlu0 %v6041
        %v6097 = vpop.xlane.xlu0 %6096
        %6098 = vadd.xlane.f32.xlu0 %v6042
        %v6099 = vpop.xlane.xlu0 %6098
        %6100 = vadd.xlane.f32.xlu0 %v6043
        %v6101 = vpop.xlane.xlu0 %6100
        %6102 = vadd.xlane.f32.xlu0 %v6044
        %v6103 = vpop.xlane.xlu0 %6102
        %6104 = vadd.xlane.f32.xlu0 %v6045
        %v6105 = vpop.xlane.xlu0 %6104
        %6106 = vadd.xlane.f32.xlu0 %v6046
        %v6107 = vpop.xlane.xlu0 %6106
        %6108 = vadd.xlane.f32.xlu0 %v6047
        %v6109 = vpop.xlane.xlu0 %6108
        %6110 = vadd.xlane.f32.xlu0 %v6048
        %v6111 = vpop.xlane.xlu0 %6110
        %6112 = vadd.xlane.f32.xlu0 %v6049
        %v6113 = vpop.xlane.xlu0 %6112
        %s6114 = scalar_lea.vmem %s6, 1
        %v6115 = vld [vmem:[%s6114] sm:$0x1]
        %v6117 = vlaneseq
        %v6118 = vshrl.u32 %v6117, 7
        %v6119 = vsub.s32 0, %v6118
        %v6120 = vrot.slane %v6115, %v6119
        %v6122 = vadd.f32 %v6051, %v6120
        %v6123 = vadd.f32 %v6053, %v6120
        %v6124 = vadd.f32 %v6055, %v6120
        %v6125 = vadd.f32 %v6057, %v6120
        %v6126 = vadd.f32 %v6059, %v6120
        %v6127 = vadd.f32 %v6061, %v6120
        %v6128 = vadd.f32 %v6063, %v6120
        %v6129 = vadd.f32 %v6065, %v6120
        %v6130 = vadd.f32 %v6067, %v6120
        %v6131 = vadd.f32 %v6069, %v6120
        %v6132 = vadd.f32 %v6071, %v6120
        %v6133 = vadd.f32 %v6073, %v6120
        %v6134 = vadd.f32 %v6075, %v6120
        %v6135 = vadd.f32 %v6077, %v6120
        %v6136 = vadd.f32 %v6079, %v6120
        %v6137 = vadd.f32 %v6081, %v6120
        %v6138 = vadd.f32 %v6083, %v6120
        %v6139 = vadd.f32 %v6085, %v6120
        %v6140 = vadd.f32 %v6087, %v6120
        %v6141 = vadd.f32 %v6089, %v6120
        %v6142 = vadd.f32 %v6091, %v6120
        %v6143 = vadd.f32 %v6093, %v6120
        %v6144 = vadd.f32 %v6095, %v6120
        %v6145 = vadd.f32 %v6097, %v6120
        %v6146 = vadd.f32 %v6099, %v6120
        %v6147 = vadd.f32 %v6101, %v6120
        %v6148 = vadd.f32 %v6103, %v6120
        %v6149 = vadd.f32 %v6105, %v6120
        %v6150 = vadd.f32 %v6107, %v6120
        %v6151 = vadd.f32 %v6109, %v6120
        %v6152 = vadd.f32 %v6111, %v6120
        %v6153 = vadd.f32 %v6113, %v6120
        %6186 = vrot.lane.b32.xlu0 %v6122, 1
        %v6187 = vpop.permute.xlu0 %6186
        %6188 = vrot.lane.b32.xlu0 %v6123, 1
        %v6189 = vpop.permute.xlu0 %6188
        %6190 = vrot.lane.b32.xlu0 %v6124, 1
        %v6191 = vpop.permute.xlu0 %6190
        %6192 = vrot.lane.b32.xlu0 %v6125, 1
        %v6193 = vpop.permute.xlu0 %6192
        %6194 = vrot.lane.b32.xlu0 %v6126, 1
        %v6195 = vpop.permute.xlu0 %6194
        %6196 = vrot.lane.b32.xlu0 %v6127, 1
        %v6197 = vpop.permute.xlu0 %6196
        %6198 = vrot.lane.b32.xlu0 %v6128, 1
        %v6199 = vpop.permute.xlu0 %6198
        %6200 = vrot.lane.b32.xlu0 %v6129, 1
        %v6201 = vpop.permute.xlu0 %6200
        %6202 = vrot.lane.b32.xlu0 %v6130, 1
        %v6203 = vpop.permute.xlu0 %6202
        %6204 = vrot.lane.b32.xlu0 %v6131, 1
        %v6205 = vpop.permute.xlu0 %6204
        %6206 = vrot.lane.b32.xlu0 %v6132, 1
        %v6207 = vpop.permute.xlu0 %6206
        %6208 = vrot.lane.b32.xlu0 %v6133, 1
        %v6209 = vpop.permute.xlu0 %6208
        %6210 = vrot.lane.b32.xlu0 %v6134, 1
        %v6211 = vpop.permute.xlu0 %6210
        %6212 = vrot.lane.b32.xlu0 %v6135, 1
        %v6213 = vpop.permute.xlu0 %6212
        %6214 = vrot.lane.b32.xlu0 %v6136, 1
        %v6215 = vpop.permute.xlu0 %6214
        %6216 = vrot.lane.b32.xlu0 %v6137, 1
        %v6217 = vpop.permute.xlu0 %6216
        %6218 = vrot.lane.b32.xlu0 %v6138, 1
        %v6219 = vpop.permute.xlu0 %6218
        %6220 = vrot.lane.b32.xlu0 %v6139, 1
        %v6221 = vpop.permute.xlu0 %6220
        %6222 = vrot.lane.b32.xlu0 %v6140, 1
        %v6223 = vpop.permute.xlu0 %6222
        %6224 = vrot.lane.b32.xlu0 %v6141, 1
        %v6225 = vpop.permute.xlu0 %6224
        %6226 = vrot.lane.b32.xlu0 %v6142, 1
        %v6227 = vpop.permute.xlu0 %6226
        %6228 = vrot.lane.b32.xlu0 %v6143, 1
        %v6229 = vpop.permute.xlu0 %6228
        %6230 = vrot.lane.b32.xlu0 %v6144, 1
        %v6231 = vpop.permute.xlu0 %6230
        %6232 = vrot.lane.b32.xlu0 %v6145, 1
        %v6233 = vpop.permute.xlu0 %6232
        %6234 = vrot.lane.b32.xlu0 %v6146, 1
        %v6235 = vpop.permute.xlu0 %6234
        %6236 = vrot.lane.b32.xlu0 %v6147, 1
        %v6237 = vpop.permute.xlu0 %6236
        %6238 = vrot.lane.b32.xlu0 %v6148, 1
        %v6239 = vpop.permute.xlu0 %6238
        %6240 = vrot.lane.b32.xlu0 %v6149, 1
        %v6241 = vpop.permute.xlu0 %6240
        %6242 = vrot.lane.b32.xlu0 %v6150, 1
        %v6243 = vpop.permute.xlu0 %6242
        %6244 = vrot.lane.b32.xlu0 %v6151, 1
        %v6245 = vpop.permute.xlu0 %6244
        %6246 = vrot.lane.b32.xlu0 %v6152, 1
        %v6247 = vpop.permute.xlu0 %6246
        %6248 = vrot.lane.b32.xlu0 %v6153, 1
        %v6249 = vpop.permute.xlu0 %6248
        %vm6282 = vcmask 7168
        %v6283 = vsel %vm6282, %v5291, %v6187
        %v6284 = vsel %vm6282, %v5292, %v6189
        %v6285 = vsel %vm6282, %v5293, %v6191
        %v6286 = vsel %vm6282, %v5294, %v6193
        %v6287 = vsel %vm6282, %v5295, %v6195
        %v6288 = vsel %vm6282, %v5296, %v6197
        %v6289 = vsel %vm6282, %v5297, %v6199
        %v6290 = vsel %vm6282, %v5298, %v6201
        %v6291 = vsel %vm6282, %v5299, %v6203
        %v6292 = vsel %vm6282, %v5300, %v6205
        %v6293 = vsel %vm6282, %v5301, %v6207
        %v6294 = vsel %vm6282, %v5302, %v6209
        %v6295 = vsel %vm6282, %v5303, %v6211
        %v6296 = vsel %vm6282, %v5304, %v6213
        %v6297 = vsel %vm6282, %v5305, %v6215
        %v6298 = vsel %vm6282, %v5306, %v6217
        %v6299 = vsel %vm6282, %v5307, %v6219
        %v6300 = vsel %vm6282, %v5308, %v6221
        %v6301 = vsel %vm6282, %v5309, %v6223
        %v6302 = vsel %vm6282, %v5310, %v6225
        %v6303 = vsel %vm6282, %v5311, %v6227
        %v6304 = vsel %vm6282, %v5312, %v6229
        %v6305 = vsel %vm6282, %v5313, %v6231
        %v6306 = vsel %vm6282, %v5314, %v6233
        %v6307 = vsel %vm6282, %v5315, %v6235
        %v6308 = vsel %vm6282, %v5316, %v6237
        %v6309 = vsel %vm6282, %v5317, %v6239
        %v6310 = vsel %vm6282, %v5318, %v6241
        %v6311 = vsel %vm6282, %v5319, %v6243
        %v6312 = vsel %vm6282, %v5320, %v6245
        %v6313 = vsel %vm6282, %v5321, %v6247
        %v6314 = vsel %vm6282, %v5322, %v6249
        %vm6315 = vcmask 15360
        %6316 = vst.msk [vmem:[%s368] sm:$0xff] %vm6315, %v6283
        %6317 = vst.msk [vmem:[%s368 + $0x8] sm:$0xff] %vm6315, %v6284
        %6318 = vst.msk [vmem:[%s368 + $0x10] sm:$0xff] %vm6315, %v6285
        %6319 = vst.msk [vmem:[%s368 + $0x18] sm:$0xff] %vm6315, %v6286
        %6320 = vst.msk [vmem:[%s368 + $0x20] sm:$0xff] %vm6315, %v6287
        %6321 = vst.msk [vmem:[%s368 + $0x28] sm:$0xff] %vm6315, %v6288
        %6322 = vst.msk [vmem:[%s368 + $0x30] sm:$0xff] %vm6315, %v6289
        %6323 = vst.msk [vmem:[%s368 + $0x38] sm:$0xff] %vm6315, %v6290
        %6324 = vst.msk [vmem:[%s368 + $0x40] sm:$0xff] %vm6315, %v6291
        %6325 = vst.msk [vmem:[%s368 + $0x48] sm:$0xff] %vm6315, %v6292
        %6326 = vst.msk [vmem:[%s368 + $0x50] sm:$0xff] %vm6315, %v6293
        %6327 = vst.msk [vmem:[%s368 + $0x58] sm:$0xff] %vm6315, %v6294
        %6328 = vst.msk [vmem:[%s368 + $0x60] sm:$0xff] %vm6315, %v6295
        %6329 = vst.msk [vmem:[%s368 + $0x68] sm:$0xff] %vm6315, %v6296
        %6330 = vst.msk [vmem:[%s368 + $0x70] sm:$0xff] %vm6315, %v6297
        %6331 = vst.msk [vmem:[%s368 + $0x78] sm:$0xff] %vm6315, %v6298
        %6332 = vst.msk [vmem:[%s368 + $0x80] sm:$0xff] %vm6315, %v6299
        %6333 = vst.msk [vmem:[%s368 + $0x88] sm:$0xff] %vm6315, %v6300
        %6334 = vst.msk [vmem:[%s368 + $0x90] sm:$0xff] %vm6315, %v6301
        %6335 = vst.msk [vmem:[%s368 + $0x98] sm:$0xff] %vm6315, %v6302
        %6336 = vst.msk [vmem:[%s368 + $0xa0] sm:$0xff] %vm6315, %v6303
        %6337 = vst.msk [vmem:[%s368 + $0xa8] sm:$0xff] %vm6315, %v6304
        %6338 = vst.msk [vmem:[%s368 + $0xb0] sm:$0xff] %vm6315, %v6305
        %6339 = vst.msk [vmem:[%s368 + $0xb8] sm:$0xff] %vm6315, %v6306
        %6340 = vst.msk [vmem:[%s368 + $0xc0] sm:$0xff] %vm6315, %v6307
        %6341 = vst.msk [vmem:[%s368 + $0xc8] sm:$0xff] %vm6315, %v6308
        %6342 = vst.msk [vmem:[%s368 + $0xd0] sm:$0xff] %vm6315, %v6309
        %6343 = vst.msk [vmem:[%s368 + $0xd8] sm:$0xff] %vm6315, %v6310
        %6344 = vst.msk [vmem:[%s368 + $0xe0] sm:$0xff] %vm6315, %v6311
        %6345 = vst.msk [vmem:[%s368 + $0xe8] sm:$0xff] %vm6315, %v6312
        %6346 = vst.msk [vmem:[%s368 + $0xf0] sm:$0xff] %vm6315, %v6313
        %6347 = vst.msk [vmem:[%s368 + $0xf8] sm:$0xff] %vm6315, %v6314
        %s6348 = sand.u32 %s187, 1
        %s6349 = scalar_lea.sflag [#allocation4], %s6348
        %s6350 = sand.u32 %s187, 1
        %s6351 = smul.addr %s6350, 1024
        %s6352 = scalar_lea.vmem [#allocation8], %s6351
        %s6353 = smul.u32 32, %s27
        %p6354 = scmp.lt.s32.totalorder %s6353, 63
        %s6355 = scalar_select %p6354, %s6353, 63
        %s6356 = smul.addr %s6355, 8
        %s6357 = scalar_lea.vmem %s8, %s6356
        // Predicated region
        $region61: #{tpu_custom_call.1} parent=47 // pred_check
          %p6358 = pneg %p197
        $region62: #{tpu_custom_call.1} parent=47 // pred_check_branch
          %6360 = sbr.rel (%p6358) target = $region64
        $region63: #{tpu_custom_call.1} parent=47 // pred_region
          %s6361 = smul.u32 32, %s27
          %s6363 = ssub.s32 16384, 16384
          %6364 = vsyncadd %s6349, %s6363
          %s6365 = smul.addr %s6361, 4
          %s6366 = smul.addr %s6365, 128
          %s6367 = scalar_lea.hbm %s7, %s6366
          %s6368 = sshll.u32 %s6352, 4
          %s6369 = int_to_ptr.vmem [resolvable:$true] %s6368
          %6374 = dma.vmem_to_hbm [thread:$0]  %s6369, 16384, %s6367, %s6349, 512, 512, 32
        $region64: #{tpu_custom_call.1} parent=47 // pred_fallthru
          _
        // Predicated region
        $region65: #{tpu_custom_call.1} parent=47 // pred_check
          %p6375 = pneg %p223
        $region66: #{tpu_custom_call.1} parent=47 // pred_check_branch
          %6377 = sbr.rel (%p6375) target = $region68
        $region67: #{tpu_custom_call.1} parent=47 // pred_region
          %s6378 = smul.u32 32, %s27
        $region68: #{tpu_custom_call.1} parent=47 // pred_fallthru
          _
      $region48: #{tpu_custom_call.1} parent=5 // pred_fallthru
        _
      %p6379 = scmp.le.s32.totalorder 2, %s22
      // Predicated region
      $region69: #{tpu_custom_call.1} parent=5 // pred_check
        %p6380 = pneg %p6379
      $region70: #{tpu_custom_call.1} parent=5 // pred_check_branch
        %6382 = sbr.rel (%p6380) target = $region72
      $region71: #{tpu_custom_call.1} parent=5 // pred_region
        %s6383 = ssub.s32 %s22, 2
        // Predicated region
        $region73: #{tpu_custom_call.1} parent=71 // pred_check
          %p6384 = pneg %p203
        $region74: #{tpu_custom_call.1} parent=71 // pred_check_branch
          %6386 = sbr.rel (%p6384) target = $region76
        $region75: #{tpu_custom_call.1} parent=71 // pred_region
          %s6387 = sand.u32 %s188, 1
          %s6388 = scalar_lea.sflag [#allocation4], %s6387
          %s6389 = sand.u32 %s188, 1
          %s6390 = smul.addr %s6389, 1024
          %s6391 = scalar_lea.vmem [#allocation8], %s6390
          %6392 = dma.done %s6388, 16384
        $region76: #{tpu_custom_call.1} parent=71 // pred_fallthru
          _
        // Predicated region
        $region77: #{tpu_custom_call.1} parent=71 // pred_check
          %p6393 = pneg %p229
        $region78: #{tpu_custom_call.1} parent=71 // pred_check_branch
          %6395 = sbr.rel (%p6393) target = $region80
        $region79: #{tpu_custom_call.1} parent=71 // pred_region
          %s6396 = smul.u32 32, %s28
          %p6397 = scmp.lt.s32.totalorder %s6396, 63
          %s6398 = scalar_select %p6397, %s6396, 63
          %s6399 = smul.addr %s6398, 8
          %s6400 = scalar_lea.vmem %s8, %s6399
        $region80: #{tpu_custom_call.1} parent=71 // pred_fallthru
          _
      $region72: #{tpu_custom_call.1} parent=5 // pred_fallthru
        _
    $region6: #{tpu_custom_call.1} parent=1 // loop_footer
      %s26 = sadd.s32 1, %s22
    $region7: #{tpu_custom_call.1} parent=1 // loop_footer_branch
      %21 = sbr.rel target = $region3
    $region8: #{tpu_custom_call.1} parent=1 // loop_exit
      _
    %6401 = vsyncpa [#allocation3], 1
    %s6402 = scalar_lea.sflag [#allocation3], 1
    %6403 = vsyncpa %s6402, 1
    %6404 = vsyncpa [#allocation6], 1
    %6405 = vsyncpa [#allocation4], 1
    %s6406 = scalar_lea.sflag [#allocation4], 1
    %6407 = vsyncpa %s6406, 1

</llo_original>
